<compile_context>
chip_gen: v7x
topology: tpu7x:2x2x1
jax: 0.10.0
libtpu: 0.0.40
codegen_flags: <defaults>
</compile_context>

<pallas_src>
import jax
import jax.numpy as jnp
from jax.experimental import pallas as pl
from jax.experimental.pallas import tpu as pltpu

K = 3            # conv kernel size
KK = K * K       # 9 taps
CONV_C = 128     # stand-in backbone conv channels (lane-dense)
FEAT_D = 2048    # backbone feature dim fed to the projector
PROJ_H = 512     # nn.Linear(2048, 512)
PROJ_O = 128     # nn.Linear(512, 128)


def _simclr_kernel(patch_ref, wc_ref, bc_ref, wp1_ref, bp1_ref, w2_ref, b2_ref,
                   z_ref):
    n, hw, kc = patch_ref.shape                     # (TILE_N, HW, 27), bf16

    # ---- stand-in backbone conv: one K=27 matmul over flattened patches ----
    tap = patch_ref[...].reshape(n * hw, kc)        # layout-preserving flatten
    conv = jnp.dot(tap, wc_ref[...], preferred_element_type=jnp.float32)
    conv = jnp.maximum(conv + bc_ref[...], 0.0)     # bias + ReLU, f32

    # GAP: sum over HW (the 1/HW scale is folded into wp1 by the wrapper)
    feat = jnp.sum(conv.reshape(n, hw, CONV_C), axis=1)      # (TILE_N, 128) f32

    # ---- fused (backbone FC @ projector Linear(2048,512)) + ReLU ----
    h1 = jnp.dot(feat.astype(jnp.bfloat16), wp1_ref[...],
                 preferred_element_type=jnp.float32) + bp1_ref[...]
    h1 = jnp.maximum(h1, 0.0)

    # ---- projector Linear(512, 128) ----
    z_ref[...] = (jnp.dot(h1.astype(jnp.bfloat16), w2_ref[...],
                          preferred_element_type=jnp.float32) + b2_ref[...])


def init_params(key, in_ch=3, k=K):
    """Deterministic synthetic weights (shapes follow SimCLR.__init__)."""
    ks = jax.random.split(key, 4)

    def lin(kk, fan_in, shape):
        return jax.random.normal(kk, shape, jnp.float32) / jnp.sqrt(float(fan_in))

    return dict(
        wc=lin(ks[0], in_ch * k * k, (k * k, in_ch, CONV_C)),   # per-tap slices
        bc=jnp.zeros((1, CONV_C), jnp.float32),
        wfc=lin(ks[1], CONV_C, (CONV_C, FEAT_D)),
        bfc=jnp.zeros((1, FEAT_D), jnp.float32),
        w1=lin(ks[2], FEAT_D, (FEAT_D, PROJ_H)),                # Linear(2048, 512)
        b1=jnp.zeros((1, PROJ_H), jnp.float32),
        w2=lin(ks[3], PROJ_H, (PROJ_H, PROJ_O)),                # Linear(512, 128)
        b2=jnp.zeros((1, PROJ_O), jnp.float32),
    )


def _choose_tile_n(n, hw):
    """VMEM-budget-aware batch tile (multiple of 8, capped at 256)."""
    # per-sample bytes: im2col block (bf16, lanes pad 27->128) x 2 pipeline
    # buffers + f32 conv activation (+ ReLU temp) of the same footprint.
    per_sample = hw * 128 * (2 * 2 + 4 * 2)
    cap = int((36 << 20) // max(per_sample, 1))
    cap = max(8, min(256, (cap // 8) * 8))
    n8 = ((n + 7) // 8) * 8
    tile = min(cap, n8)
    if tile == n8 and n8 >= 16:
        # guarantee >=2 grid steps so the "parallel" axis can split across the
        # two TensorCores on v7x instead of leaving one idle.
        tile = max(8, ((n8 // 2 + 7) // 8) * 8)
    return tile


def simclr_forward(x_nchw, params):
    N, _, H, W = x_nchw.shape
    HW = H * W
    kc = params['wc'].shape[0] * params['wc'].shape[1]          # 27

    # bf16 before transpose/pad (halves host-side HBM traffic), then im2col:
    # 9 shifted windows concatenated along the (lane-dense) last axis.
    x = jnp.transpose(x_nchw.astype(jnp.bfloat16), (0, 2, 3, 1))          # NHWC
    xpad = jnp.pad(x, ((0, 0), (1, 1), (1, 1), (0, 0)))
    taps = [xpad[:, dy:dy + H, dx:dx + W, :]
            for dy in range(K) for dx in range(K)]
    patches = jnp.concatenate(taps, axis=-1).reshape(N, HW, kc)  # (N, HW, 27) bf16

    TILE_N = _choose_tile_n(N, HW)
    N_pad = pl.cdiv(N, TILE_N) * TILE_N
    if N_pad != N:
        patches = jnp.pad(patches, ((0, N_pad - N), (0, 0), (0, 0)))

    # Trace-time weight prep (f32 folds, then bf16 for the MXU):
    #   conv weight -> (27, 128); fold GAP 1/HW and backbone FC into projector L1.
    wc = params['wc'].reshape(kc, CONV_C).astype(jnp.bfloat16)
    wp1 = ((params['wfc'] * (1.0 / float(HW))) @ params['w1']).astype(jnp.bfloat16)
    bp1 = params['bfc'] @ params['w1'] + params['b1']            # (1, 512) f32
    w2 = params['w2'].astype(jnp.bfloat16)

    in_specs = [
        pl.BlockSpec((TILE_N, HW, kc), lambda i: (i, 0, 0)),     # batch-tiled patches
        pl.BlockSpec((kc, CONV_C), lambda i: (0, 0)),            # weights VMEM-resident
        pl.BlockSpec((1, CONV_C), lambda i: (0, 0)),
        pl.BlockSpec((CONV_C, PROJ_H), lambda i: (0, 0)),
        pl.BlockSpec((1, PROJ_H), lambda i: (0, 0)),
        pl.BlockSpec((PROJ_H, PROJ_O), lambda i: (0, 0)),
        pl.BlockSpec((1, PROJ_O), lambda i: (0, 0)),
    ]

    z = pl.pallas_call(
        _simclr_kernel,
        out_shape=jax.ShapeDtypeStruct((N_pad, PROJ_O), jnp.float32),
        grid=(N_pad // TILE_N,),
        in_specs=in_specs,
        out_specs=pl.BlockSpec((TILE_N, PROJ_O), lambda i: (i, 0)),  # lane-dense output
        compiler_params=pltpu.CompilerParams(
            dimension_semantics=("parallel",),   # megacore split on v7x
            vmem_limit_bytes=48 << 20,           # fits v7x's 64 MiB physical VMEM
        ),
    )(patches, wc, params['bc'], wp1, bp1, w2, params['b2'])
    return z[:N]


if __name__ == "__main__":
    key = jax.random.PRNGKey(0)
    kx, kp = jax.random.split(key)

    # Small NCHW image batch, like the PyTorch module's input.
    x = jax.random.normal(kx, (2, 3, 16, 16), jnp.float32)
    params = init_params(kp, in_ch=3)

    z = jax.jit(simclr_forward)(x, params)
    jax.block_until_ready(z)
    assert z.shape == (2, PROJ_O) and z.dtype == jnp.float32

    print("KERNEL_OK")
</pallas_src>

<mosaic_0001>
module attributes {stable_mosaic.version = 11 : i64} {
  func.func @_simclr_kernel(%arg0: i32, %arg1: memref<8x256x27xbf16, #tpu.memory_space<vmem>>, %arg2: memref<27x128xbf16, #tpu.memory_space<vmem>>, %arg3: memref<1x128xf32, #tpu.memory_space<vmem>>, %arg4: memref<128x512xbf16, #tpu.memory_space<vmem>>, %arg5: memref<1x512xf32, #tpu.memory_space<vmem>>, %arg6: memref<512x128xbf16, #tpu.memory_space<vmem>>, %arg7: memref<1x128xf32, #tpu.memory_space<vmem>>, %arg8: memref<8x128xf32, #tpu.memory_space<vmem>>) attributes {dimension_semantics = [#tpu.dimension_semantics<parallel>], iteration_bounds = array<i64: 1>, scalar_prefetch = 0 : i64, scratch_operands = 0 : i64, tpu.core_type = #tpu.core_type<tc>, window_params = [{transform_indices = @transform_0, window_bounds = array<i64: 8, 256, 27>}, {pipeline_mode = #tpu.pipeline_mode<synchronous>, transform_indices = @transform_1, window_bounds = array<i64: 27, 128>}, {pipeline_mode = #tpu.pipeline_mode<synchronous>, transform_indices = @transform_2, window_bounds = array<i64: 1, 128>}, {pipeline_mode = #tpu.pipeline_mode<synchronous>, transform_indices = @transform_3, window_bounds = array<i64: 128, 512>}, {pipeline_mode = #tpu.pipeline_mode<synchronous>, transform_indices = @transform_4, window_bounds = array<i64: 1, 512>}, {pipeline_mode = #tpu.pipeline_mode<synchronous>, transform_indices = @transform_5, window_bounds = array<i64: 512, 128>}, {pipeline_mode = #tpu.pipeline_mode<synchronous>, transform_indices = @transform_6, window_bounds = array<i64: 1, 128>}, {transform_indices = @transform_7, window_bounds = array<i64: 8, 128>}]} {
    %c0 = arith.constant 0 : index
    %c0_0 = arith.constant 0 : index
    %c0_1 = arith.constant 0 : index
    %0 = vector.load %arg1[%c0, %c0_0, %c0_1] : memref<8x256x27xbf16, #tpu.memory_space<vmem>>, vector<8x256x27xbf16>
    %1 = vector.shape_cast %0 : vector<8x256x27xbf16> to vector<2048x27xbf16>
    %c0_2 = arith.constant 0 : index
    %c0_3 = arith.constant 0 : index
    %2 = vector.load %arg2[%c0_2, %c0_3] : memref<27x128xbf16, #tpu.memory_space<vmem>>, vector<27x128xbf16>
    %cst = arith.constant dense<0.000000e+00> : vector<2048x128xf32>
    %3 = tpu.matmul %1, %2, %cst {dimension_numbers = #tpu.dot_dimension_numbers<[1], [0], [0], [1], [0, 0, 1, 1], [], []>} : vector<2048x27xbf16>, vector<27x128xbf16>, vector<2048x128xf32> -> vector<2048x128xf32>
    %c0_4 = arith.constant 0 : index
    %c0_5 = arith.constant 0 : index
    %4 = vector.load %arg3[%c0_4, %c0_5] : memref<1x128xf32, #tpu.memory_space<vmem>>, vector<1x128xf32>
    %5 = vector.broadcast %4 : vector<1x128xf32> to vector<2048x128xf32>
    %6 = arith.addf %3, %5 : vector<2048x128xf32>
    %cst_6 = arith.constant 0.000000e+00 : f32
    %7 = vector.broadcast %cst_6 : f32 to vector<2048x128xf32>
    %8 = arith.maximumf %6, %7 : vector<2048x128xf32>
    %9 = vector.shape_cast %8 : vector<2048x128xf32> to vector<8x256x128xf32>
    %cst_7 = arith.constant dense<0.000000e+00> : vector<8x128xf32>
    %10 = vector.multi_reduction <add>, %9, %cst_7 [1] : vector<8x256x128xf32> to vector<8x128xf32>
    %11 = arith.truncf %10 : vector<8x128xf32> to vector<8x128xbf16>
    %c0_8 = arith.constant 0 : index
    %c0_9 = arith.constant 0 : index
    %12 = vector.load %arg4[%c0_8, %c0_9] : memref<128x512xbf16, #tpu.memory_space<vmem>>, vector<128x512xbf16>
    %cst_10 = arith.constant dense<0.000000e+00> : vector<8x512xf32>
    %13 = tpu.matmul %11, %12, %cst_10 {dimension_numbers = #tpu.dot_dimension_numbers<[1], [0], [0], [1], [0, 0, 1, 1], [], []>} : vector<8x128xbf16>, vector<128x512xbf16>, vector<8x512xf32> -> vector<8x512xf32>
    %c0_11 = arith.constant 0 : index
    %c0_12 = arith.constant 0 : index
    %14 = vector.load %arg5[%c0_11, %c0_12] : memref<1x512xf32, #tpu.memory_space<vmem>>, vector<1x512xf32>
    %15 = vector.broadcast %14 : vector<1x512xf32> to vector<8x512xf32>
    %16 = arith.addf %13, %15 : vector<8x512xf32>
    %cst_13 = arith.constant 0.000000e+00 : f32
    %17 = vector.broadcast %cst_13 : f32 to vector<8x512xf32>
    %18 = arith.maximumf %16, %17 : vector<8x512xf32>
    %19 = arith.truncf %18 : vector<8x512xf32> to vector<8x512xbf16>
    %c0_14 = arith.constant 0 : index
    %c0_15 = arith.constant 0 : index
    %20 = vector.load %arg6[%c0_14, %c0_15] : memref<512x128xbf16, #tpu.memory_space<vmem>>, vector<512x128xbf16>
    %cst_16 = arith.constant dense<0.000000e+00> : vector<8x128xf32>
    %21 = tpu.matmul %19, %20, %cst_16 {dimension_numbers = #tpu.dot_dimension_numbers<[1], [0], [0], [1], [0, 0, 1, 1], [], []>} : vector<8x512xbf16>, vector<512x128xbf16>, vector<8x128xf32> -> vector<8x128xf32>
    %c0_17 = arith.constant 0 : index
    %c0_18 = arith.constant 0 : index
    %22 = vector.load %arg7[%c0_17, %c0_18] : memref<1x128xf32, #tpu.memory_space<vmem>>, vector<1x128xf32>
    %23 = vector.broadcast %22 : vector<1x128xf32> to vector<8x128xf32>
    %24 = arith.addf %21, %23 : vector<8x128xf32>
    %c0_19 = arith.constant 0 : index
    %c0_20 = arith.constant 0 : index
    %25 = vector.load %arg8[%c0_19, %c0_20] : memref<8x128xf32, #tpu.memory_space<vmem>>, vector<8x128xf32>
    tpu.vector_store %arg8[%c0_19, %c0_20], %24 {strides = array<i32>} : memref<8x128xf32, #tpu.memory_space<vmem>>, vector<8x128xf32>,
    return
  }
  func.func @transform_0(%arg0: i32) -> (i32, i32, i32) {
    %c0_i32 = arith.constant 0 : i32
    %c0_i32_0 = arith.constant 0 : i32
    %c0_i32_1 = arith.constant 0 : i32
    return %arg0, %c0_i32, %c0_i32_0 : i32, i32, i32
  }
  func.func @transform_1(%arg0: i32) -> (i32, i32) {
    %c0_i32 = arith.constant 0 : i32
    %c0_i32_0 = arith.constant 0 : i32
    %c0_i32_1 = arith.constant 0 : i32
    return %c0_i32, %c0_i32_0 : i32, i32
  }
  func.func @transform_2(%arg0: i32) -> (i32, i32) {
    %c0_i32 = arith.constant 0 : i32
    %c0_i32_0 = arith.constant 0 : i32
    %c0_i32_1 = arith.constant 0 : i32
    return %c0_i32, %c0_i32_0 : i32, i32
  }
  func.func @transform_3(%arg0: i32) -> (i32, i32) {
    %c0_i32 = arith.constant 0 : i32
    %c0_i32_0 = arith.constant 0 : i32
    %c0_i32_1 = arith.constant 0 : i32
    return %c0_i32, %c0_i32_0 : i32, i32
  }
  func.func @transform_4(%arg0: i32) -> (i32, i32) {
    %c0_i32 = arith.constant 0 : i32
    %c0_i32_0 = arith.constant 0 : i32
    %c0_i32_1 = arith.constant 0 : i32
    return %c0_i32, %c0_i32_0 : i32, i32
  }
  func.func @transform_5(%arg0: i32) -> (i32, i32) {
    %c0_i32 = arith.constant 0 : i32
    %c0_i32_0 = arith.constant 0 : i32
    %c0_i32_1 = arith.constant 0 : i32
    return %c0_i32, %c0_i32_0 : i32, i32
  }
  func.func @transform_6(%arg0: i32) -> (i32, i32) {
    %c0_i32 = arith.constant 0 : i32
    %c0_i32_0 = arith.constant 0 : i32
    %c0_i32_1 = arith.constant 0 : i32
    return %c0_i32, %c0_i32_0 : i32, i32
  }
  func.func @transform_7(%arg0: i32) -> (i32, i32) {
    %c0_i32 = arith.constant 0 : i32
    %c0_i32_0 = arith.constant 0 : i32
    return %arg0, %c0_i32 : i32, i32
  }
}

</mosaic_0001>

<llo_original>
// kernel: simclr_forward.1
$region0: #{simclr_forward.1}
  #allocation0 [shape = 'u32[]', space=smem, size = 0x4, offset = 0x4, fixed_abs, tag = 'smem constant byte address 0x4 - core index']
  #allocation1 [shape = 'u32[144,128]{1,0:T(1,128)}', space=vmem, size = 0x12000, scoped, tag = 'internal scratch']
  %s0 = inlined_call_operand.vmem [shape: bf16[8,256,27], index: 0, kind: input, shape index: {}]
  %s1 = inlined_call_operand.vmem [shape: bf16[27,128], index: 1, kind: input, shape index: {}]
  %s2 = inlined_call_operand.vmem [shape: f32[1,128], index: 2, kind: input, shape index: {}]
  %s3 = inlined_call_operand.vmem [shape: bf16[128,512], index: 3, kind: input, shape index: {}]
  %s4 = inlined_call_operand.vmem [shape: f32[1,512], index: 4, kind: input, shape index: {}]
  %s5 = inlined_call_operand.vmem [shape: bf16[512,128], index: 5, kind: input, shape index: {}]
  %s6 = inlined_call_operand.vmem [shape: f32[1,128], index: 6, kind: input, shape index: {}]
  %s7 = inlined_call_operand.vmem [shape: f32[8,128], index: 7, kind: output, shape index: {}]
  %s8 = sld [smem:[#allocation0]]
  $region38: #{simclr_forward.1} parent=0
    _
  %s10 = ssub.s32 1, %s8
  %s11 = scalar_select 0, %s10, %s8
  // Predicated region
  $region2: #{simclr_forward.1} parent=0 // pred_check
    _
  $region3: #{simclr_forward.1} parent=0 // pred_check_branch
    %13 = sbr.rel (0) target = $region5
  $region4: #{simclr_forward.1} parent=0 // pred_region
    _
  $region5: #{simclr_forward.1} parent=0 // pred_fallthru
    _
  // Predicated region
  $region6: #{simclr_forward.1} parent=0 // pred_check
    _
  $region7: #{simclr_forward.1} parent=0 // pred_check_branch
    %15 = sbr.rel (0) target = $region9
  $region8: #{simclr_forward.1} parent=0 // pred_region
    _
  $region9: #{simclr_forward.1} parent=0 // pred_fallthru
    _
  // Predicated region
  $region10: #{simclr_forward.1} parent=0 // pred_check
    _
  $region11: #{simclr_forward.1} parent=0 // pred_check_branch
    %17 = sbr.rel (0) target = $region13
  $region12: #{simclr_forward.1} parent=0 // pred_region
    _
  $region13: #{simclr_forward.1} parent=0 // pred_fallthru
    _
  // Predicated region
  $region14: #{simclr_forward.1} parent=0 // pred_check
    _
  $region15: #{simclr_forward.1} parent=0 // pred_check_branch
    %19 = sbr.rel (0) target = $region17
  $region16: #{simclr_forward.1} parent=0 // pred_region
    _
  $region17: #{simclr_forward.1} parent=0 // pred_fallthru
    _
  // Predicated region
  $region18: #{simclr_forward.1} parent=0 // pred_check
    _
  $region19: #{simclr_forward.1} parent=0 // pred_check_branch
    %21 = sbr.rel (0) target = $region21
  $region20: #{simclr_forward.1} parent=0 // pred_region
    _
  $region21: #{simclr_forward.1} parent=0 // pred_fallthru
    _
  // Predicated region
  $region22: #{simclr_forward.1} parent=0 // pred_check
    _
  $region23: #{simclr_forward.1} parent=0 // pred_check_branch
    %23 = sbr.rel (0) target = $region25
  $region24: #{simclr_forward.1} parent=0 // pred_region
    _
  $region25: #{simclr_forward.1} parent=0 // pred_fallthru
    _
  // Predicated region
  $region26: #{simclr_forward.1} parent=0 // pred_check
    _
  $region27: #{simclr_forward.1} parent=0 // pred_check_branch
    %25 = sbr.rel (0) target = $region29
  $region28: #{simclr_forward.1} parent=0 // pred_region
    _
  $region29: #{simclr_forward.1} parent=0 // pred_fallthru
    _
  %v27 = vld [vmem:[%s0] sm:$0xf]
  %v28 = vld [vmem:[%s0 + $0x4] sm:$0xf]
  %v29 = vld [vmem:[%s0 + $0x8] sm:$0xf]
  %v30 = vld [vmem:[%s0 + $0xc] sm:$0xf]
  %v31 = vld [vmem:[%s0 + $0x10] sm:$0xf]
  %v32 = vld [vmem:[%s0 + $0x14] sm:$0xf]
  %v33 = vld [vmem:[%s0 + $0x18] sm:$0xf]
  %v34 = vld [vmem:[%s0 + $0x1c] sm:$0xf]
  %v35 = vld [vmem:[%s0 + $0x20] sm:$0xf]
  %v36 = vld [vmem:[%s0 + $0x24] sm:$0xf]
  %v37 = vld [vmem:[%s0 + $0x28] sm:$0xf]
  %v38 = vld [vmem:[%s0 + $0x2c] sm:$0xf]
  %v39 = vld [vmem:[%s0 + $0x30] sm:$0xf]
  %v40 = vld [vmem:[%s0 + $0x34] sm:$0xf]
  %v41 = vld [vmem:[%s0 + $0x38] sm:$0xf]
  %v42 = vld [vmem:[%s0 + $0x3c] sm:$0xf]
  %v43 = vld [vmem:[%s0 + $0x40] sm:$0xf]
  %v44 = vld [vmem:[%s0 + $0x44] sm:$0xf]
  %v45 = vld [vmem:[%s0 + $0x48] sm:$0xf]
  %v46 = vld [vmem:[%s0 + $0x4c] sm:$0xf]
  %v47 = vld [vmem:[%s0 + $0x50] sm:$0xf]
  %v48 = vld [vmem:[%s0 + $0x54] sm:$0xf]
  %v49 = vld [vmem:[%s0 + $0x58] sm:$0xf]
  %v50 = vld [vmem:[%s0 + $0x5c] sm:$0xf]
  %v51 = vld [vmem:[%s0 + $0x60] sm:$0xf]
  %v52 = vld [vmem:[%s0 + $0x64] sm:$0xf]
  %v53 = vld [vmem:[%s0 + $0x68] sm:$0xf]
  %v54 = vld [vmem:[%s0 + $0x6c] sm:$0xf]
  %v55 = vld [vmem:[%s0 + $0x70] sm:$0xf]
  %v56 = vld [vmem:[%s0 + $0x74] sm:$0xf]
  %v57 = vld [vmem:[%s0 + $0x78] sm:$0xf]
  %v58 = vld [vmem:[%s0 + $0x7c] sm:$0xf]
  %v59 = vld [vmem:[%s0 + $0x80] sm:$0xf]
  %v60 = vld [vmem:[%s0 + $0x84] sm:$0xf]
  %v61 = vld [vmem:[%s0 + $0x88] sm:$0xf]
  %v62 = vld [vmem:[%s0 + $0x8c] sm:$0xf]
  %v63 = vld [vmem:[%s0 + $0x90] sm:$0xf]
  %v64 = vld [vmem:[%s0 + $0x94] sm:$0xf]
  %v65 = vld [vmem:[%s0 + $0x98] sm:$0xf]
  %v66 = vld [vmem:[%s0 + $0x9c] sm:$0xf]
  %v67 = vld [vmem:[%s0 + $0xa0] sm:$0xf]
  %v68 = vld [vmem:[%s0 + $0xa4] sm:$0xf]
  %v69 = vld [vmem:[%s0 + $0xa8] sm:$0xf]
  %v70 = vld [vmem:[%s0 + $0xac] sm:$0xf]
  %v71 = vld [vmem:[%s0 + $0xb0] sm:$0xf]
  %v72 = vld [vmem:[%s0 + $0xb4] sm:$0xf]
  %v73 = vld [vmem:[%s0 + $0xb8] sm:$0xf]
  %v74 = vld [vmem:[%s0 + $0xbc] sm:$0xf]
  %v75 = vld [vmem:[%s0 + $0xc0] sm:$0xf]
  %v76 = vld [vmem:[%s0 + $0xc4] sm:$0xf]
  %v77 = vld [vmem:[%s0 + $0xc8] sm:$0xf]
  %v78 = vld [vmem:[%s0 + $0xcc] sm:$0xf]
  %v79 = vld [vmem:[%s0 + $0xd0] sm:$0xf]
  %v80 = vld [vmem:[%s0 + $0xd4] sm:$0xf]
  %v81 = vld [vmem:[%s0 + $0xd8] sm:$0xf]
  %v82 = vld [vmem:[%s0 + $0xdc] sm:$0xf]
  %v83 = vld [vmem:[%s0 + $0xe0] sm:$0xf]
  %v84 = vld [vmem:[%s0 + $0xe4] sm:$0xf]
  %v85 = vld [vmem:[%s0 + $0xe8] sm:$0xf]
  %v86 = vld [vmem:[%s0 + $0xec] sm:$0xf]
  %v87 = vld [vmem:[%s0 + $0xf0] sm:$0xf]
  %v88 = vld [vmem:[%s0 + $0xf4] sm:$0xf]
  %v89 = vld [vmem:[%s0 + $0xf8] sm:$0xf]
  %v90 = vld [vmem:[%s0 + $0xfc] sm:$0xf]
  %v91 = vld [vmem:[%s0 + $0x100] sm:$0xf]
  %v92 = vld [vmem:[%s0 + $0x104] sm:$0xf]
  %v93 = vld [vmem:[%s0 + $0x108] sm:$0xf]
  %v94 = vld [vmem:[%s0 + $0x10c] sm:$0xf]
  %v95 = vld [vmem:[%s0 + $0x110] sm:$0xf]
  %v96 = vld [vmem:[%s0 + $0x114] sm:$0xf]
  %v97 = vld [vmem:[%s0 + $0x118] sm:$0xf]
  %v98 = vld [vmem:[%s0 + $0x11c] sm:$0xf]
  %v99 = vld [vmem:[%s0 + $0x120] sm:$0xf]
  %v100 = vld [vmem:[%s0 + $0x124] sm:$0xf]
  %v101 = vld [vmem:[%s0 + $0x128] sm:$0xf]
  %v102 = vld [vmem:[%s0 + $0x12c] sm:$0xf]
  %v103 = vld [vmem:[%s0 + $0x130] sm:$0xf]
  %v104 = vld [vmem:[%s0 + $0x134] sm:$0xf]
  %v105 = vld [vmem:[%s0 + $0x138] sm:$0xf]
  %v106 = vld [vmem:[%s0 + $0x13c] sm:$0xf]
  %v107 = vld [vmem:[%s0 + $0x140] sm:$0xf]
  %v108 = vld [vmem:[%s0 + $0x144] sm:$0xf]
  %v109 = vld [vmem:[%s0 + $0x148] sm:$0xf]
  %v110 = vld [vmem:[%s0 + $0x14c] sm:$0xf]
  %v111 = vld [vmem:[%s0 + $0x150] sm:$0xf]
  %v112 = vld [vmem:[%s0 + $0x154] sm:$0xf]
  %v113 = vld [vmem:[%s0 + $0x158] sm:$0xf]
  %v114 = vld [vmem:[%s0 + $0x15c] sm:$0xf]
  %v115 = vld [vmem:[%s0 + $0x160] sm:$0xf]
  %v116 = vld [vmem:[%s0 + $0x164] sm:$0xf]
  %v117 = vld [vmem:[%s0 + $0x168] sm:$0xf]
  %v118 = vld [vmem:[%s0 + $0x16c] sm:$0xf]
  %v119 = vld [vmem:[%s0 + $0x170] sm:$0xf]
  %v120 = vld [vmem:[%s0 + $0x174] sm:$0xf]
  %v121 = vld [vmem:[%s0 + $0x178] sm:$0xf]
  %v122 = vld [vmem:[%s0 + $0x17c] sm:$0xf]
  %v123 = vld [vmem:[%s0 + $0x180] sm:$0xf]
  %v124 = vld [vmem:[%s0 + $0x184] sm:$0xf]
  %v125 = vld [vmem:[%s0 + $0x188] sm:$0xf]
  %v126 = vld [vmem:[%s0 + $0x18c] sm:$0xf]
  %v127 = vld [vmem:[%s0 + $0x190] sm:$0xf]
  %v128 = vld [vmem:[%s0 + $0x194] sm:$0xf]
  %v129 = vld [vmem:[%s0 + $0x198] sm:$0xf]
  %v130 = vld [vmem:[%s0 + $0x19c] sm:$0xf]
  %v131 = vld [vmem:[%s0 + $0x1a0] sm:$0xf]
  %v132 = vld [vmem:[%s0 + $0x1a4] sm:$0xf]
  %v133 = vld [vmem:[%s0 + $0x1a8] sm:$0xf]
  %v134 = vld [vmem:[%s0 + $0x1ac] sm:$0xf]
  %v135 = vld [vmem:[%s0 + $0x1b0] sm:$0xf]
  %v136 = vld [vmem:[%s0 + $0x1b4] sm:$0xf]
  %v137 = vld [vmem:[%s0 + $0x1b8] sm:$0xf]
  %v138 = vld [vmem:[%s0 + $0x1bc] sm:$0xf]
  %v139 = vld [vmem:[%s0 + $0x1c0] sm:$0xf]
  %v140 = vld [vmem:[%s0 + $0x1c4] sm:$0xf]
  %v141 = vld [vmem:[%s0 + $0x1c8] sm:$0xf]
  %v142 = vld [vmem:[%s0 + $0x1cc] sm:$0xf]
  %v143 = vld [vmem:[%s0 + $0x1d0] sm:$0xf]
  %v144 = vld [vmem:[%s0 + $0x1d4] sm:$0xf]
  %v145 = vld [vmem:[%s0 + $0x1d8] sm:$0xf]
  %v146 = vld [vmem:[%s0 + $0x1dc] sm:$0xf]
  %v147 = vld [vmem:[%s0 + $0x1e0] sm:$0xf]
  %v148 = vld [vmem:[%s0 + $0x1e4] sm:$0xf]
  %v149 = vld [vmem:[%s0 + $0x1e8] sm:$0xf]
  %v150 = vld [vmem:[%s0 + $0x1ec] sm:$0xf]
  %v151 = vld [vmem:[%s0 + $0x1f0] sm:$0xf]
  %v152 = vld [vmem:[%s0 + $0x1f4] sm:$0xf]
  %v153 = vld [vmem:[%s0 + $0x1f8] sm:$0xf]
  %v154 = vld [vmem:[%s0 + $0x1fc] sm:$0xf]
  %v155 = vld [vmem:[%s0 + $0x200] sm:$0xf]
  %v156 = vld [vmem:[%s0 + $0x204] sm:$0xf]
  %v157 = vld [vmem:[%s0 + $0x208] sm:$0xf]
  %v158 = vld [vmem:[%s0 + $0x20c] sm:$0xf]
  %v159 = vld [vmem:[%s0 + $0x210] sm:$0xf]
  %v160 = vld [vmem:[%s0 + $0x214] sm:$0xf]
  %v161 = vld [vmem:[%s0 + $0x218] sm:$0xf]
  %v162 = vld [vmem:[%s0 + $0x21c] sm:$0xf]
  %v163 = vld [vmem:[%s0 + $0x220] sm:$0xf]
  %v164 = vld [vmem:[%s0 + $0x224] sm:$0xf]
  %v165 = vld [vmem:[%s0 + $0x228] sm:$0xf]
  %v166 = vld [vmem:[%s0 + $0x22c] sm:$0xf]
  %v167 = vld [vmem:[%s0 + $0x230] sm:$0xf]
  %v168 = vld [vmem:[%s0 + $0x234] sm:$0xf]
  %v169 = vld [vmem:[%s0 + $0x238] sm:$0xf]
  %v170 = vld [vmem:[%s0 + $0x23c] sm:$0xf]
  %v171 = vld [vmem:[%s0 + $0x240] sm:$0xf]
  %v172 = vld [vmem:[%s0 + $0x244] sm:$0xf]
  %v173 = vld [vmem:[%s0 + $0x248] sm:$0xf]
  %v174 = vld [vmem:[%s0 + $0x24c] sm:$0xf]
  %v175 = vld [vmem:[%s0 + $0x250] sm:$0xf]
  %v176 = vld [vmem:[%s0 + $0x254] sm:$0xf]
  %v177 = vld [vmem:[%s0 + $0x258] sm:$0xf]
  %v178 = vld [vmem:[%s0 + $0x25c] sm:$0xf]
  %v179 = vld [vmem:[%s0 + $0x260] sm:$0xf]
  %v180 = vld [vmem:[%s0 + $0x264] sm:$0xf]
  %v181 = vld [vmem:[%s0 + $0x268] sm:$0xf]
  %v182 = vld [vmem:[%s0 + $0x26c] sm:$0xf]
  %v183 = vld [vmem:[%s0 + $0x270] sm:$0xf]
  %v184 = vld [vmem:[%s0 + $0x274] sm:$0xf]
  %v185 = vld [vmem:[%s0 + $0x278] sm:$0xf]
  %v186 = vld [vmem:[%s0 + $0x27c] sm:$0xf]
  %v187 = vld [vmem:[%s0 + $0x280] sm:$0xf]
  %v188 = vld [vmem:[%s0 + $0x284] sm:$0xf]
  %v189 = vld [vmem:[%s0 + $0x288] sm:$0xf]
  %v190 = vld [vmem:[%s0 + $0x28c] sm:$0xf]
  %v191 = vld [vmem:[%s0 + $0x290] sm:$0xf]
  %v192 = vld [vmem:[%s0 + $0x294] sm:$0xf]
  %v193 = vld [vmem:[%s0 + $0x298] sm:$0xf]
  %v194 = vld [vmem:[%s0 + $0x29c] sm:$0xf]
  %v195 = vld [vmem:[%s0 + $0x2a0] sm:$0xf]
  %v196 = vld [vmem:[%s0 + $0x2a4] sm:$0xf]
  %v197 = vld [vmem:[%s0 + $0x2a8] sm:$0xf]
  %v198 = vld [vmem:[%s0 + $0x2ac] sm:$0xf]
  %v199 = vld [vmem:[%s0 + $0x2b0] sm:$0xf]
  %v200 = vld [vmem:[%s0 + $0x2b4] sm:$0xf]
  %v201 = vld [vmem:[%s0 + $0x2b8] sm:$0xf]
  %v202 = vld [vmem:[%s0 + $0x2bc] sm:$0xf]
  %v203 = vld [vmem:[%s0 + $0x2c0] sm:$0xf]
  %v204 = vld [vmem:[%s0 + $0x2c4] sm:$0xf]
  %v205 = vld [vmem:[%s0 + $0x2c8] sm:$0xf]
  %v206 = vld [vmem:[%s0 + $0x2cc] sm:$0xf]
  %v207 = vld [vmem:[%s0 + $0x2d0] sm:$0xf]
  %v208 = vld [vmem:[%s0 + $0x2d4] sm:$0xf]
  %v209 = vld [vmem:[%s0 + $0x2d8] sm:$0xf]
  %v210 = vld [vmem:[%s0 + $0x2dc] sm:$0xf]
  %v211 = vld [vmem:[%s0 + $0x2e0] sm:$0xf]
  %v212 = vld [vmem:[%s0 + $0x2e4] sm:$0xf]
  %v213 = vld [vmem:[%s0 + $0x2e8] sm:$0xf]
  %v214 = vld [vmem:[%s0 + $0x2ec] sm:$0xf]
  %v215 = vld [vmem:[%s0 + $0x2f0] sm:$0xf]
  %v216 = vld [vmem:[%s0 + $0x2f4] sm:$0xf]
  %v217 = vld [vmem:[%s0 + $0x2f8] sm:$0xf]
  %v218 = vld [vmem:[%s0 + $0x2fc] sm:$0xf]
  %v219 = vld [vmem:[%s0 + $0x300] sm:$0xf]
  %v220 = vld [vmem:[%s0 + $0x304] sm:$0xf]
  %v221 = vld [vmem:[%s0 + $0x308] sm:$0xf]
  %v222 = vld [vmem:[%s0 + $0x30c] sm:$0xf]
  %v223 = vld [vmem:[%s0 + $0x310] sm:$0xf]
  %v224 = vld [vmem:[%s0 + $0x314] sm:$0xf]
  %v225 = vld [vmem:[%s0 + $0x318] sm:$0xf]
  %v226 = vld [vmem:[%s0 + $0x31c] sm:$0xf]
  %v227 = vld [vmem:[%s0 + $0x320] sm:$0xf]
  %v228 = vld [vmem:[%s0 + $0x324] sm:$0xf]
  %v229 = vld [vmem:[%s0 + $0x328] sm:$0xf]
  %v230 = vld [vmem:[%s0 + $0x32c] sm:$0xf]
  %v231 = vld [vmem:[%s0 + $0x330] sm:$0xf]
  %v232 = vld [vmem:[%s0 + $0x334] sm:$0xf]
  %v233 = vld [vmem:[%s0 + $0x338] sm:$0xf]
  %v234 = vld [vmem:[%s0 + $0x33c] sm:$0xf]
  %v235 = vld [vmem:[%s0 + $0x340] sm:$0xf]
  %v236 = vld [vmem:[%s0 + $0x344] sm:$0xf]
  %v237 = vld [vmem:[%s0 + $0x348] sm:$0xf]
  %v238 = vld [vmem:[%s0 + $0x34c] sm:$0xf]
  %v239 = vld [vmem:[%s0 + $0x350] sm:$0xf]
  %v240 = vld [vmem:[%s0 + $0x354] sm:$0xf]
  %v241 = vld [vmem:[%s0 + $0x358] sm:$0xf]
  %v242 = vld [vmem:[%s0 + $0x35c] sm:$0xf]
  %v243 = vld [vmem:[%s0 + $0x360] sm:$0xf]
  %v244 = vld [vmem:[%s0 + $0x364] sm:$0xf]
  %v245 = vld [vmem:[%s0 + $0x368] sm:$0xf]
  %v246 = vld [vmem:[%s0 + $0x36c] sm:$0xf]
  %v247 = vld [vmem:[%s0 + $0x370] sm:$0xf]
  %v248 = vld [vmem:[%s0 + $0x374] sm:$0xf]
  %v249 = vld [vmem:[%s0 + $0x378] sm:$0xf]
  %v250 = vld [vmem:[%s0 + $0x37c] sm:$0xf]
  %v251 = vld [vmem:[%s0 + $0x380] sm:$0xf]
  %v252 = vld [vmem:[%s0 + $0x384] sm:$0xf]
  %v253 = vld [vmem:[%s0 + $0x388] sm:$0xf]
  %v254 = vld [vmem:[%s0 + $0x38c] sm:$0xf]
  %v255 = vld [vmem:[%s0 + $0x390] sm:$0xf]
  %v256 = vld [vmem:[%s0 + $0x394] sm:$0xf]
  %v257 = vld [vmem:[%s0 + $0x398] sm:$0xf]
  %v258 = vld [vmem:[%s0 + $0x39c] sm:$0xf]
  %v259 = vld [vmem:[%s0 + $0x3a0] sm:$0xf]
  %v260 = vld [vmem:[%s0 + $0x3a4] sm:$0xf]
  %v261 = vld [vmem:[%s0 + $0x3a8] sm:$0xf]
  %v262 = vld [vmem:[%s0 + $0x3ac] sm:$0xf]
  %v263 = vld [vmem:[%s0 + $0x3b0] sm:$0xf]
  %v264 = vld [vmem:[%s0 + $0x3b4] sm:$0xf]
  %v265 = vld [vmem:[%s0 + $0x3b8] sm:$0xf]
  %v266 = vld [vmem:[%s0 + $0x3bc] sm:$0xf]
  %v267 = vld [vmem:[%s0 + $0x3c0] sm:$0xf]
  %v268 = vld [vmem:[%s0 + $0x3c4] sm:$0xf]
  %v269 = vld [vmem:[%s0 + $0x3c8] sm:$0xf]
  %v270 = vld [vmem:[%s0 + $0x3cc] sm:$0xf]
  %v271 = vld [vmem:[%s0 + $0x3d0] sm:$0xf]
  %v272 = vld [vmem:[%s0 + $0x3d4] sm:$0xf]
  %v273 = vld [vmem:[%s0 + $0x3d8] sm:$0xf]
  %v274 = vld [vmem:[%s0 + $0x3dc] sm:$0xf]
  %v275 = vld [vmem:[%s0 + $0x3e0] sm:$0xf]
  %v276 = vld [vmem:[%s0 + $0x3e4] sm:$0xf]
  %v277 = vld [vmem:[%s0 + $0x3e8] sm:$0xf]
  %v278 = vld [vmem:[%s0 + $0x3ec] sm:$0xf]
  %v279 = vld [vmem:[%s0 + $0x3f0] sm:$0xf]
  %v280 = vld [vmem:[%s0 + $0x3f4] sm:$0xf]
  %v281 = vld [vmem:[%s0 + $0x3f8] sm:$0xf]
  %v282 = vld [vmem:[%s0 + $0x3fc] sm:$0xf]
  %v283 = vld [vmem:[%s1] sm:$0xf]
  %v284 = vld [vmem:[%s1 + $0x4] sm:$0xf]
  %v285 = vld [vmem:[%s1 + $0x8] sm:$0xf]
  %v286 = vld [vmem:[%s1 + $0xc] sm:$0x3]
  %v287 = vld [vmem:[%s2] sm:$0x1]
  %v289 = vlaneseq
  %v290 = vshrl.u32 %v289, 7
  %v291 = vsub.s32 0, %v290
  %v292 = vrot.slane %v287, %v291
  %v550 = vunpack.c.l.b16 %v27
  %v551 = vunpack.c.l.b16 %v28
  %v552 = vunpack.c.l.b16 %v29
  %v553 = vunpack.c.l.b16 %v30
  %v554 = vunpack.c.l.b16 %v31
  %v555 = vunpack.c.l.b16 %v32
  %v556 = vunpack.c.l.b16 %v33
  %v557 = vunpack.c.l.b16 %v34
  %v558 = vunpack.c.l.b16 %v35
  %v559 = vunpack.c.l.b16 %v36
  %v560 = vunpack.c.l.b16 %v37
  %v561 = vunpack.c.l.b16 %v38
  %v562 = vunpack.c.l.b16 %v39
  %v563 = vunpack.c.l.b16 %v40
  %v564 = vunpack.c.l.b16 %v41
  %v565 = vunpack.c.l.b16 %v42
  %v566 = vunpack.c.l.b16 %v43
  %v567 = vunpack.c.l.b16 %v44
  %v568 = vunpack.c.l.b16 %v45
  %v569 = vunpack.c.l.b16 %v46
  %v570 = vunpack.c.l.b16 %v47
  %v571 = vunpack.c.l.b16 %v48
  %v572 = vunpack.c.l.b16 %v49
  %v573 = vunpack.c.l.b16 %v50
  %v574 = vunpack.c.l.b16 %v51
  %v575 = vunpack.c.l.b16 %v52
  %v576 = vunpack.c.l.b16 %v53
  %v577 = vunpack.c.l.b16 %v54
  %v578 = vunpack.c.l.b16 %v55
  %v579 = vunpack.c.l.b16 %v56
  %v580 = vunpack.c.l.b16 %v57
  %v581 = vunpack.c.l.b16 %v58
  %v582 = vunpack.c.l.b16 %v59
  %v583 = vunpack.c.l.b16 %v60
  %v584 = vunpack.c.l.b16 %v61
  %v585 = vunpack.c.l.b16 %v62
  %v586 = vunpack.c.l.b16 %v63
  %v587 = vunpack.c.l.b16 %v64
  %v588 = vunpack.c.l.b16 %v65
  %v589 = vunpack.c.l.b16 %v66
  %v590 = vunpack.c.l.b16 %v67
  %v591 = vunpack.c.l.b16 %v68
  %v592 = vunpack.c.l.b16 %v69
  %v593 = vunpack.c.l.b16 %v70
  %v594 = vunpack.c.l.b16 %v71
  %v595 = vunpack.c.l.b16 %v72
  %v596 = vunpack.c.l.b16 %v73
  %v597 = vunpack.c.l.b16 %v74
  %v598 = vunpack.c.l.b16 %v75
  %v599 = vunpack.c.l.b16 %v76
  %v600 = vunpack.c.l.b16 %v77
  %v601 = vunpack.c.l.b16 %v78
  %v602 = vunpack.c.l.b16 %v79
  %v603 = vunpack.c.l.b16 %v80
  %v604 = vunpack.c.l.b16 %v81
  %v605 = vunpack.c.l.b16 %v82
  %v606 = vunpack.c.l.b16 %v83
  %v607 = vunpack.c.l.b16 %v84
  %v608 = vunpack.c.l.b16 %v85
  %v609 = vunpack.c.l.b16 %v86
  %v610 = vunpack.c.l.b16 %v87
  %v611 = vunpack.c.l.b16 %v88
  %v612 = vunpack.c.l.b16 %v89
  %v613 = vunpack.c.l.b16 %v90
  %v614 = vunpack.c.l.b16 %v91
  %v615 = vunpack.c.l.b16 %v92
  %v616 = vunpack.c.l.b16 %v93
  %v617 = vunpack.c.l.b16 %v94
  %v618 = vunpack.c.l.b16 %v95
  %v619 = vunpack.c.l.b16 %v96
  %v620 = vunpack.c.l.b16 %v97
  %v621 = vunpack.c.l.b16 %v98
  %v622 = vunpack.c.l.b16 %v99
  %v623 = vunpack.c.l.b16 %v100
  %v624 = vunpack.c.l.b16 %v101
  %v625 = vunpack.c.l.b16 %v102
  %v626 = vunpack.c.l.b16 %v103
  %v627 = vunpack.c.l.b16 %v104
  %v628 = vunpack.c.l.b16 %v105
  %v629 = vunpack.c.l.b16 %v106
  %v630 = vunpack.c.l.b16 %v107
  %v631 = vunpack.c.l.b16 %v108
  %v632 = vunpack.c.l.b16 %v109
  %v633 = vunpack.c.l.b16 %v110
  %v634 = vunpack.c.l.b16 %v111
  %v635 = vunpack.c.l.b16 %v112
  %v636 = vunpack.c.l.b16 %v113
  %v637 = vunpack.c.l.b16 %v114
  %v638 = vunpack.c.l.b16 %v115
  %v639 = vunpack.c.l.b16 %v116
  %v640 = vunpack.c.l.b16 %v117
  %v641 = vunpack.c.l.b16 %v118
  %v642 = vunpack.c.l.b16 %v119
  %v643 = vunpack.c.l.b16 %v120
  %v644 = vunpack.c.l.b16 %v121
  %v645 = vunpack.c.l.b16 %v122
  %v646 = vunpack.c.l.b16 %v123
  %v647 = vunpack.c.l.b16 %v124
  %v648 = vunpack.c.l.b16 %v125
  %v649 = vunpack.c.l.b16 %v126
  %v650 = vunpack.c.l.b16 %v127
  %v651 = vunpack.c.l.b16 %v128
  %v652 = vunpack.c.l.b16 %v129
  %v653 = vunpack.c.l.b16 %v130
  %v654 = vunpack.c.l.b16 %v131
  %v655 = vunpack.c.l.b16 %v132
  %v656 = vunpack.c.l.b16 %v133
  %v657 = vunpack.c.l.b16 %v134
  %v658 = vunpack.c.l.b16 %v135
  %v659 = vunpack.c.l.b16 %v136
  %v660 = vunpack.c.l.b16 %v137
  %v661 = vunpack.c.l.b16 %v138
  %v662 = vunpack.c.l.b16 %v139
  %v663 = vunpack.c.l.b16 %v140
  %v664 = vunpack.c.l.b16 %v141
  %v665 = vunpack.c.l.b16 %v142
  %v666 = vunpack.c.l.b16 %v143
  %v667 = vunpack.c.l.b16 %v144
  %v668 = vunpack.c.l.b16 %v145
  %v669 = vunpack.c.l.b16 %v146
  %v670 = vunpack.c.l.b16 %v147
  %v671 = vunpack.c.l.b16 %v148
  %v672 = vunpack.c.l.b16 %v149
  %v673 = vunpack.c.l.b16 %v150
  %v674 = vunpack.c.l.b16 %v151
  %v675 = vunpack.c.l.b16 %v152
  %v676 = vunpack.c.l.b16 %v153
  %v677 = vunpack.c.l.b16 %v154
  %v678 = vunpack.c.l.b16 %v155
  %v679 = vunpack.c.l.b16 %v156
  %v680 = vunpack.c.l.b16 %v157
  %v681 = vunpack.c.l.b16 %v158
  %v682 = vunpack.c.l.b16 %v159
  %v683 = vunpack.c.l.b16 %v160
  %v684 = vunpack.c.l.b16 %v161
  %v685 = vunpack.c.l.b16 %v162
  %v686 = vunpack.c.l.b16 %v163
  %v687 = vunpack.c.l.b16 %v164
  %v688 = vunpack.c.l.b16 %v165
  %v689 = vunpack.c.l.b16 %v166
  %v690 = vunpack.c.l.b16 %v167
  %v691 = vunpack.c.l.b16 %v168
  %v692 = vunpack.c.l.b16 %v169
  %v693 = vunpack.c.l.b16 %v170
  %v694 = vunpack.c.l.b16 %v171
  %v695 = vunpack.c.l.b16 %v172
  %v696 = vunpack.c.l.b16 %v173
  %v697 = vunpack.c.l.b16 %v174
  %v698 = vunpack.c.l.b16 %v175
  %v699 = vunpack.c.l.b16 %v176
  %v700 = vunpack.c.l.b16 %v177
  %v701 = vunpack.c.l.b16 %v178
  %v702 = vunpack.c.l.b16 %v179
  %v703 = vunpack.c.l.b16 %v180
  %v704 = vunpack.c.l.b16 %v181
  %v705 = vunpack.c.l.b16 %v182
  %v706 = vunpack.c.l.b16 %v183
  %v707 = vunpack.c.l.b16 %v184
  %v708 = vunpack.c.l.b16 %v185
  %v709 = vunpack.c.l.b16 %v186
  %v710 = vunpack.c.l.b16 %v187
  %v711 = vunpack.c.l.b16 %v188
  %v712 = vunpack.c.l.b16 %v189
  %v713 = vunpack.c.l.b16 %v190
  %v714 = vunpack.c.l.b16 %v191
  %v715 = vunpack.c.l.b16 %v192
  %v716 = vunpack.c.l.b16 %v193
  %v717 = vunpack.c.l.b16 %v194
  %v718 = vunpack.c.l.b16 %v195
  %v719 = vunpack.c.l.b16 %v196
  %v720 = vunpack.c.l.b16 %v197
  %v721 = vunpack.c.l.b16 %v198
  %v722 = vunpack.c.l.b16 %v199
  %v723 = vunpack.c.l.b16 %v200
  %v724 = vunpack.c.l.b16 %v201
  %v725 = vunpack.c.l.b16 %v202
  %v726 = vunpack.c.l.b16 %v203
  %v727 = vunpack.c.l.b16 %v204
  %v728 = vunpack.c.l.b16 %v205
  %v729 = vunpack.c.l.b16 %v206
  %v730 = vunpack.c.l.b16 %v207
  %v731 = vunpack.c.l.b16 %v208
  %v732 = vunpack.c.l.b16 %v209
  %v733 = vunpack.c.l.b16 %v210
  %v734 = vunpack.c.l.b16 %v211
  %v735 = vunpack.c.l.b16 %v212
  %v736 = vunpack.c.l.b16 %v213
  %v737 = vunpack.c.l.b16 %v214
  %v738 = vunpack.c.l.b16 %v215
  %v739 = vunpack.c.l.b16 %v216
  %v740 = vunpack.c.l.b16 %v217
  %v741 = vunpack.c.l.b16 %v218
  %v742 = vunpack.c.l.b16 %v219
  %v743 = vunpack.c.l.b16 %v220
  %v744 = vunpack.c.l.b16 %v221
  %v745 = vunpack.c.l.b16 %v222
  %v746 = vunpack.c.l.b16 %v223
  %v747 = vunpack.c.l.b16 %v224
  %v748 = vunpack.c.l.b16 %v225
  %v749 = vunpack.c.l.b16 %v226
  %v750 = vunpack.c.l.b16 %v227
  %v751 = vunpack.c.l.b16 %v228
  %v752 = vunpack.c.l.b16 %v229
  %v753 = vunpack.c.l.b16 %v230
  %v754 = vunpack.c.l.b16 %v231
  %v755 = vunpack.c.l.b16 %v232
  %v756 = vunpack.c.l.b16 %v233
  %v757 = vunpack.c.l.b16 %v234
  %v758 = vunpack.c.l.b16 %v235
  %v759 = vunpack.c.l.b16 %v236
  %v760 = vunpack.c.l.b16 %v237
  %v761 = vunpack.c.l.b16 %v238
  %v762 = vunpack.c.l.b16 %v239
  %v763 = vunpack.c.l.b16 %v240
  %v764 = vunpack.c.l.b16 %v241
  %v765 = vunpack.c.l.b16 %v242
  %v766 = vunpack.c.l.b16 %v243
  %v767 = vunpack.c.l.b16 %v244
  %v768 = vunpack.c.l.b16 %v245
  %v769 = vunpack.c.l.b16 %v246
  %v770 = vunpack.c.l.b16 %v247
  %v771 = vunpack.c.l.b16 %v248
  %v772 = vunpack.c.l.b16 %v249
  %v773 = vunpack.c.l.b16 %v250
  %v774 = vunpack.c.l.b16 %v251
  %v775 = vunpack.c.l.b16 %v252
  %v776 = vunpack.c.l.b16 %v253
  %v777 = vunpack.c.l.b16 %v254
  %v778 = vunpack.c.l.b16 %v255
  %v779 = vunpack.c.l.b16 %v256
  %v780 = vunpack.c.l.b16 %v257
  %v781 = vunpack.c.l.b16 %v258
  %v782 = vunpack.c.l.b16 %v259
  %v783 = vunpack.c.l.b16 %v260
  %v784 = vunpack.c.l.b16 %v261
  %v785 = vunpack.c.l.b16 %v262
  %v786 = vunpack.c.l.b16 %v263
  %v787 = vunpack.c.l.b16 %v264
  %v788 = vunpack.c.l.b16 %v265
  %v789 = vunpack.c.l.b16 %v266
  %v790 = vunpack.c.l.b16 %v267
  %v791 = vunpack.c.l.b16 %v268
  %v792 = vunpack.c.l.b16 %v269
  %v793 = vunpack.c.l.b16 %v270
  %v794 = vunpack.c.l.b16 %v271
  %v795 = vunpack.c.l.b16 %v272
  %v796 = vunpack.c.l.b16 %v273
  %v797 = vunpack.c.l.b16 %v274
  %v798 = vunpack.c.l.b16 %v275
  %v799 = vunpack.c.l.b16 %v276
  %v800 = vunpack.c.l.b16 %v277
  %v801 = vunpack.c.l.b16 %v278
  %v802 = vunpack.c.l.b16 %v279
  %v803 = vunpack.c.l.b16 %v280
  %v804 = vunpack.c.l.b16 %v281
  %v805 = vunpack.c.l.b16 %v282
  %v806 = vpack.c.b16 %v551, %v550
  %v807 = vpack.c.b16 %v553, %v552
  %v808 = vpack.c.b16 %v555, %v554
  %v809 = vpack.c.b16 %v557, %v556
  %v810 = vpack.c.b16 %v559, %v558
  %v811 = vpack.c.b16 %v561, %v560
  %v812 = vpack.c.b16 %v563, %v562
  %v813 = vpack.c.b16 %v565, %v564
  %v814 = vpack.c.b16 %v567, %v566
  %v815 = vpack.c.b16 %v569, %v568
  %v816 = vpack.c.b16 %v571, %v570
  %v817 = vpack.c.b16 %v573, %v572
  %v818 = vpack.c.b16 %v575, %v574
  %v819 = vpack.c.b16 %v577, %v576
  %v820 = vpack.c.b16 %v579, %v578
  %v821 = vpack.c.b16 %v581, %v580
  %v822 = vpack.c.b16 %v583, %v582
  %v823 = vpack.c.b16 %v585, %v584
  %v824 = vpack.c.b16 %v587, %v586
  %v825 = vpack.c.b16 %v589, %v588
  %v826 = vpack.c.b16 %v591, %v590
  %v827 = vpack.c.b16 %v593, %v592
  %v828 = vpack.c.b16 %v595, %v594
  %v829 = vpack.c.b16 %v597, %v596
  %v830 = vpack.c.b16 %v599, %v598
  %v831 = vpack.c.b16 %v601, %v600
  %v832 = vpack.c.b16 %v603, %v602
  %v833 = vpack.c.b16 %v605, %v604
  %v834 = vpack.c.b16 %v607, %v606
  %v835 = vpack.c.b16 %v609, %v608
  %v836 = vpack.c.b16 %v611, %v610
  %v837 = vpack.c.b16 %v613, %v612
  %v838 = vpack.c.b16 %v615, %v614
  %v839 = vpack.c.b16 %v617, %v616
  %v840 = vpack.c.b16 %v619, %v618
  %v841 = vpack.c.b16 %v621, %v620
  %v842 = vpack.c.b16 %v623, %v622
  %v843 = vpack.c.b16 %v625, %v624
  %v844 = vpack.c.b16 %v627, %v626
  %v845 = vpack.c.b16 %v629, %v628
  %v846 = vpack.c.b16 %v631, %v630
  %v847 = vpack.c.b16 %v633, %v632
  %v848 = vpack.c.b16 %v635, %v634
  %v849 = vpack.c.b16 %v637, %v636
  %v850 = vpack.c.b16 %v639, %v638
  %v851 = vpack.c.b16 %v641, %v640
  %v852 = vpack.c.b16 %v643, %v642
  %v853 = vpack.c.b16 %v645, %v644
  %v854 = vpack.c.b16 %v647, %v646
  %v855 = vpack.c.b16 %v649, %v648
  %v856 = vpack.c.b16 %v651, %v650
  %v857 = vpack.c.b16 %v653, %v652
  %v858 = vpack.c.b16 %v655, %v654
  %v859 = vpack.c.b16 %v657, %v656
  %v860 = vpack.c.b16 %v659, %v658
  %v861 = vpack.c.b16 %v661, %v660
  %v862 = vpack.c.b16 %v663, %v662
  %v863 = vpack.c.b16 %v665, %v664
  %v864 = vpack.c.b16 %v667, %v666
  %v865 = vpack.c.b16 %v669, %v668
  %v866 = vpack.c.b16 %v671, %v670
  %v867 = vpack.c.b16 %v673, %v672
  %v868 = vpack.c.b16 %v675, %v674
  %v869 = vpack.c.b16 %v677, %v676
  %v870 = vpack.c.b16 %v679, %v678
  %v871 = vpack.c.b16 %v681, %v680
  %v872 = vpack.c.b16 %v683, %v682
  %v873 = vpack.c.b16 %v685, %v684
  %v874 = vpack.c.b16 %v687, %v686
  %v875 = vpack.c.b16 %v689, %v688
  %v876 = vpack.c.b16 %v691, %v690
  %v877 = vpack.c.b16 %v693, %v692
  %v878 = vpack.c.b16 %v695, %v694
  %v879 = vpack.c.b16 %v697, %v696
  %v880 = vpack.c.b16 %v699, %v698
  %v881 = vpack.c.b16 %v701, %v700
  %v882 = vpack.c.b16 %v703, %v702
  %v883 = vpack.c.b16 %v705, %v704
  %v884 = vpack.c.b16 %v707, %v706
  %v885 = vpack.c.b16 %v709, %v708
  %v886 = vpack.c.b16 %v711, %v710
  %v887 = vpack.c.b16 %v713, %v712
  %v888 = vpack.c.b16 %v715, %v714
  %v889 = vpack.c.b16 %v717, %v716
  %v890 = vpack.c.b16 %v719, %v718
  %v891 = vpack.c.b16 %v721, %v720
  %v892 = vpack.c.b16 %v723, %v722
  %v893 = vpack.c.b16 %v725, %v724
  %v894 = vpack.c.b16 %v727, %v726
  %v895 = vpack.c.b16 %v729, %v728
  %v896 = vpack.c.b16 %v731, %v730
  %v897 = vpack.c.b16 %v733, %v732
  %v898 = vpack.c.b16 %v735, %v734
  %v899 = vpack.c.b16 %v737, %v736
  %v900 = vpack.c.b16 %v739, %v738
  %v901 = vpack.c.b16 %v741, %v740
  %v902 = vpack.c.b16 %v743, %v742
  %v903 = vpack.c.b16 %v745, %v744
  %v904 = vpack.c.b16 %v747, %v746
  %v905 = vpack.c.b16 %v749, %v748
  %v906 = vpack.c.b16 %v751, %v750
  %v907 = vpack.c.b16 %v753, %v752
  %v908 = vpack.c.b16 %v755, %v754
  %v909 = vpack.c.b16 %v757, %v756
  %v910 = vpack.c.b16 %v759, %v758
  %v911 = vpack.c.b16 %v761, %v760
  %v912 = vpack.c.b16 %v763, %v762
  %v913 = vpack.c.b16 %v765, %v764
  %v914 = vpack.c.b16 %v767, %v766
  %v915 = vpack.c.b16 %v769, %v768
  %v916 = vpack.c.b16 %v771, %v770
  %v917 = vpack.c.b16 %v773, %v772
  %v918 = vpack.c.b16 %v775, %v774
  %v919 = vpack.c.b16 %v777, %v776
  %v920 = vpack.c.b16 %v779, %v778
  %v921 = vpack.c.b16 %v781, %v780
  %v922 = vpack.c.b16 %v783, %v782
  %v923 = vpack.c.b16 %v785, %v784
  %v924 = vpack.c.b16 %v787, %v786
  %v925 = vpack.c.b16 %v789, %v788
  %v926 = vpack.c.b16 %v791, %v790
  %v927 = vpack.c.b16 %v793, %v792
  %v928 = vpack.c.b16 %v795, %v794
  %v929 = vpack.c.b16 %v797, %v796
  %v930 = vpack.c.b16 %v799, %v798
  %v931 = vpack.c.b16 %v801, %v800
  %v932 = vpack.c.b16 %v803, %v802
  %v933 = vpack.c.b16 %v805, %v804
  %v938 = vunpack.c.l.b16 %v283
  %v939 = vunpack.c.l.b16 %v284
  %v940 = vunpack.c.l.b16 %v285
  %v941 = vunpack.c.l.b16 %v286
  %v942 = vpack.c.b16 %v939, %v938
  %v943 = vpack.c.b16 %v941, %v940
  %vm945 = vcmask 220160
  %v947 = vsel %vm945, %v806, 0
  %v950 = vsel %vm945, %v807, 0
  %v953 = vsel %vm945, %v808, 0
  %v956 = vsel %vm945, %v809, 0
  %v959 = vsel %vm945, %v810, 0
  %v962 = vsel %vm945, %v811, 0
  %v965 = vsel %vm945, %v812, 0
  %v968 = vsel %vm945, %v813, 0
  %v971 = vsel %vm945, %v814, 0
  %v974 = vsel %vm945, %v815, 0
  %v977 = vsel %vm945, %v816, 0
  %v980 = vsel %vm945, %v817, 0
  %v983 = vsel %vm945, %v818, 0
  %v986 = vsel %vm945, %v819, 0
  %v989 = vsel %vm945, %v820, 0
  %v992 = vsel %vm945, %v821, 0
  %v995 = vsel %vm945, %v822, 0
  %v998 = vsel %vm945, %v823, 0
  %v1001 = vsel %vm945, %v824, 0
  %v1004 = vsel %vm945, %v825, 0
  %v1007 = vsel %vm945, %v826, 0
  %v1010 = vsel %vm945, %v827, 0
  %v1013 = vsel %vm945, %v828, 0
  %v1016 = vsel %vm945, %v829, 0
  %v1019 = vsel %vm945, %v830, 0
  %v1022 = vsel %vm945, %v831, 0
  %v1025 = vsel %vm945, %v832, 0
  %v1028 = vsel %vm945, %v833, 0
  %v1031 = vsel %vm945, %v834, 0
  %v1034 = vsel %vm945, %v835, 0
  %v1037 = vsel %vm945, %v836, 0
  %v1040 = vsel %vm945, %v837, 0
  %v1043 = vsel %vm945, %v838, 0
  %v1046 = vsel %vm945, %v839, 0
  %v1049 = vsel %vm945, %v840, 0
  %v1052 = vsel %vm945, %v841, 0
  %v1055 = vsel %vm945, %v842, 0
  %v1058 = vsel %vm945, %v843, 0
  %v1061 = vsel %vm945, %v844, 0
  %v1064 = vsel %vm945, %v845, 0
  %v1067 = vsel %vm945, %v846, 0
  %v1070 = vsel %vm945, %v847, 0
  %v1073 = vsel %vm945, %v848, 0
  %v1076 = vsel %vm945, %v849, 0
  %v1079 = vsel %vm945, %v850, 0
  %v1082 = vsel %vm945, %v851, 0
  %v1085 = vsel %vm945, %v852, 0
  %v1088 = vsel %vm945, %v853, 0
  %v1091 = vsel %vm945, %v854, 0
  %v1094 = vsel %vm945, %v855, 0
  %v1097 = vsel %vm945, %v856, 0
  %v1100 = vsel %vm945, %v857, 0
  %v1103 = vsel %vm945, %v858, 0
  %v1106 = vsel %vm945, %v859, 0
  %v1109 = vsel %vm945, %v860, 0
  %v1112 = vsel %vm945, %v861, 0
  %v1115 = vsel %vm945, %v862, 0
  %v1118 = vsel %vm945, %v863, 0
  %v1121 = vsel %vm945, %v864, 0
  %v1124 = vsel %vm945, %v865, 0
  %v1127 = vsel %vm945, %v866, 0
  %v1130 = vsel %vm945, %v867, 0
  %v1133 = vsel %vm945, %v868, 0
  %v1136 = vsel %vm945, %v869, 0
  %v1139 = vsel %vm945, %v870, 0
  %v1142 = vsel %vm945, %v871, 0
  %v1145 = vsel %vm945, %v872, 0
  %v1148 = vsel %vm945, %v873, 0
  %v1151 = vsel %vm945, %v874, 0
  %v1154 = vsel %vm945, %v875, 0
  %v1157 = vsel %vm945, %v876, 0
  %v1160 = vsel %vm945, %v877, 0
  %v1163 = vsel %vm945, %v878, 0
  %v1166 = vsel %vm945, %v879, 0
  %v1169 = vsel %vm945, %v880, 0
  %v1172 = vsel %vm945, %v881, 0
  %v1175 = vsel %vm945, %v882, 0
  %v1178 = vsel %vm945, %v883, 0
  %v1181 = vsel %vm945, %v884, 0
  %v1184 = vsel %vm945, %v885, 0
  %v1187 = vsel %vm945, %v886, 0
  %v1190 = vsel %vm945, %v887, 0
  %v1193 = vsel %vm945, %v888, 0
  %v1196 = vsel %vm945, %v889, 0
  %v1199 = vsel %vm945, %v890, 0
  %v1202 = vsel %vm945, %v891, 0
  %v1205 = vsel %vm945, %v892, 0
  %v1208 = vsel %vm945, %v893, 0
  %v1211 = vsel %vm945, %v894, 0
  %v1214 = vsel %vm945, %v895, 0
  %v1217 = vsel %vm945, %v896, 0
  %v1220 = vsel %vm945, %v897, 0
  %v1223 = vsel %vm945, %v898, 0
  %v1226 = vsel %vm945, %v899, 0
  %v1229 = vsel %vm945, %v900, 0
  %v1232 = vsel %vm945, %v901, 0
  %v1235 = vsel %vm945, %v902, 0
  %v1238 = vsel %vm945, %v903, 0
  %v1241 = vsel %vm945, %v904, 0
  %v1244 = vsel %vm945, %v905, 0
  %v1247 = vsel %vm945, %v906, 0
  %v1250 = vsel %vm945, %v907, 0
  %v1253 = vsel %vm945, %v908, 0
  %v1256 = vsel %vm945, %v909, 0
  %v1259 = vsel %vm945, %v910, 0
  %v1262 = vsel %vm945, %v911, 0
  %v1265 = vsel %vm945, %v912, 0
  %v1268 = vsel %vm945, %v913, 0
  %v1271 = vsel %vm945, %v914, 0
  %v1274 = vsel %vm945, %v915, 0
  %v1277 = vsel %vm945, %v916, 0
  %v1280 = vsel %vm945, %v917, 0
  %v1283 = vsel %vm945, %v918, 0
  %v1286 = vsel %vm945, %v919, 0
  %v1289 = vsel %vm945, %v920, 0
  %v1292 = vsel %vm945, %v921, 0
  %v1295 = vsel %vm945, %v922, 0
  %v1298 = vsel %vm945, %v923, 0
  %v1301 = vsel %vm945, %v924, 0
  %v1304 = vsel %vm945, %v925, 0
  %v1307 = vsel %vm945, %v926, 0
  %v1310 = vsel %vm945, %v927, 0
  %v1313 = vsel %vm945, %v928, 0
  %v1316 = vsel %vm945, %v929, 0
  %v1319 = vsel %vm945, %v930, 0
  %v1322 = vsel %vm945, %v931, 0
  %v1325 = vsel %vm945, %v932, 0
  %v1328 = vsel %vm945, %v933, 0
  %vm1330 = vcmask 1044480
  %vm1331 = vcmask 1045504
  %v1332 = vsel %vm1330, 4294967295, 65535
  %v1333 = vsel %vm1331, %v1332, 0
  %v1335 = vand.u32 %v943, %v1333
  %1337 = vmatprep.subr.bf16.mxu0 0
  %1338 = vmatpush1.bf16.msra.mxu0 %v942
  %1339 = vmatprep.subr.bf16.mxu0 0
  %1340 = vmatpush1.bf16.msra.mxu0 %v1335
  %1341 = vmatprep.subr.bf16.mxu0 0
  %1342 = vmatpush1.bf16.msra.mxu0 0
  %1343 = vmatprep.subr.bf16.mxu0 0
  %1344 = vmatpush1.bf16.msra.mxu0 0
  %1345 = vmatprep.subr.bf16.mxu0 0
  %1346 = vmatpush1.bf16.msra.mxu0 0
  %1347 = vmatprep.subr.bf16.mxu0 0
  %1348 = vmatpush1.bf16.msra.mxu0 0
  %1349 = vmatprep.subr.bf16.mxu0 0
  %1350 = vmatpush1.bf16.msra.mxu0 0
  %1351 = vmatprep.subr.bf16.mxu0 0
  %1352 = vmatpush1.bf16.msra.mxu0 0
  %1353 = vmatprep.subr.bf16.mxu0 0
  %1354 = vmatpush1.bf16.msra.mxu0 0
  %1355 = vmatprep.subr.bf16.mxu0 0
  %1356 = vmatpush1.bf16.msra.mxu0 0
  %1357 = vmatprep.subr.bf16.mxu0 0
  %1358 = vmatpush1.bf16.msra.mxu0 0
  %1359 = vmatprep.subr.bf16.mxu0 0
  %1360 = vmatpush1.bf16.msra.mxu0 0
  %1361 = vmatprep.subr.bf16.mxu0 0
  %1362 = vmatpush1.bf16.msra.mxu0 0
  %1363 = vmatprep.subr.bf16.mxu0 0
  %1364 = vmatpush1.bf16.msra.mxu0 0
  %1365 = vmatprep.subr.bf16.mxu0 0
  %1366 = vmatpush1.bf16.msra.mxu0 0
  %1367 = vmatprep.subr.bf16.mxu0 0
  %1368 = vmatpush1.bf16.msra.mxu0 0
  %1369 = vmatprep.mubr.bf16.mxu0 0
  %1370 = vmatmul.mubr.bf16.gmra.mrb[0].mxu0 %v947
  %v1371 = vpop.f32.mrb[0].mxu0
  %v1372 = vadd.f32 %v292, %v1371
  %v1373 = vpop.f32.mrb[0].mxu0
  %v1374 = vpop.f32.mrb[0].mxu0
  %v1375 = vadd.f32 %v292, %v1374
  %v1376 = vpop.f32.mrb[0].mxu0
  %1377 = vmatprep.mubr.bf16.mxu0 0
  %1378 = vmatmul.mubr.bf16.gmra.mrb[0].mxu0 %v950
  %v1379 = vpop.f32.mrb[0].mxu0
  %v1380 = vadd.f32 %v292, %v1379
  %v1381 = vpop.f32.mrb[0].mxu0
  %v1382 = vpop.f32.mrb[0].mxu0
  %v1383 = vadd.f32 %v292, %v1382
  %v1384 = vpop.f32.mrb[0].mxu0
  %1385 = vmatprep.mubr.bf16.mxu0 0
  %1386 = vmatmul.mubr.bf16.gmra.mrb[0].mxu0 %v953
  %v1387 = vpop.f32.mrb[0].mxu0
  %v1388 = vadd.f32 %v292, %v1387
  %v1389 = vpop.f32.mrb[0].mxu0
  %v1390 = vpop.f32.mrb[0].mxu0
  %v1391 = vadd.f32 %v292, %v1390
  %v1392 = vpop.f32.mrb[0].mxu0
  %1393 = vmatprep.mubr.bf16.mxu0 0
  %1394 = vmatmul.mubr.bf16.gmra.mrb[0].mxu0 %v956
  %v1395 = vpop.f32.mrb[0].mxu0
  %v1396 = vadd.f32 %v292, %v1395
  %v1397 = vpop.f32.mrb[0].mxu0
  %v1398 = vpop.f32.mrb[0].mxu0
  %v1399 = vadd.f32 %v292, %v1398
  %v1400 = vpop.f32.mrb[0].mxu0
  %1401 = vmatprep.mubr.bf16.mxu0 0
  %1402 = vmatmul.mubr.bf16.gmra.mrb[0].mxu0 %v959
  %v1403 = vpop.f32.mrb[0].mxu0
  %v1404 = vadd.f32 %v292, %v1403
  %v1405 = vpop.f32.mrb[0].mxu0
  %v1406 = vpop.f32.mrb[0].mxu0
  %v1407 = vadd.f32 %v292, %v1406
  %v1408 = vpop.f32.mrb[0].mxu0
  %1409 = vmatprep.mubr.bf16.mxu0 0
  %1410 = vmatmul.mubr.bf16.gmra.mrb[0].mxu0 %v962
  %v1411 = vpop.f32.mrb[0].mxu0
  %v1412 = vadd.f32 %v292, %v1411
  %v1413 = vpop.f32.mrb[0].mxu0
  %v1414 = vpop.f32.mrb[0].mxu0
  %v1415 = vadd.f32 %v292, %v1414
  %v1416 = vpop.f32.mrb[0].mxu0
  %1417 = vmatprep.mubr.bf16.mxu0 0
  %1418 = vmatmul.mubr.bf16.gmra.mrb[0].mxu0 %v965
  %v1419 = vpop.f32.mrb[0].mxu0
  %v1420 = vadd.f32 %v292, %v1419
  %v1421 = vpop.f32.mrb[0].mxu0
  %v1422 = vpop.f32.mrb[0].mxu0
  %v1423 = vadd.f32 %v292, %v1422
  %v1424 = vpop.f32.mrb[0].mxu0
  %1425 = vmatprep.mubr.bf16.mxu0 0
  %1426 = vmatmul.mubr.bf16.gmra.mrb[0].mxu0 %v968
  %v1427 = vpop.f32.mrb[0].mxu0
  %v1428 = vadd.f32 %v292, %v1427
  %v1429 = vpop.f32.mrb[0].mxu0
  %v1430 = vpop.f32.mrb[0].mxu0
  %v1431 = vadd.f32 %v292, %v1430
  %v1432 = vpop.f32.mrb[0].mxu0
  %1433 = vmatprep.mubr.bf16.mxu0 0
  %1434 = vmatmul.mubr.bf16.gmra.mrb[0].mxu0 %v971
  %v1435 = vpop.f32.mrb[0].mxu0
  %v1436 = vadd.f32 %v292, %v1435
  %v1437 = vpop.f32.mrb[0].mxu0
  %v1438 = vpop.f32.mrb[0].mxu0
  %v1439 = vadd.f32 %v292, %v1438
  %v1440 = vpop.f32.mrb[0].mxu0
  %1441 = vmatprep.mubr.bf16.mxu0 0
  %1442 = vmatmul.mubr.bf16.gmra.mrb[0].mxu0 %v974
  %v1443 = vpop.f32.mrb[0].mxu0
  %v1444 = vadd.f32 %v292, %v1443
  %v1445 = vpop.f32.mrb[0].mxu0
  %v1446 = vpop.f32.mrb[0].mxu0
  %v1447 = vadd.f32 %v292, %v1446
  %v1448 = vpop.f32.mrb[0].mxu0
  %1449 = vmatprep.mubr.bf16.mxu0 0
  %1450 = vmatmul.mubr.bf16.gmra.mrb[0].mxu0 %v977
  %v1451 = vpop.f32.mrb[0].mxu0
  %v1452 = vadd.f32 %v292, %v1451
  %v1453 = vpop.f32.mrb[0].mxu0
  %v1454 = vpop.f32.mrb[0].mxu0
  %v1455 = vadd.f32 %v292, %v1454
  %v1456 = vpop.f32.mrb[0].mxu0
  %1457 = vmatprep.mubr.bf16.mxu0 0
  %1458 = vmatmul.mubr.bf16.gmra.mrb[0].mxu0 %v980
  %v1459 = vpop.f32.mrb[0].mxu0
  %v1460 = vadd.f32 %v292, %v1459
  %v1461 = vpop.f32.mrb[0].mxu0
  %v1462 = vpop.f32.mrb[0].mxu0
  %v1463 = vadd.f32 %v292, %v1462
  %v1464 = vpop.f32.mrb[0].mxu0
  %1465 = vmatprep.mubr.bf16.mxu0 0
  %1466 = vmatmul.mubr.bf16.gmra.mrb[0].mxu0 %v983
  %v1467 = vpop.f32.mrb[0].mxu0
  %v1468 = vadd.f32 %v292, %v1467
  %v1469 = vpop.f32.mrb[0].mxu0
  %v1470 = vpop.f32.mrb[0].mxu0
  %v1471 = vadd.f32 %v292, %v1470
  %v1472 = vpop.f32.mrb[0].mxu0
  %1473 = vmatprep.mubr.bf16.mxu0 0
  %1474 = vmatmul.mubr.bf16.gmra.mrb[0].mxu0 %v986
  %v1475 = vpop.f32.mrb[0].mxu0
  %v1476 = vadd.f32 %v292, %v1475
  %v1477 = vpop.f32.mrb[0].mxu0
  %v1478 = vpop.f32.mrb[0].mxu0
  %v1479 = vadd.f32 %v292, %v1478
  %v1480 = vpop.f32.mrb[0].mxu0
  %1481 = vmatprep.mubr.bf16.mxu0 0
  %1482 = vmatmul.mubr.bf16.gmra.mrb[0].mxu0 %v989
  %v1483 = vpop.f32.mrb[0].mxu0
  %v1484 = vadd.f32 %v292, %v1483
  %v1485 = vpop.f32.mrb[0].mxu0
  %v1486 = vpop.f32.mrb[0].mxu0
  %v1487 = vadd.f32 %v292, %v1486
  %v1488 = vpop.f32.mrb[0].mxu0
  %1489 = vmatprep.mubr.bf16.mxu0 0
  %1490 = vmatmul.mubr.bf16.gmra.mrb[0].mxu0 %v992
  %v1491 = vpop.f32.mrb[0].mxu0
  %v1492 = vadd.f32 %v292, %v1491
  %v1493 = vpop.f32.mrb[0].mxu0
  %v1494 = vpop.f32.mrb[0].mxu0
  %v1495 = vadd.f32 %v292, %v1494
  %v1496 = vpop.f32.mrb[0].mxu0
  %1497 = vmatprep.mubr.bf16.mxu0 0
  %1498 = vmatmul.mubr.bf16.gmra.mrb[0].mxu0 %v995
  %v1499 = vpop.f32.mrb[0].mxu0
  %v1500 = vadd.f32 %v292, %v1499
  %v1501 = vpop.f32.mrb[0].mxu0
  %v1502 = vpop.f32.mrb[0].mxu0
  %v1503 = vadd.f32 %v292, %v1502
  %v1504 = vpop.f32.mrb[0].mxu0
  %1505 = vmatprep.mubr.bf16.mxu0 0
  %1506 = vmatmul.mubr.bf16.gmra.mrb[0].mxu0 %v998
  %v1507 = vpop.f32.mrb[0].mxu0
  %v1508 = vadd.f32 %v292, %v1507
  %v1509 = vpop.f32.mrb[0].mxu0
  %v1510 = vpop.f32.mrb[0].mxu0
  %v1511 = vadd.f32 %v292, %v1510
  %v1512 = vpop.f32.mrb[0].mxu0
  %1513 = vmatprep.mubr.bf16.mxu0 0
  %1514 = vmatmul.mubr.bf16.gmra.mrb[0].mxu0 %v1001
  %v1515 = vpop.f32.mrb[0].mxu0
  %v1516 = vadd.f32 %v292, %v1515
  %v1517 = vpop.f32.mrb[0].mxu0
  %v1518 = vpop.f32.mrb[0].mxu0
  %v1519 = vadd.f32 %v292, %v1518
  %v1520 = vpop.f32.mrb[0].mxu0
  %1521 = vmatprep.mubr.bf16.mxu0 0
  %1522 = vmatmul.mubr.bf16.gmra.mrb[0].mxu0 %v1004
  %v1523 = vpop.f32.mrb[0].mxu0
  %v1524 = vadd.f32 %v292, %v1523
  %v1525 = vpop.f32.mrb[0].mxu0
  %v1526 = vpop.f32.mrb[0].mxu0
  %v1527 = vadd.f32 %v292, %v1526
  %v1528 = vpop.f32.mrb[0].mxu0
  %1529 = vmatprep.mubr.bf16.mxu0 0
  %1530 = vmatmul.mubr.bf16.gmra.mrb[0].mxu0 %v1007
  %v1531 = vpop.f32.mrb[0].mxu0
  %v1532 = vadd.f32 %v292, %v1531
  %v1533 = vpop.f32.mrb[0].mxu0
  %v1534 = vpop.f32.mrb[0].mxu0
  %v1535 = vadd.f32 %v292, %v1534
  %v1536 = vpop.f32.mrb[0].mxu0
  %1537 = vmatprep.mubr.bf16.mxu0 0
  %1538 = vmatmul.mubr.bf16.gmra.mrb[0].mxu0 %v1010
  %v1539 = vpop.f32.mrb[0].mxu0
  %v1540 = vadd.f32 %v292, %v1539
  %v1541 = vpop.f32.mrb[0].mxu0
  %v1542 = vpop.f32.mrb[0].mxu0
  %v1543 = vadd.f32 %v292, %v1542
  %v1544 = vpop.f32.mrb[0].mxu0
  %1545 = vmatprep.mubr.bf16.mxu0 0
  %1546 = vmatmul.mubr.bf16.gmra.mrb[0].mxu0 %v1013
  %v1547 = vpop.f32.mrb[0].mxu0
  %v1548 = vadd.f32 %v292, %v1547
  %v1549 = vpop.f32.mrb[0].mxu0
  %v1550 = vpop.f32.mrb[0].mxu0
  %v1551 = vadd.f32 %v292, %v1550
  %v1552 = vpop.f32.mrb[0].mxu0
  %1553 = vmatprep.mubr.bf16.mxu0 0
  %1554 = vmatmul.mubr.bf16.gmra.mrb[0].mxu0 %v1016
  %v1555 = vpop.f32.mrb[0].mxu0
  %v1556 = vadd.f32 %v292, %v1555
  %v1557 = vpop.f32.mrb[0].mxu0
  %v1558 = vpop.f32.mrb[0].mxu0
  %v1559 = vadd.f32 %v292, %v1558
  %v1560 = vpop.f32.mrb[0].mxu0
  %1561 = vmatprep.mubr.bf16.mxu0 0
  %1562 = vmatmul.mubr.bf16.gmra.mrb[0].mxu0 %v1019
  %v1563 = vpop.f32.mrb[0].mxu0
  %v1564 = vadd.f32 %v292, %v1563
  %v1565 = vpop.f32.mrb[0].mxu0
  %v1566 = vpop.f32.mrb[0].mxu0
  %v1567 = vadd.f32 %v292, %v1566
  %v1568 = vpop.f32.mrb[0].mxu0
  %1569 = vmatprep.mubr.bf16.mxu0 0
  %1570 = vmatmul.mubr.bf16.gmra.mrb[0].mxu0 %v1022
  %v1571 = vpop.f32.mrb[0].mxu0
  %v1572 = vadd.f32 %v292, %v1571
  %v1573 = vpop.f32.mrb[0].mxu0
  %v1574 = vpop.f32.mrb[0].mxu0
  %v1575 = vadd.f32 %v292, %v1574
  %v1576 = vpop.f32.mrb[0].mxu0
  %1577 = vmatprep.mubr.bf16.mxu0 0
  %1578 = vmatmul.mubr.bf16.gmra.mrb[0].mxu0 %v1025
  %v1579 = vpop.f32.mrb[0].mxu0
  %v1580 = vadd.f32 %v292, %v1579
  %v1581 = vpop.f32.mrb[0].mxu0
  %v1582 = vpop.f32.mrb[0].mxu0
  %v1583 = vadd.f32 %v292, %v1582
  %v1584 = vpop.f32.mrb[0].mxu0
  %1585 = vmatprep.mubr.bf16.mxu0 0
  %1586 = vmatmul.mubr.bf16.gmra.mrb[0].mxu0 %v1028
  %v1587 = vpop.f32.mrb[0].mxu0
  %v1588 = vadd.f32 %v292, %v1587
  %v1589 = vpop.f32.mrb[0].mxu0
  %v1590 = vpop.f32.mrb[0].mxu0
  %v1591 = vadd.f32 %v292, %v1590
  %v1592 = vpop.f32.mrb[0].mxu0
  %1593 = vmatprep.mubr.bf16.mxu0 0
  %1594 = vmatmul.mubr.bf16.gmra.mrb[0].mxu0 %v1031
  %v1595 = vpop.f32.mrb[0].mxu0
  %v1596 = vadd.f32 %v292, %v1595
  %v1597 = vpop.f32.mrb[0].mxu0
  %v1598 = vpop.f32.mrb[0].mxu0
  %v1599 = vadd.f32 %v292, %v1598
  %v1600 = vpop.f32.mrb[0].mxu0
  %1601 = vmatprep.mubr.bf16.mxu0 0
  %1602 = vmatmul.mubr.bf16.gmra.mrb[0].mxu0 %v1034
  %v1603 = vpop.f32.mrb[0].mxu0
  %v1604 = vadd.f32 %v292, %v1603
  %v1605 = vpop.f32.mrb[0].mxu0
  %v1606 = vpop.f32.mrb[0].mxu0
  %v1607 = vadd.f32 %v292, %v1606
  %v1608 = vpop.f32.mrb[0].mxu0
  %1609 = vmatprep.mubr.bf16.mxu0 0
  %1610 = vmatmul.mubr.bf16.gmra.mrb[0].mxu0 %v1037
  %v1611 = vpop.f32.mrb[0].mxu0
  %v1612 = vadd.f32 %v292, %v1611
  %v1613 = vpop.f32.mrb[0].mxu0
  %v1614 = vpop.f32.mrb[0].mxu0
  %v1615 = vadd.f32 %v292, %v1614
  %v1616 = vpop.f32.mrb[0].mxu0
  %1617 = vmatprep.mubr.bf16.mxu0 0
  %1618 = vmatmul.mubr.bf16.gmra.mrb[0].mxu0 %v1040
  %v1619 = vpop.f32.mrb[0].mxu0
  %v1620 = vadd.f32 %v292, %v1619
  %v1621 = vpop.f32.mrb[0].mxu0
  %v1622 = vpop.f32.mrb[0].mxu0
  %v1623 = vadd.f32 %v292, %v1622
  %v1624 = vpop.f32.mrb[0].mxu0
  %1625 = vmatprep.mubr.bf16.mxu0 0
  %1626 = vmatmul.mubr.bf16.gmra.mrb[0].mxu0 %v1043
  %v1627 = vpop.f32.mrb[0].mxu0
  %v1628 = vadd.f32 %v292, %v1627
  %v1629 = vpop.f32.mrb[0].mxu0
  %v1630 = vpop.f32.mrb[0].mxu0
  %v1631 = vadd.f32 %v292, %v1630
  %v1632 = vpop.f32.mrb[0].mxu0
  %1633 = vmatprep.mubr.bf16.mxu0 0
  %1634 = vmatmul.mubr.bf16.gmra.mrb[0].mxu0 %v1046
  %v1635 = vpop.f32.mrb[0].mxu0
  %v1636 = vadd.f32 %v292, %v1635
  %v1637 = vpop.f32.mrb[0].mxu0
  %v1638 = vpop.f32.mrb[0].mxu0
  %v1639 = vadd.f32 %v292, %v1638
  %v1640 = vpop.f32.mrb[0].mxu0
  %1641 = vmatprep.mubr.bf16.mxu0 0
  %1642 = vmatmul.mubr.bf16.gmra.mrb[0].mxu0 %v1049
  %v1643 = vpop.f32.mrb[0].mxu0
  %v1644 = vadd.f32 %v292, %v1643
  %v1645 = vpop.f32.mrb[0].mxu0
  %v1646 = vpop.f32.mrb[0].mxu0
  %v1647 = vadd.f32 %v292, %v1646
  %v1648 = vpop.f32.mrb[0].mxu0
  %1649 = vmatprep.mubr.bf16.mxu0 0
  %1650 = vmatmul.mubr.bf16.gmra.mrb[0].mxu0 %v1052
  %v1651 = vpop.f32.mrb[0].mxu0
  %v1652 = vadd.f32 %v292, %v1651
  %v1653 = vpop.f32.mrb[0].mxu0
  %v1654 = vpop.f32.mrb[0].mxu0
  %v1655 = vadd.f32 %v292, %v1654
  %v1656 = vpop.f32.mrb[0].mxu0
  %1657 = vmatprep.mubr.bf16.mxu0 0
  %1658 = vmatmul.mubr.bf16.gmra.mrb[0].mxu0 %v1055
  %v1659 = vpop.f32.mrb[0].mxu0
  %v1660 = vadd.f32 %v292, %v1659
  %v1661 = vpop.f32.mrb[0].mxu0
  %v1662 = vpop.f32.mrb[0].mxu0
  %v1663 = vadd.f32 %v292, %v1662
  %v1664 = vpop.f32.mrb[0].mxu0
  %1665 = vmatprep.mubr.bf16.mxu0 0
  %1666 = vmatmul.mubr.bf16.gmra.mrb[0].mxu0 %v1058
  %v1667 = vpop.f32.mrb[0].mxu0
  %v1668 = vadd.f32 %v292, %v1667
  %v1669 = vpop.f32.mrb[0].mxu0
  %v1670 = vpop.f32.mrb[0].mxu0
  %v1671 = vadd.f32 %v292, %v1670
  %v1672 = vpop.f32.mrb[0].mxu0
  %1673 = vmatprep.mubr.bf16.mxu0 0
  %1674 = vmatmul.mubr.bf16.gmra.mrb[0].mxu0 %v1061
  %v1675 = vpop.f32.mrb[0].mxu0
  %v1676 = vadd.f32 %v292, %v1675
  %v1677 = vpop.f32.mrb[0].mxu0
  %v1678 = vpop.f32.mrb[0].mxu0
  %v1679 = vadd.f32 %v292, %v1678
  %v1680 = vpop.f32.mrb[0].mxu0
  %1681 = vmatprep.mubr.bf16.mxu0 0
  %1682 = vmatmul.mubr.bf16.gmra.mrb[0].mxu0 %v1064
  %v1683 = vpop.f32.mrb[0].mxu0
  %v1684 = vadd.f32 %v292, %v1683
  %v1685 = vpop.f32.mrb[0].mxu0
  %v1686 = vpop.f32.mrb[0].mxu0
  %v1687 = vadd.f32 %v292, %v1686
  %v1688 = vpop.f32.mrb[0].mxu0
  %1689 = vmatprep.mubr.bf16.mxu0 0
  %1690 = vmatmul.mubr.bf16.gmra.mrb[0].mxu0 %v1067
  %v1691 = vpop.f32.mrb[0].mxu0
  %v1692 = vadd.f32 %v292, %v1691
  %v1693 = vpop.f32.mrb[0].mxu0
  %v1694 = vpop.f32.mrb[0].mxu0
  %v1695 = vadd.f32 %v292, %v1694
  %v1696 = vpop.f32.mrb[0].mxu0
  %1697 = vmatprep.mubr.bf16.mxu0 0
  %1698 = vmatmul.mubr.bf16.gmra.mrb[0].mxu0 %v1070
  %v1699 = vpop.f32.mrb[0].mxu0
  %v1700 = vadd.f32 %v292, %v1699
  %v1701 = vpop.f32.mrb[0].mxu0
  %v1702 = vpop.f32.mrb[0].mxu0
  %v1703 = vadd.f32 %v292, %v1702
  %v1704 = vpop.f32.mrb[0].mxu0
  %1705 = vmatprep.mubr.bf16.mxu0 0
  %1706 = vmatmul.mubr.bf16.gmra.mrb[0].mxu0 %v1073
  %v1707 = vpop.f32.mrb[0].mxu0
  %v1708 = vadd.f32 %v292, %v1707
  %v1709 = vpop.f32.mrb[0].mxu0
  %v1710 = vpop.f32.mrb[0].mxu0
  %v1711 = vadd.f32 %v292, %v1710
  %v1712 = vpop.f32.mrb[0].mxu0
  %1713 = vmatprep.mubr.bf16.mxu0 0
  %1714 = vmatmul.mubr.bf16.gmra.mrb[0].mxu0 %v1076
  %v1715 = vpop.f32.mrb[0].mxu0
  %v1716 = vadd.f32 %v292, %v1715
  %v1717 = vpop.f32.mrb[0].mxu0
  %v1718 = vpop.f32.mrb[0].mxu0
  %v1719 = vadd.f32 %v292, %v1718
  %v1720 = vpop.f32.mrb[0].mxu0
  %1721 = vmatprep.mubr.bf16.mxu0 0
  %1722 = vmatmul.mubr.bf16.gmra.mrb[0].mxu0 %v1079
  %v1723 = vpop.f32.mrb[0].mxu0
  %v1724 = vadd.f32 %v292, %v1723
  %v1725 = vpop.f32.mrb[0].mxu0
  %v1726 = vpop.f32.mrb[0].mxu0
  %v1727 = vadd.f32 %v292, %v1726
  %v1728 = vpop.f32.mrb[0].mxu0
  %1729 = vmatprep.mubr.bf16.mxu0 0
  %1730 = vmatmul.mubr.bf16.gmra.mrb[0].mxu0 %v1082
  %v1731 = vpop.f32.mrb[0].mxu0
  %v1732 = vadd.f32 %v292, %v1731
  %v1733 = vpop.f32.mrb[0].mxu0
  %v1734 = vpop.f32.mrb[0].mxu0
  %v1735 = vadd.f32 %v292, %v1734
  %v1736 = vpop.f32.mrb[0].mxu0
  %1737 = vmatprep.mubr.bf16.mxu0 0
  %1738 = vmatmul.mubr.bf16.gmra.mrb[0].mxu0 %v1085
  %v1739 = vpop.f32.mrb[0].mxu0
  %v1740 = vadd.f32 %v292, %v1739
  %v1741 = vpop.f32.mrb[0].mxu0
  %v1742 = vpop.f32.mrb[0].mxu0
  %v1743 = vadd.f32 %v292, %v1742
  %v1744 = vpop.f32.mrb[0].mxu0
  %1745 = vmatprep.mubr.bf16.mxu0 0
  %1746 = vmatmul.mubr.bf16.gmra.mrb[0].mxu0 %v1088
  %v1747 = vpop.f32.mrb[0].mxu0
  %v1748 = vadd.f32 %v292, %v1747
  %v1749 = vpop.f32.mrb[0].mxu0
  %v1750 = vpop.f32.mrb[0].mxu0
  %v1751 = vadd.f32 %v292, %v1750
  %v1752 = vpop.f32.mrb[0].mxu0
  %1753 = vmatprep.mubr.bf16.mxu0 0
  %1754 = vmatmul.mubr.bf16.gmra.mrb[0].mxu0 %v1091
  %v1755 = vpop.f32.mrb[0].mxu0
  %v1756 = vadd.f32 %v292, %v1755
  %v1757 = vpop.f32.mrb[0].mxu0
  %v1758 = vpop.f32.mrb[0].mxu0
  %v1759 = vadd.f32 %v292, %v1758
  %v1760 = vpop.f32.mrb[0].mxu0
  %1761 = vmatprep.mubr.bf16.mxu0 0
  %1762 = vmatmul.mubr.bf16.gmra.mrb[0].mxu0 %v1094
  %v1763 = vpop.f32.mrb[0].mxu0
  %v1764 = vadd.f32 %v292, %v1763
  %v1765 = vpop.f32.mrb[0].mxu0
  %v1766 = vpop.f32.mrb[0].mxu0
  %v1767 = vadd.f32 %v292, %v1766
  %v1768 = vpop.f32.mrb[0].mxu0
  %1769 = vmatprep.mubr.bf16.mxu0 0
  %1770 = vmatmul.mubr.bf16.gmra.mrb[0].mxu0 %v1097
  %v1771 = vpop.f32.mrb[0].mxu0
  %v1772 = vadd.f32 %v292, %v1771
  %v1773 = vpop.f32.mrb[0].mxu0
  %v1774 = vpop.f32.mrb[0].mxu0
  %v1775 = vadd.f32 %v292, %v1774
  %v1776 = vpop.f32.mrb[0].mxu0
  %1777 = vmatprep.mubr.bf16.mxu0 0
  %1778 = vmatmul.mubr.bf16.gmra.mrb[0].mxu0 %v1100
  %v1779 = vpop.f32.mrb[0].mxu0
  %v1780 = vadd.f32 %v292, %v1779
  %v1781 = vpop.f32.mrb[0].mxu0
  %v1782 = vpop.f32.mrb[0].mxu0
  %v1783 = vadd.f32 %v292, %v1782
  %v1784 = vpop.f32.mrb[0].mxu0
  %1785 = vmatprep.mubr.bf16.mxu0 0
  %1786 = vmatmul.mubr.bf16.gmra.mrb[0].mxu0 %v1103
  %v1787 = vpop.f32.mrb[0].mxu0
  %v1788 = vadd.f32 %v292, %v1787
  %v1789 = vpop.f32.mrb[0].mxu0
  %v1790 = vpop.f32.mrb[0].mxu0
  %v1791 = vadd.f32 %v292, %v1790
  %v1792 = vpop.f32.mrb[0].mxu0
  %1793 = vmatprep.mubr.bf16.mxu0 0
  %1794 = vmatmul.mubr.bf16.gmra.mrb[0].mxu0 %v1106
  %v1795 = vpop.f32.mrb[0].mxu0
  %v1796 = vadd.f32 %v292, %v1795
  %v1797 = vpop.f32.mrb[0].mxu0
  %v1798 = vpop.f32.mrb[0].mxu0
  %v1799 = vadd.f32 %v292, %v1798
  %v1800 = vpop.f32.mrb[0].mxu0
  %1801 = vmatprep.mubr.bf16.mxu0 0
  %1802 = vmatmul.mubr.bf16.gmra.mrb[0].mxu0 %v1109
  %v1803 = vpop.f32.mrb[0].mxu0
  %v1804 = vadd.f32 %v292, %v1803
  %v1805 = vpop.f32.mrb[0].mxu0
  %v1806 = vpop.f32.mrb[0].mxu0
  %v1807 = vadd.f32 %v292, %v1806
  %v1808 = vpop.f32.mrb[0].mxu0
  %1809 = vmatprep.mubr.bf16.mxu0 0
  %1810 = vmatmul.mubr.bf16.gmra.mrb[0].mxu0 %v1112
  %v1811 = vpop.f32.mrb[0].mxu0
  %v1812 = vadd.f32 %v292, %v1811
  %v1813 = vpop.f32.mrb[0].mxu0
  %v1814 = vpop.f32.mrb[0].mxu0
  %v1815 = vadd.f32 %v292, %v1814
  %v1816 = vpop.f32.mrb[0].mxu0
  %1817 = vmatprep.mubr.bf16.mxu0 0
  %1818 = vmatmul.mubr.bf16.gmra.mrb[0].mxu0 %v1115
  %v1819 = vpop.f32.mrb[0].mxu0
  %v1820 = vadd.f32 %v292, %v1819
  %v1821 = vpop.f32.mrb[0].mxu0
  %v1822 = vpop.f32.mrb[0].mxu0
  %v1823 = vadd.f32 %v292, %v1822
  %v1824 = vpop.f32.mrb[0].mxu0
  %1825 = vmatprep.mubr.bf16.mxu0 0
  %1826 = vmatmul.mubr.bf16.gmra.mrb[0].mxu0 %v1118
  %v1827 = vpop.f32.mrb[0].mxu0
  %v1828 = vadd.f32 %v292, %v1827
  %v1829 = vpop.f32.mrb[0].mxu0
  %v1830 = vpop.f32.mrb[0].mxu0
  %v1831 = vadd.f32 %v292, %v1830
  %v1832 = vpop.f32.mrb[0].mxu0
  %1833 = vmatprep.mubr.bf16.mxu0 0
  %1834 = vmatmul.mubr.bf16.gmra.mrb[0].mxu0 %v1121
  %v1835 = vpop.f32.mrb[0].mxu0
  %v1836 = vadd.f32 %v292, %v1835
  %v1837 = vpop.f32.mrb[0].mxu0
  %v1838 = vpop.f32.mrb[0].mxu0
  %v1839 = vadd.f32 %v292, %v1838
  %v1840 = vpop.f32.mrb[0].mxu0
  %1841 = vmatprep.mubr.bf16.mxu0 0
  %1842 = vmatmul.mubr.bf16.gmra.mrb[0].mxu0 %v1124
  %v1843 = vpop.f32.mrb[0].mxu0
  %v1844 = vadd.f32 %v292, %v1843
  %v1845 = vpop.f32.mrb[0].mxu0
  %v1846 = vpop.f32.mrb[0].mxu0
  %v1847 = vadd.f32 %v292, %v1846
  %v1848 = vpop.f32.mrb[0].mxu0
  %1849 = vmatprep.mubr.bf16.mxu0 0
  %1850 = vmatmul.mubr.bf16.gmra.mrb[0].mxu0 %v1127
  %v1851 = vpop.f32.mrb[0].mxu0
  %v1852 = vadd.f32 %v292, %v1851
  %v1853 = vpop.f32.mrb[0].mxu0
  %v1854 = vpop.f32.mrb[0].mxu0
  %v1855 = vadd.f32 %v292, %v1854
  %v1856 = vpop.f32.mrb[0].mxu0
  %1857 = vmatprep.mubr.bf16.mxu0 0
  %1858 = vmatmul.mubr.bf16.gmra.mrb[0].mxu0 %v1130
  %v1859 = vpop.f32.mrb[0].mxu0
  %v1860 = vadd.f32 %v292, %v1859
  %v1861 = vpop.f32.mrb[0].mxu0
  %v1862 = vpop.f32.mrb[0].mxu0
  %v1863 = vadd.f32 %v292, %v1862
  %v1864 = vpop.f32.mrb[0].mxu0
  %1865 = vmatprep.mubr.bf16.mxu0 0
  %1866 = vmatmul.mubr.bf16.gmra.mrb[0].mxu0 %v1133
  %v1867 = vpop.f32.mrb[0].mxu0
  %v1868 = vadd.f32 %v292, %v1867
  %v1869 = vpop.f32.mrb[0].mxu0
  %v1870 = vpop.f32.mrb[0].mxu0
  %v1871 = vadd.f32 %v292, %v1870
  %v1872 = vpop.f32.mrb[0].mxu0
  %1873 = vmatprep.mubr.bf16.mxu0 0
  %1874 = vmatmul.mubr.bf16.gmra.mrb[0].mxu0 %v1136
  %v1875 = vpop.f32.mrb[0].mxu0
  %v1876 = vadd.f32 %v292, %v1875
  %v1877 = vpop.f32.mrb[0].mxu0
  %v1878 = vpop.f32.mrb[0].mxu0
  %v1879 = vadd.f32 %v292, %v1878
  %v1880 = vpop.f32.mrb[0].mxu0
  %1881 = vmatprep.mubr.bf16.mxu0 0
  %1882 = vmatmul.mubr.bf16.gmra.mrb[0].mxu0 %v1139
  %v1883 = vpop.f32.mrb[0].mxu0
  %v1884 = vadd.f32 %v292, %v1883
  %v1885 = vpop.f32.mrb[0].mxu0
  %v1886 = vpop.f32.mrb[0].mxu0
  %v1887 = vadd.f32 %v292, %v1886
  %v1888 = vpop.f32.mrb[0].mxu0
  %1889 = vmatprep.mubr.bf16.mxu0 0
  %1890 = vmatmul.mubr.bf16.gmra.mrb[0].mxu0 %v1142
  %v1891 = vpop.f32.mrb[0].mxu0
  %v1892 = vadd.f32 %v292, %v1891
  %v1893 = vpop.f32.mrb[0].mxu0
  %v1894 = vpop.f32.mrb[0].mxu0
  %v1895 = vadd.f32 %v292, %v1894
  %v1896 = vpop.f32.mrb[0].mxu0
  %1897 = vmatprep.mubr.bf16.mxu0 0
  %1898 = vmatmul.mubr.bf16.gmra.mrb[0].mxu0 %v1145
  %v1899 = vpop.f32.mrb[0].mxu0
  %v1900 = vadd.f32 %v292, %v1899
  %v1901 = vpop.f32.mrb[0].mxu0
  %v1902 = vpop.f32.mrb[0].mxu0
  %v1903 = vadd.f32 %v292, %v1902
  %v1904 = vpop.f32.mrb[0].mxu0
  %1905 = vmatprep.mubr.bf16.mxu0 0
  %1906 = vmatmul.mubr.bf16.gmra.mrb[0].mxu0 %v1148
  %v1907 = vpop.f32.mrb[0].mxu0
  %v1908 = vadd.f32 %v292, %v1907
  %v1909 = vpop.f32.mrb[0].mxu0
  %v1910 = vpop.f32.mrb[0].mxu0
  %v1911 = vadd.f32 %v292, %v1910
  %v1912 = vpop.f32.mrb[0].mxu0
  %1913 = vmatprep.mubr.bf16.mxu0 0
  %1914 = vmatmul.mubr.bf16.gmra.mrb[0].mxu0 %v1151
  %v1915 = vpop.f32.mrb[0].mxu0
  %v1916 = vadd.f32 %v292, %v1915
  %v1917 = vpop.f32.mrb[0].mxu0
  %v1918 = vpop.f32.mrb[0].mxu0
  %v1919 = vadd.f32 %v292, %v1918
  %v1920 = vpop.f32.mrb[0].mxu0
  %1921 = vmatprep.mubr.bf16.mxu0 0
  %1922 = vmatmul.mubr.bf16.gmra.mrb[0].mxu0 %v1154
  %v1923 = vpop.f32.mrb[0].mxu0
  %v1924 = vadd.f32 %v292, %v1923
  %v1925 = vpop.f32.mrb[0].mxu0
  %v1926 = vpop.f32.mrb[0].mxu0
  %v1927 = vadd.f32 %v292, %v1926
  %v1928 = vpop.f32.mrb[0].mxu0
  %1929 = vmatprep.mubr.bf16.mxu0 0
  %1930 = vmatmul.mubr.bf16.gmra.mrb[0].mxu0 %v1157
  %v1931 = vpop.f32.mrb[0].mxu0
  %v1932 = vadd.f32 %v292, %v1931
  %v1933 = vpop.f32.mrb[0].mxu0
  %v1934 = vpop.f32.mrb[0].mxu0
  %v1935 = vadd.f32 %v292, %v1934
  %v1936 = vpop.f32.mrb[0].mxu0
  %1937 = vmatprep.mubr.bf16.mxu0 0
  %1938 = vmatmul.mubr.bf16.gmra.mrb[0].mxu0 %v1160
  %v1939 = vpop.f32.mrb[0].mxu0
  %v1940 = vadd.f32 %v292, %v1939
  %v1941 = vpop.f32.mrb[0].mxu0
  %v1942 = vpop.f32.mrb[0].mxu0
  %v1943 = vadd.f32 %v292, %v1942
  %v1944 = vpop.f32.mrb[0].mxu0
  %1945 = vmatprep.mubr.bf16.mxu0 0
  %1946 = vmatmul.mubr.bf16.gmra.mrb[0].mxu0 %v1163
  %v1947 = vpop.f32.mrb[0].mxu0
  %v1948 = vadd.f32 %v292, %v1947
  %v1949 = vpop.f32.mrb[0].mxu0
  %v1950 = vpop.f32.mrb[0].mxu0
  %v1951 = vadd.f32 %v292, %v1950
  %v1952 = vpop.f32.mrb[0].mxu0
  %1953 = vmatprep.mubr.bf16.mxu0 0
  %1954 = vmatmul.mubr.bf16.gmra.mrb[0].mxu0 %v1166
  %v1955 = vpop.f32.mrb[0].mxu0
  %v1956 = vadd.f32 %v292, %v1955
  %v1957 = vpop.f32.mrb[0].mxu0
  %v1958 = vpop.f32.mrb[0].mxu0
  %v1959 = vadd.f32 %v292, %v1958
  %v1960 = vpop.f32.mrb[0].mxu0
  %1961 = vmatprep.mubr.bf16.mxu0 0
  %1962 = vmatmul.mubr.bf16.gmra.mrb[0].mxu0 %v1169
  %v1963 = vpop.f32.mrb[0].mxu0
  %v1964 = vadd.f32 %v292, %v1963
  %v1965 = vpop.f32.mrb[0].mxu0
  %v1966 = vpop.f32.mrb[0].mxu0
  %v1967 = vadd.f32 %v292, %v1966
  %v1968 = vpop.f32.mrb[0].mxu0
  %1969 = vmatprep.mubr.bf16.mxu0 0
  %1970 = vmatmul.mubr.bf16.gmra.mrb[0].mxu0 %v1172
  %v1971 = vpop.f32.mrb[0].mxu0
  %v1972 = vadd.f32 %v292, %v1971
  %v1973 = vpop.f32.mrb[0].mxu0
  %v1974 = vpop.f32.mrb[0].mxu0
  %v1975 = vadd.f32 %v292, %v1974
  %v1976 = vpop.f32.mrb[0].mxu0
  %1977 = vmatprep.mubr.bf16.mxu0 0
  %1978 = vmatmul.mubr.bf16.gmra.mrb[0].mxu0 %v1175
  %v1979 = vpop.f32.mrb[0].mxu0
  %v1980 = vadd.f32 %v292, %v1979
  %v1981 = vpop.f32.mrb[0].mxu0
  %v1982 = vpop.f32.mrb[0].mxu0
  %v1983 = vadd.f32 %v292, %v1982
  %v1984 = vpop.f32.mrb[0].mxu0
  %1985 = vmatprep.mubr.bf16.mxu0 0
  %1986 = vmatmul.mubr.bf16.gmra.mrb[0].mxu0 %v1178
  %v1987 = vpop.f32.mrb[0].mxu0
  %v1988 = vadd.f32 %v292, %v1987
  %v1989 = vpop.f32.mrb[0].mxu0
  %v1990 = vpop.f32.mrb[0].mxu0
  %v1991 = vadd.f32 %v292, %v1990
  %v1992 = vpop.f32.mrb[0].mxu0
  %1993 = vmatprep.mubr.bf16.mxu0 0
  %1994 = vmatmul.mubr.bf16.gmra.mrb[0].mxu0 %v1181
  %v1995 = vpop.f32.mrb[0].mxu0
  %v1996 = vadd.f32 %v292, %v1995
  %v1997 = vpop.f32.mrb[0].mxu0
  %v1998 = vpop.f32.mrb[0].mxu0
  %v1999 = vadd.f32 %v292, %v1998
  %v2000 = vpop.f32.mrb[0].mxu0
  %2001 = vmatprep.mubr.bf16.mxu0 0
  %2002 = vmatmul.mubr.bf16.gmra.mrb[0].mxu0 %v1184
  %v2003 = vpop.f32.mrb[0].mxu0
  %v2004 = vadd.f32 %v292, %v2003
  %v2005 = vpop.f32.mrb[0].mxu0
  %v2006 = vpop.f32.mrb[0].mxu0
  %v2007 = vadd.f32 %v292, %v2006
  %v2008 = vpop.f32.mrb[0].mxu0
  %2009 = vmatprep.mubr.bf16.mxu0 0
  %2010 = vmatmul.mubr.bf16.gmra.mrb[0].mxu0 %v1187
  %v2011 = vpop.f32.mrb[0].mxu0
  %v2012 = vadd.f32 %v292, %v2011
  %v2013 = vpop.f32.mrb[0].mxu0
  %v2014 = vpop.f32.mrb[0].mxu0
  %v2015 = vadd.f32 %v292, %v2014
  %v2016 = vpop.f32.mrb[0].mxu0
  %2017 = vmatprep.mubr.bf16.mxu0 0
  %2018 = vmatmul.mubr.bf16.gmra.mrb[0].mxu0 %v1190
  %v2019 = vpop.f32.mrb[0].mxu0
  %v2020 = vadd.f32 %v292, %v2019
  %v2021 = vpop.f32.mrb[0].mxu0
  %v2022 = vpop.f32.mrb[0].mxu0
  %v2023 = vadd.f32 %v292, %v2022
  %v2024 = vpop.f32.mrb[0].mxu0
  %2025 = vmatprep.mubr.bf16.mxu0 0
  %2026 = vmatmul.mubr.bf16.gmra.mrb[0].mxu0 %v1193
  %v2027 = vpop.f32.mrb[0].mxu0
  %v2028 = vadd.f32 %v292, %v2027
  %v2029 = vpop.f32.mrb[0].mxu0
  %v2030 = vpop.f32.mrb[0].mxu0
  %v2031 = vadd.f32 %v292, %v2030
  %v2032 = vpop.f32.mrb[0].mxu0
  %2033 = vmatprep.mubr.bf16.mxu0 0
  %2034 = vmatmul.mubr.bf16.gmra.mrb[0].mxu0 %v1196
  %v2035 = vpop.f32.mrb[0].mxu0
  %v2036 = vadd.f32 %v292, %v2035
  %v2037 = vpop.f32.mrb[0].mxu0
  %v2038 = vpop.f32.mrb[0].mxu0
  %v2039 = vadd.f32 %v292, %v2038
  %v2040 = vpop.f32.mrb[0].mxu0
  %2041 = vmatprep.mubr.bf16.mxu0 0
  %2042 = vmatmul.mubr.bf16.gmra.mrb[0].mxu0 %v1199
  %v2043 = vpop.f32.mrb[0].mxu0
  %v2044 = vadd.f32 %v292, %v2043
  %v2045 = vpop.f32.mrb[0].mxu0
  %v2046 = vpop.f32.mrb[0].mxu0
  %v2047 = vadd.f32 %v292, %v2046
  %v2048 = vpop.f32.mrb[0].mxu0
  %2049 = vmatprep.mubr.bf16.mxu0 0
  %2050 = vmatmul.mubr.bf16.gmra.mrb[0].mxu0 %v1202
  %v2051 = vpop.f32.mrb[0].mxu0
  %v2052 = vadd.f32 %v292, %v2051
  %v2053 = vpop.f32.mrb[0].mxu0
  %v2054 = vpop.f32.mrb[0].mxu0
  %v2055 = vadd.f32 %v292, %v2054
  %v2056 = vpop.f32.mrb[0].mxu0
  %2057 = vmatprep.mubr.bf16.mxu0 0
  %2058 = vmatmul.mubr.bf16.gmra.mrb[0].mxu0 %v1205
  %v2059 = vpop.f32.mrb[0].mxu0
  %v2060 = vadd.f32 %v292, %v2059
  %v2061 = vpop.f32.mrb[0].mxu0
  %v2062 = vpop.f32.mrb[0].mxu0
  %v2063 = vadd.f32 %v292, %v2062
  %v2064 = vpop.f32.mrb[0].mxu0
  %2065 = vmatprep.mubr.bf16.mxu0 0
  %2066 = vmatmul.mubr.bf16.gmra.mrb[0].mxu0 %v1208
  %v2067 = vpop.f32.mrb[0].mxu0
  %v2068 = vadd.f32 %v292, %v2067
  %v2069 = vpop.f32.mrb[0].mxu0
  %v2070 = vpop.f32.mrb[0].mxu0
  %v2071 = vadd.f32 %v292, %v2070
  %v2072 = vpop.f32.mrb[0].mxu0
  %2073 = vmatprep.mubr.bf16.mxu0 0
  %2074 = vmatmul.mubr.bf16.gmra.mrb[0].mxu0 %v1211
  %v2075 = vpop.f32.mrb[0].mxu0
  %v2076 = vadd.f32 %v292, %v2075
  %v2077 = vpop.f32.mrb[0].mxu0
  %v2078 = vpop.f32.mrb[0].mxu0
  %v2079 = vadd.f32 %v292, %v2078
  %v2080 = vpop.f32.mrb[0].mxu0
  %2081 = vmatprep.mubr.bf16.mxu0 0
  %2082 = vmatmul.mubr.bf16.gmra.mrb[0].mxu0 %v1214
  %v2083 = vpop.f32.mrb[0].mxu0
  %v2084 = vadd.f32 %v292, %v2083
  %v2085 = vpop.f32.mrb[0].mxu0
  %v2086 = vpop.f32.mrb[0].mxu0
  %v2087 = vadd.f32 %v292, %v2086
  %v2088 = vpop.f32.mrb[0].mxu0
  %2089 = vmatprep.mubr.bf16.mxu0 0
  %2090 = vmatmul.mubr.bf16.gmra.mrb[0].mxu0 %v1217
  %v2091 = vpop.f32.mrb[0].mxu0
  %v2092 = vadd.f32 %v292, %v2091
  %v2093 = vpop.f32.mrb[0].mxu0
  %v2094 = vpop.f32.mrb[0].mxu0
  %v2095 = vadd.f32 %v292, %v2094
  %v2096 = vpop.f32.mrb[0].mxu0
  %2097 = vmatprep.mubr.bf16.mxu0 0
  %2098 = vmatmul.mubr.bf16.gmra.mrb[0].mxu0 %v1220
  %v2099 = vpop.f32.mrb[0].mxu0
  %v2100 = vadd.f32 %v292, %v2099
  %v2101 = vpop.f32.mrb[0].mxu0
  %v2102 = vpop.f32.mrb[0].mxu0
  %v2103 = vadd.f32 %v292, %v2102
  %v2104 = vpop.f32.mrb[0].mxu0
  %2105 = vmatprep.mubr.bf16.mxu0 0
  %2106 = vmatmul.mubr.bf16.gmra.mrb[0].mxu0 %v1223
  %v2107 = vpop.f32.mrb[0].mxu0
  %v2108 = vadd.f32 %v292, %v2107
  %v2109 = vpop.f32.mrb[0].mxu0
  %v2110 = vpop.f32.mrb[0].mxu0
  %v2111 = vadd.f32 %v292, %v2110
  %v2112 = vpop.f32.mrb[0].mxu0
  %2113 = vmatprep.mubr.bf16.mxu0 0
  %2114 = vmatmul.mubr.bf16.gmra.mrb[0].mxu0 %v1226
  %v2115 = vpop.f32.mrb[0].mxu0
  %v2116 = vadd.f32 %v292, %v2115
  %v2117 = vpop.f32.mrb[0].mxu0
  %v2118 = vpop.f32.mrb[0].mxu0
  %v2119 = vadd.f32 %v292, %v2118
  %v2120 = vpop.f32.mrb[0].mxu0
  %2121 = vmatprep.mubr.bf16.mxu0 0
  %2122 = vmatmul.mubr.bf16.gmra.mrb[0].mxu0 %v1229
  %v2123 = vpop.f32.mrb[0].mxu0
  %v2124 = vadd.f32 %v292, %v2123
  %v2125 = vpop.f32.mrb[0].mxu0
  %v2126 = vpop.f32.mrb[0].mxu0
  %v2127 = vadd.f32 %v292, %v2126
  %v2128 = vpop.f32.mrb[0].mxu0
  %2129 = vmatprep.mubr.bf16.mxu0 0
  %2130 = vmatmul.mubr.bf16.gmra.mrb[0].mxu0 %v1232
  %v2131 = vpop.f32.mrb[0].mxu0
  %v2132 = vadd.f32 %v292, %v2131
  %v2133 = vpop.f32.mrb[0].mxu0
  %v2134 = vpop.f32.mrb[0].mxu0
  %v2135 = vadd.f32 %v292, %v2134
  %v2136 = vpop.f32.mrb[0].mxu0
  %2137 = vmatprep.mubr.bf16.mxu0 0
  %2138 = vmatmul.mubr.bf16.gmra.mrb[0].mxu0 %v1235
  %v2139 = vpop.f32.mrb[0].mxu0
  %v2140 = vadd.f32 %v292, %v2139
  %v2141 = vpop.f32.mrb[0].mxu0
  %v2142 = vpop.f32.mrb[0].mxu0
  %v2143 = vadd.f32 %v292, %v2142
  %v2144 = vpop.f32.mrb[0].mxu0
  %2145 = vmatprep.mubr.bf16.mxu0 0
  %2146 = vmatmul.mubr.bf16.gmra.mrb[0].mxu0 %v1238
  %v2147 = vpop.f32.mrb[0].mxu0
  %v2148 = vadd.f32 %v292, %v2147
  %v2149 = vpop.f32.mrb[0].mxu0
  %v2150 = vpop.f32.mrb[0].mxu0
  %v2151 = vadd.f32 %v292, %v2150
  %v2152 = vpop.f32.mrb[0].mxu0
  %2153 = vmatprep.mubr.bf16.mxu0 0
  %2154 = vmatmul.mubr.bf16.gmra.mrb[0].mxu0 %v1241
  %v2155 = vpop.f32.mrb[0].mxu0
  %v2156 = vadd.f32 %v292, %v2155
  %v2157 = vpop.f32.mrb[0].mxu0
  %v2158 = vpop.f32.mrb[0].mxu0
  %v2159 = vadd.f32 %v292, %v2158
  %v2160 = vpop.f32.mrb[0].mxu0
  %2161 = vmatprep.mubr.bf16.mxu0 0
  %2162 = vmatmul.mubr.bf16.gmra.mrb[0].mxu0 %v1244
  %v2163 = vpop.f32.mrb[0].mxu0
  %v2164 = vadd.f32 %v292, %v2163
  %v2165 = vpop.f32.mrb[0].mxu0
  %v2166 = vpop.f32.mrb[0].mxu0
  %v2167 = vadd.f32 %v292, %v2166
  %v2168 = vpop.f32.mrb[0].mxu0
  %2169 = vmatprep.mubr.bf16.mxu0 0
  %2170 = vmatmul.mubr.bf16.gmra.mrb[0].mxu0 %v1247
  %v2171 = vpop.f32.mrb[0].mxu0
  %v2172 = vadd.f32 %v292, %v2171
  %v2173 = vpop.f32.mrb[0].mxu0
  %v2174 = vpop.f32.mrb[0].mxu0
  %v2175 = vadd.f32 %v292, %v2174
  %v2176 = vpop.f32.mrb[0].mxu0
  %2177 = vmatprep.mubr.bf16.mxu0 0
  %2178 = vmatmul.mubr.bf16.gmra.mrb[0].mxu0 %v1250
  %v2179 = vpop.f32.mrb[0].mxu0
  %v2180 = vadd.f32 %v292, %v2179
  %v2181 = vpop.f32.mrb[0].mxu0
  %v2182 = vpop.f32.mrb[0].mxu0
  %v2183 = vadd.f32 %v292, %v2182
  %v2184 = vpop.f32.mrb[0].mxu0
  %2185 = vmatprep.mubr.bf16.mxu0 0
  %2186 = vmatmul.mubr.bf16.gmra.mrb[0].mxu0 %v1253
  %v2187 = vpop.f32.mrb[0].mxu0
  %v2188 = vadd.f32 %v292, %v2187
  %v2189 = vpop.f32.mrb[0].mxu0
  %v2190 = vpop.f32.mrb[0].mxu0
  %v2191 = vadd.f32 %v292, %v2190
  %v2192 = vpop.f32.mrb[0].mxu0
  %2193 = vmatprep.mubr.bf16.mxu0 0
  %2194 = vmatmul.mubr.bf16.gmra.mrb[0].mxu0 %v1256
  %v2195 = vpop.f32.mrb[0].mxu0
  %v2196 = vadd.f32 %v292, %v2195
  %v2197 = vpop.f32.mrb[0].mxu0
  %v2198 = vpop.f32.mrb[0].mxu0
  %v2199 = vadd.f32 %v292, %v2198
  %v2200 = vpop.f32.mrb[0].mxu0
  %2201 = vmatprep.mubr.bf16.mxu0 0
  %2202 = vmatmul.mubr.bf16.gmra.mrb[0].mxu0 %v1259
  %v2203 = vpop.f32.mrb[0].mxu0
  %v2204 = vadd.f32 %v292, %v2203
  %v2205 = vpop.f32.mrb[0].mxu0
  %v2206 = vpop.f32.mrb[0].mxu0
  %v2207 = vadd.f32 %v292, %v2206
  %v2208 = vpop.f32.mrb[0].mxu0
  %2209 = vmatprep.mubr.bf16.mxu0 0
  %2210 = vmatmul.mubr.bf16.gmra.mrb[0].mxu0 %v1262
  %v2211 = vpop.f32.mrb[0].mxu0
  %v2212 = vadd.f32 %v292, %v2211
  %v2213 = vpop.f32.mrb[0].mxu0
  %v2214 = vpop.f32.mrb[0].mxu0
  %v2215 = vadd.f32 %v292, %v2214
  %v2216 = vpop.f32.mrb[0].mxu0
  %2217 = vmatprep.mubr.bf16.mxu0 0
  %2218 = vmatmul.mubr.bf16.gmra.mrb[0].mxu0 %v1265
  %v2219 = vpop.f32.mrb[0].mxu0
  %v2220 = vadd.f32 %v292, %v2219
  %v2221 = vpop.f32.mrb[0].mxu0
  %v2222 = vpop.f32.mrb[0].mxu0
  %v2223 = vadd.f32 %v292, %v2222
  %v2224 = vpop.f32.mrb[0].mxu0
  %2225 = vmatprep.mubr.bf16.mxu0 0
  %2226 = vmatmul.mubr.bf16.gmra.mrb[0].mxu0 %v1268
  %v2227 = vpop.f32.mrb[0].mxu0
  %v2228 = vadd.f32 %v292, %v2227
  %v2229 = vpop.f32.mrb[0].mxu0
  %v2230 = vpop.f32.mrb[0].mxu0
  %v2231 = vadd.f32 %v292, %v2230
  %v2232 = vpop.f32.mrb[0].mxu0
  %2233 = vmatprep.mubr.bf16.mxu0 0
  %2234 = vmatmul.mubr.bf16.gmra.mrb[0].mxu0 %v1271
  %v2235 = vpop.f32.mrb[0].mxu0
  %v2236 = vadd.f32 %v292, %v2235
  %v2237 = vpop.f32.mrb[0].mxu0
  %v2238 = vpop.f32.mrb[0].mxu0
  %v2239 = vadd.f32 %v292, %v2238
  %v2240 = vpop.f32.mrb[0].mxu0
  %2241 = vmatprep.mubr.bf16.mxu0 0
  %2242 = vmatmul.mubr.bf16.gmra.mrb[0].mxu0 %v1274
  %v2243 = vpop.f32.mrb[0].mxu0
  %v2244 = vadd.f32 %v292, %v2243
  %v2245 = vpop.f32.mrb[0].mxu0
  %v2246 = vpop.f32.mrb[0].mxu0
  %v2247 = vadd.f32 %v292, %v2246
  %v2248 = vpop.f32.mrb[0].mxu0
  %2249 = vmatprep.mubr.bf16.mxu0 0
  %2250 = vmatmul.mubr.bf16.gmra.mrb[0].mxu0 %v1277
  %v2251 = vpop.f32.mrb[0].mxu0
  %v2252 = vadd.f32 %v292, %v2251
  %v2253 = vpop.f32.mrb[0].mxu0
  %v2254 = vpop.f32.mrb[0].mxu0
  %v2255 = vadd.f32 %v292, %v2254
  %v2256 = vpop.f32.mrb[0].mxu0
  %2257 = vmatprep.mubr.bf16.mxu0 0
  %2258 = vmatmul.mubr.bf16.gmra.mrb[0].mxu0 %v1280
  %v2259 = vpop.f32.mrb[0].mxu0
  %v2260 = vadd.f32 %v292, %v2259
  %v2261 = vpop.f32.mrb[0].mxu0
  %v2262 = vpop.f32.mrb[0].mxu0
  %v2263 = vadd.f32 %v292, %v2262
  %v2264 = vpop.f32.mrb[0].mxu0
  %2265 = vmatprep.mubr.bf16.mxu0 0
  %2266 = vmatmul.mubr.bf16.gmra.mrb[0].mxu0 %v1283
  %v2267 = vpop.f32.mrb[0].mxu0
  %v2268 = vadd.f32 %v292, %v2267
  %v2269 = vpop.f32.mrb[0].mxu0
  %v2270 = vpop.f32.mrb[0].mxu0
  %v2271 = vadd.f32 %v292, %v2270
  %v2272 = vpop.f32.mrb[0].mxu0
  %2273 = vmatprep.mubr.bf16.mxu0 0
  %2274 = vmatmul.mubr.bf16.gmra.mrb[0].mxu0 %v1286
  %v2275 = vpop.f32.mrb[0].mxu0
  %v2276 = vadd.f32 %v292, %v2275
  %v2277 = vpop.f32.mrb[0].mxu0
  %v2278 = vpop.f32.mrb[0].mxu0
  %v2279 = vadd.f32 %v292, %v2278
  %v2280 = vpop.f32.mrb[0].mxu0
  %2281 = vmatprep.mubr.bf16.mxu0 0
  %2282 = vmatmul.mubr.bf16.gmra.mrb[0].mxu0 %v1289
  %v2283 = vpop.f32.mrb[0].mxu0
  %v2284 = vadd.f32 %v292, %v2283
  %v2285 = vpop.f32.mrb[0].mxu0
  %v2286 = vpop.f32.mrb[0].mxu0
  %v2287 = vadd.f32 %v292, %v2286
  %v2288 = vpop.f32.mrb[0].mxu0
  %2289 = vmatprep.mubr.bf16.mxu0 0
  %2290 = vmatmul.mubr.bf16.gmra.mrb[0].mxu0 %v1292
  %v2291 = vpop.f32.mrb[0].mxu0
  %v2292 = vadd.f32 %v292, %v2291
  %v2293 = vpop.f32.mrb[0].mxu0
  %v2294 = vpop.f32.mrb[0].mxu0
  %v2295 = vadd.f32 %v292, %v2294
  %v2296 = vpop.f32.mrb[0].mxu0
  %2297 = vmatprep.mubr.bf16.mxu0 0
  %2298 = vmatmul.mubr.bf16.gmra.mrb[0].mxu0 %v1295
  %v2299 = vpop.f32.mrb[0].mxu0
  %v2300 = vadd.f32 %v292, %v2299
  %v2301 = vpop.f32.mrb[0].mxu0
  %v2302 = vpop.f32.mrb[0].mxu0
  %v2303 = vadd.f32 %v292, %v2302
  %v2304 = vpop.f32.mrb[0].mxu0
  %2305 = vmatprep.mubr.bf16.mxu0 0
  %2306 = vmatmul.mubr.bf16.gmra.mrb[0].mxu0 %v1298
  %v2307 = vpop.f32.mrb[0].mxu0
  %v2308 = vadd.f32 %v292, %v2307
  %v2309 = vpop.f32.mrb[0].mxu0
  %v2310 = vpop.f32.mrb[0].mxu0
  %v2311 = vadd.f32 %v292, %v2310
  %v2312 = vpop.f32.mrb[0].mxu0
  %2313 = vmatprep.mubr.bf16.mxu0 0
  %2314 = vmatmul.mubr.bf16.gmra.mrb[0].mxu0 %v1301
  %v2315 = vpop.f32.mrb[0].mxu0
  %v2316 = vadd.f32 %v292, %v2315
  %v2317 = vpop.f32.mrb[0].mxu0
  %v2318 = vpop.f32.mrb[0].mxu0
  %v2319 = vadd.f32 %v292, %v2318
  %v2320 = vpop.f32.mrb[0].mxu0
  %2321 = vmatprep.mubr.bf16.mxu0 0
  %2322 = vmatmul.mubr.bf16.gmra.mrb[0].mxu0 %v1304
  %v2323 = vpop.f32.mrb[0].mxu0
  %v2324 = vadd.f32 %v292, %v2323
  %v2325 = vpop.f32.mrb[0].mxu0
  %v2326 = vpop.f32.mrb[0].mxu0
  %v2327 = vadd.f32 %v292, %v2326
  %v2328 = vpop.f32.mrb[0].mxu0
  %2329 = vmatprep.mubr.bf16.mxu0 0
  %2330 = vmatmul.mubr.bf16.gmra.mrb[0].mxu0 %v1307
  %v2331 = vpop.f32.mrb[0].mxu0
  %v2332 = vadd.f32 %v292, %v2331
  %v2333 = vpop.f32.mrb[0].mxu0
  %v2334 = vpop.f32.mrb[0].mxu0
  %v2335 = vadd.f32 %v292, %v2334
  %v2336 = vpop.f32.mrb[0].mxu0
  %2337 = vmatprep.mubr.bf16.mxu0 0
  %2338 = vmatmul.mubr.bf16.gmra.mrb[0].mxu0 %v1310
  %v2339 = vpop.f32.mrb[0].mxu0
  %v2340 = vadd.f32 %v292, %v2339
  %v2341 = vpop.f32.mrb[0].mxu0
  %v2342 = vpop.f32.mrb[0].mxu0
  %v2343 = vadd.f32 %v292, %v2342
  %v2344 = vpop.f32.mrb[0].mxu0
  %2345 = vmatprep.mubr.bf16.mxu0 0
  %2346 = vmatmul.mubr.bf16.gmra.mrb[0].mxu0 %v1313
  %v2347 = vpop.f32.mrb[0].mxu0
  %v2348 = vadd.f32 %v292, %v2347
  %v2349 = vpop.f32.mrb[0].mxu0
  %v2350 = vpop.f32.mrb[0].mxu0
  %v2351 = vadd.f32 %v292, %v2350
  %v2352 = vpop.f32.mrb[0].mxu0
  %2353 = vmatprep.mubr.bf16.mxu0 0
  %2354 = vmatmul.mubr.bf16.gmra.mrb[0].mxu0 %v1316
  %v2355 = vpop.f32.mrb[0].mxu0
  %v2356 = vadd.f32 %v292, %v2355
  %v2357 = vpop.f32.mrb[0].mxu0
  %v2358 = vpop.f32.mrb[0].mxu0
  %v2359 = vadd.f32 %v292, %v2358
  %v2360 = vpop.f32.mrb[0].mxu0
  %2361 = vmatprep.mubr.bf16.mxu0 0
  %2362 = vmatmul.mubr.bf16.gmra.mrb[0].mxu0 %v1319
  %v2363 = vpop.f32.mrb[0].mxu0
  %v2364 = vadd.f32 %v292, %v2363
  %v2365 = vpop.f32.mrb[0].mxu0
  %v2366 = vpop.f32.mrb[0].mxu0
  %v2367 = vadd.f32 %v292, %v2366
  %v2368 = vpop.f32.mrb[0].mxu0
  %2369 = vmatprep.mubr.bf16.mxu0 0
  %2370 = vmatmul.mubr.bf16.gmra.mrb[0].mxu0 %v1322
  %v2371 = vpop.f32.mrb[0].mxu0
  %v2372 = vadd.f32 %v292, %v2371
  %v2373 = vpop.f32.mrb[0].mxu0
  %v2374 = vpop.f32.mrb[0].mxu0
  %v2375 = vadd.f32 %v292, %v2374
  %v2376 = vpop.f32.mrb[0].mxu0
  %2377 = vmatprep.mubr.bf16.mxu0 0
  %2378 = vmatmul.mubr.bf16.gmra.mrb[0].mxu0 %v1325
  %v2379 = vpop.f32.mrb[0].mxu0
  %v2380 = vadd.f32 %v292, %v2379
  %v2381 = vpop.f32.mrb[0].mxu0
  %v2382 = vpop.f32.mrb[0].mxu0
  %v2383 = vadd.f32 %v292, %v2382
  %v2384 = vpop.f32.mrb[0].mxu0
  %2385 = vmatprep.mubr.bf16.mxu0 0
  %2386 = vmatmul.mubr.bf16.gmra.mrb[0].mxu0 %v1328
  %v2387 = vpop.f32.mrb[0].mxu0
  %v2388 = vadd.f32 %v292, %v2387
  %v2389 = vpop.f32.mrb[0].mxu0
  %v2390 = vpop.f32.mrb[0].mxu0
  %v2391 = vadd.f32 %v292, %v2390
  %v2392 = vpop.f32.mrb[0].mxu0
  %2393 = vdwg.mxu0
  %v2394 = vmax.f32 %v1372, 0.0
  %v2395 = vmax.f32 %v1375, 0.0
  %v2396 = vmax.f32 %v1380, 0.0
  %v2397 = vmax.f32 %v1383, 0.0
  %v2398 = vmax.f32 %v1388, 0.0
  %v2399 = vmax.f32 %v1391, 0.0
  %v2400 = vmax.f32 %v1396, 0.0
  %v2401 = vmax.f32 %v1399, 0.0
  %v2402 = vmax.f32 %v1404, 0.0
  %v2403 = vmax.f32 %v1407, 0.0
  %v2404 = vmax.f32 %v1412, 0.0
  %v2405 = vmax.f32 %v1415, 0.0
  %v2406 = vmax.f32 %v1420, 0.0
  %v2407 = vmax.f32 %v1423, 0.0
  %v2408 = vmax.f32 %v1428, 0.0
  %v2409 = vmax.f32 %v1431, 0.0
  %v2410 = vmax.f32 %v1436, 0.0
  %v2411 = vmax.f32 %v1439, 0.0
  %v2412 = vmax.f32 %v1444, 0.0
  %v2413 = vmax.f32 %v1447, 0.0
  %v2414 = vmax.f32 %v1452, 0.0
  %v2415 = vmax.f32 %v1455, 0.0
  %v2416 = vmax.f32 %v1460, 0.0
  %v2417 = vmax.f32 %v1463, 0.0
  %v2418 = vmax.f32 %v1468, 0.0
  %v2419 = vmax.f32 %v1471, 0.0
  %v2420 = vmax.f32 %v1476, 0.0
  %v2421 = vmax.f32 %v1479, 0.0
  %v2422 = vmax.f32 %v1484, 0.0
  %v2423 = vmax.f32 %v1487, 0.0
  %v2424 = vmax.f32 %v1492, 0.0
  %v2425 = vmax.f32 %v1495, 0.0
  %v2426 = vmax.f32 %v1500, 0.0
  %v2427 = vmax.f32 %v1503, 0.0
  %v2428 = vmax.f32 %v1508, 0.0
  %v2429 = vmax.f32 %v1511, 0.0
  %v2430 = vmax.f32 %v1516, 0.0
  %v2431 = vmax.f32 %v1519, 0.0
  %v2432 = vmax.f32 %v1524, 0.0
  %v2433 = vmax.f32 %v1527, 0.0
  %v2434 = vmax.f32 %v1532, 0.0
  %v2435 = vmax.f32 %v1535, 0.0
  %v2436 = vmax.f32 %v1540, 0.0
  %v2437 = vmax.f32 %v1543, 0.0
  %v2438 = vmax.f32 %v1548, 0.0
  %v2439 = vmax.f32 %v1551, 0.0
  %v2440 = vmax.f32 %v1556, 0.0
  %v2441 = vmax.f32 %v1559, 0.0
  %v2442 = vmax.f32 %v1564, 0.0
  %v2443 = vmax.f32 %v1567, 0.0
  %v2444 = vmax.f32 %v1572, 0.0
  %v2445 = vmax.f32 %v1575, 0.0
  %v2446 = vmax.f32 %v1580, 0.0
  %v2447 = vmax.f32 %v1583, 0.0
  %v2448 = vmax.f32 %v1588, 0.0
  %v2449 = vmax.f32 %v1591, 0.0
  %v2450 = vmax.f32 %v1596, 0.0
  %v2451 = vmax.f32 %v1599, 0.0
  %v2452 = vmax.f32 %v1604, 0.0
  %v2453 = vmax.f32 %v1607, 0.0
  %v2454 = vmax.f32 %v1612, 0.0
  %v2455 = vmax.f32 %v1615, 0.0
  %v2456 = vmax.f32 %v1620, 0.0
  %v2457 = vmax.f32 %v1623, 0.0
  %v2458 = vmax.f32 %v1628, 0.0
  %v2459 = vmax.f32 %v1631, 0.0
  %v2460 = vmax.f32 %v1636, 0.0
  %v2461 = vmax.f32 %v1639, 0.0
  %v2462 = vmax.f32 %v1644, 0.0
  %v2463 = vmax.f32 %v1647, 0.0
  %v2464 = vmax.f32 %v1652, 0.0
  %v2465 = vmax.f32 %v1655, 0.0
  %v2466 = vmax.f32 %v1660, 0.0
  %v2467 = vmax.f32 %v1663, 0.0
  %v2468 = vmax.f32 %v1668, 0.0
  %v2469 = vmax.f32 %v1671, 0.0
  %v2470 = vmax.f32 %v1676, 0.0
  %v2471 = vmax.f32 %v1679, 0.0
  %v2472 = vmax.f32 %v1684, 0.0
  %v2473 = vmax.f32 %v1687, 0.0
  %v2474 = vmax.f32 %v1692, 0.0
  %v2475 = vmax.f32 %v1695, 0.0
  %v2476 = vmax.f32 %v1700, 0.0
  %v2477 = vmax.f32 %v1703, 0.0
  %v2478 = vmax.f32 %v1708, 0.0
  %v2479 = vmax.f32 %v1711, 0.0
  %v2480 = vmax.f32 %v1716, 0.0
  %v2481 = vmax.f32 %v1719, 0.0
  %v2482 = vmax.f32 %v1724, 0.0
  %v2483 = vmax.f32 %v1727, 0.0
  %v2484 = vmax.f32 %v1732, 0.0
  %v2485 = vmax.f32 %v1735, 0.0
  %v2486 = vmax.f32 %v1740, 0.0
  %v2487 = vmax.f32 %v1743, 0.0
  %v2488 = vmax.f32 %v1748, 0.0
  %v2489 = vmax.f32 %v1751, 0.0
  %v2490 = vmax.f32 %v1756, 0.0
  %v2491 = vmax.f32 %v1759, 0.0
  %v2492 = vmax.f32 %v1764, 0.0
  %v2493 = vmax.f32 %v1767, 0.0
  %v2494 = vmax.f32 %v1772, 0.0
  %v2495 = vmax.f32 %v1775, 0.0
  %v2496 = vmax.f32 %v1780, 0.0
  %v2497 = vmax.f32 %v1783, 0.0
  %v2498 = vmax.f32 %v1788, 0.0
  %v2499 = vmax.f32 %v1791, 0.0
  %v2500 = vmax.f32 %v1796, 0.0
  %v2501 = vmax.f32 %v1799, 0.0
  %v2502 = vmax.f32 %v1804, 0.0
  %v2503 = vmax.f32 %v1807, 0.0
  %v2504 = vmax.f32 %v1812, 0.0
  %v2505 = vmax.f32 %v1815, 0.0
  %v2506 = vmax.f32 %v1820, 0.0
  %v2507 = vmax.f32 %v1823, 0.0
  %v2508 = vmax.f32 %v1828, 0.0
  %v2509 = vmax.f32 %v1831, 0.0
  %v2510 = vmax.f32 %v1836, 0.0
  %v2511 = vmax.f32 %v1839, 0.0
  %v2512 = vmax.f32 %v1844, 0.0
  %v2513 = vmax.f32 %v1847, 0.0
  %v2514 = vmax.f32 %v1852, 0.0
  %v2515 = vmax.f32 %v1855, 0.0
  %v2516 = vmax.f32 %v1860, 0.0
  %v2517 = vmax.f32 %v1863, 0.0
  %v2518 = vmax.f32 %v1868, 0.0
  %v2519 = vmax.f32 %v1871, 0.0
  %v2520 = vmax.f32 %v1876, 0.0
  %v2521 = vmax.f32 %v1879, 0.0
  %v2522 = vmax.f32 %v1884, 0.0
  %v2523 = vmax.f32 %v1887, 0.0
  %v2524 = vmax.f32 %v1892, 0.0
  %v2525 = vmax.f32 %v1895, 0.0
  %v2526 = vmax.f32 %v1900, 0.0
  %v2527 = vmax.f32 %v1903, 0.0
  %v2528 = vmax.f32 %v1908, 0.0
  %v2529 = vmax.f32 %v1911, 0.0
  %v2530 = vmax.f32 %v1916, 0.0
  %v2531 = vmax.f32 %v1919, 0.0
  %v2532 = vmax.f32 %v1924, 0.0
  %v2533 = vmax.f32 %v1927, 0.0
  %v2534 = vmax.f32 %v1932, 0.0
  %v2535 = vmax.f32 %v1935, 0.0
  %v2536 = vmax.f32 %v1940, 0.0
  %v2537 = vmax.f32 %v1943, 0.0
  %v2538 = vmax.f32 %v1948, 0.0
  %v2539 = vmax.f32 %v1951, 0.0
  %v2540 = vmax.f32 %v1956, 0.0
  %v2541 = vmax.f32 %v1959, 0.0
  %v2542 = vmax.f32 %v1964, 0.0
  %v2543 = vmax.f32 %v1967, 0.0
  %v2544 = vmax.f32 %v1972, 0.0
  %v2545 = vmax.f32 %v1975, 0.0
  %v2546 = vmax.f32 %v1980, 0.0
  %v2547 = vmax.f32 %v1983, 0.0
  %v2548 = vmax.f32 %v1988, 0.0
  %v2549 = vmax.f32 %v1991, 0.0
  %v2550 = vmax.f32 %v1996, 0.0
  %v2551 = vmax.f32 %v1999, 0.0
  %v2552 = vmax.f32 %v2004, 0.0
  %v2553 = vmax.f32 %v2007, 0.0
  %v2554 = vmax.f32 %v2012, 0.0
  %v2555 = vmax.f32 %v2015, 0.0
  %v2556 = vmax.f32 %v2020, 0.0
  %v2557 = vmax.f32 %v2023, 0.0
  %v2558 = vmax.f32 %v2028, 0.0
  %v2559 = vmax.f32 %v2031, 0.0
  %v2560 = vmax.f32 %v2036, 0.0
  %v2561 = vmax.f32 %v2039, 0.0
  %v2562 = vmax.f32 %v2044, 0.0
  %v2563 = vmax.f32 %v2047, 0.0
  %v2564 = vmax.f32 %v2052, 0.0
  %v2565 = vmax.f32 %v2055, 0.0
  %v2566 = vmax.f32 %v2060, 0.0
  %v2567 = vmax.f32 %v2063, 0.0
  %v2568 = vmax.f32 %v2068, 0.0
  %v2569 = vmax.f32 %v2071, 0.0
  %v2570 = vmax.f32 %v2076, 0.0
  %v2571 = vmax.f32 %v2079, 0.0
  %v2572 = vmax.f32 %v2084, 0.0
  %v2573 = vmax.f32 %v2087, 0.0
  %v2574 = vmax.f32 %v2092, 0.0
  %v2575 = vmax.f32 %v2095, 0.0
  %v2576 = vmax.f32 %v2100, 0.0
  %v2577 = vmax.f32 %v2103, 0.0
  %v2578 = vmax.f32 %v2108, 0.0
  %v2579 = vmax.f32 %v2111, 0.0
  %v2580 = vmax.f32 %v2116, 0.0
  %v2581 = vmax.f32 %v2119, 0.0
  %v2582 = vmax.f32 %v2124, 0.0
  %v2583 = vmax.f32 %v2127, 0.0
  %v2584 = vmax.f32 %v2132, 0.0
  %v2585 = vmax.f32 %v2135, 0.0
  %v2586 = vmax.f32 %v2140, 0.0
  %v2587 = vmax.f32 %v2143, 0.0
  %v2588 = vmax.f32 %v2148, 0.0
  %v2589 = vmax.f32 %v2151, 0.0
  %v2590 = vmax.f32 %v2156, 0.0
  %v2591 = vmax.f32 %v2159, 0.0
  %v2592 = vmax.f32 %v2164, 0.0
  %v2593 = vmax.f32 %v2167, 0.0
  %v2594 = vmax.f32 %v2172, 0.0
  %v2595 = vmax.f32 %v2175, 0.0
  %v2596 = vmax.f32 %v2180, 0.0
  %v2597 = vmax.f32 %v2183, 0.0
  %v2598 = vmax.f32 %v2188, 0.0
  %v2599 = vmax.f32 %v2191, 0.0
  %v2600 = vmax.f32 %v2196, 0.0
  %v2601 = vmax.f32 %v2199, 0.0
  %v2602 = vmax.f32 %v2204, 0.0
  %v2603 = vmax.f32 %v2207, 0.0
  %v2604 = vmax.f32 %v2212, 0.0
  %v2605 = vmax.f32 %v2215, 0.0
  %v2606 = vmax.f32 %v2220, 0.0
  %v2607 = vmax.f32 %v2223, 0.0
  %v2608 = vmax.f32 %v2228, 0.0
  %v2609 = vmax.f32 %v2231, 0.0
  %v2610 = vmax.f32 %v2236, 0.0
  %v2611 = vmax.f32 %v2239, 0.0
  %v2612 = vmax.f32 %v2244, 0.0
  %v2613 = vmax.f32 %v2247, 0.0
  %v2614 = vmax.f32 %v2252, 0.0
  %v2615 = vmax.f32 %v2255, 0.0
  %v2616 = vmax.f32 %v2260, 0.0
  %v2617 = vmax.f32 %v2263, 0.0
  %v2618 = vmax.f32 %v2268, 0.0
  %v2619 = vmax.f32 %v2271, 0.0
  %v2620 = vmax.f32 %v2276, 0.0
  %v2621 = vmax.f32 %v2279, 0.0
  %v2622 = vmax.f32 %v2284, 0.0
  %v2623 = vmax.f32 %v2287, 0.0
  %v2624 = vmax.f32 %v2292, 0.0
  %v2625 = vmax.f32 %v2295, 0.0
  %v2626 = vmax.f32 %v2300, 0.0
  %v2627 = vmax.f32 %v2303, 0.0
  %v2628 = vmax.f32 %v2308, 0.0
  %v2629 = vmax.f32 %v2311, 0.0
  %v2630 = vmax.f32 %v2316, 0.0
  %v2631 = vmax.f32 %v2319, 0.0
  %v2632 = vmax.f32 %v2324, 0.0
  %v2633 = vmax.f32 %v2327, 0.0
  %v2634 = vmax.f32 %v2332, 0.0
  %v2635 = vmax.f32 %v2335, 0.0
  %v2636 = vmax.f32 %v2340, 0.0
  %v2637 = vmax.f32 %v2343, 0.0
  %v2638 = vmax.f32 %v2348, 0.0
  %v2639 = vmax.f32 %v2351, 0.0
  %v2640 = vmax.f32 %v2356, 0.0
  %v2641 = vmax.f32 %v2359, 0.0
  %v2642 = vmax.f32 %v2364, 0.0
  %v2643 = vmax.f32 %v2367, 0.0
  %v2644 = vmax.f32 %v2372, 0.0
  %v2645 = vmax.f32 %v2375, 0.0
  %v2646 = vmax.f32 %v2380, 0.0
  %v2647 = vmax.f32 %v2383, 0.0
  %v2648 = vmax.f32 %v2388, 0.0
  %v2649 = vmax.f32 %v2391, 0.0
  %v2650 = vadd.f32 %v2394, %v2395
  %v2651 = vadd.f32 %v2650, %v2396
  %v2652 = vadd.f32 %v2651, %v2397
  %v2653 = vadd.f32 %v2652, %v2398
  %v2654 = vadd.f32 %v2653, %v2399
  %v2655 = vadd.f32 %v2654, %v2400
  %v2656 = vadd.f32 %v2655, %v2401
  %v2657 = vadd.f32 %v2656, %v2402
  %v2658 = vadd.f32 %v2657, %v2403
  %v2659 = vadd.f32 %v2658, %v2404
  %v2660 = vadd.f32 %v2659, %v2405
  %v2661 = vadd.f32 %v2660, %v2406
  %v2662 = vadd.f32 %v2661, %v2407
  %v2663 = vadd.f32 %v2662, %v2408
  %v2664 = vadd.f32 %v2663, %v2409
  %v2665 = vadd.f32 %v2664, %v2410
  %v2666 = vadd.f32 %v2665, %v2411
  %v2667 = vadd.f32 %v2666, %v2412
  %v2668 = vadd.f32 %v2667, %v2413
  %v2669 = vadd.f32 %v2668, %v2414
  %v2670 = vadd.f32 %v2669, %v2415
  %v2671 = vadd.f32 %v2670, %v2416
  %v2672 = vadd.f32 %v2671, %v2417
  %v2673 = vadd.f32 %v2672, %v2418
  %v2674 = vadd.f32 %v2673, %v2419
  %v2675 = vadd.f32 %v2674, %v2420
  %v2676 = vadd.f32 %v2675, %v2421
  %v2677 = vadd.f32 %v2676, %v2422
  %v2678 = vadd.f32 %v2677, %v2423
  %v2679 = vadd.f32 %v2678, %v2424
  %v2680 = vadd.f32 %v2679, %v2425
  %v2681 = vrot.slane %v2680, 4
  %v2682 = vadd.f32 %v2680, %v2681
  %v2683 = vrot.slane %v2682, 2
  %v2684 = vadd.f32 %v2682, %v2683
  %v2685 = vrot.slane %v2684, 1
  %v2686 = vadd.f32 %v2684, %v2685
  %v2687 = vadd.f32 %v2426, %v2427
  %v2688 = vadd.f32 %v2687, %v2428
  %v2689 = vadd.f32 %v2688, %v2429
  %v2690 = vadd.f32 %v2689, %v2430
  %v2691 = vadd.f32 %v2690, %v2431
  %v2692 = vadd.f32 %v2691, %v2432
  %v2693 = vadd.f32 %v2692, %v2433
  %v2694 = vadd.f32 %v2693, %v2434
  %v2695 = vadd.f32 %v2694, %v2435
  %v2696 = vadd.f32 %v2695, %v2436
  %v2697 = vadd.f32 %v2696, %v2437
  %v2698 = vadd.f32 %v2697, %v2438
  %v2699 = vadd.f32 %v2698, %v2439
  %v2700 = vadd.f32 %v2699, %v2440
  %v2701 = vadd.f32 %v2700, %v2441
  %v2702 = vadd.f32 %v2701, %v2442
  %v2703 = vadd.f32 %v2702, %v2443
  %v2704 = vadd.f32 %v2703, %v2444
  %v2705 = vadd.f32 %v2704, %v2445
  %v2706 = vadd.f32 %v2705, %v2446
  %v2707 = vadd.f32 %v2706, %v2447
  %v2708 = vadd.f32 %v2707, %v2448
  %v2709 = vadd.f32 %v2708, %v2449
  %v2710 = vadd.f32 %v2709, %v2450
  %v2711 = vadd.f32 %v2710, %v2451
  %v2712 = vadd.f32 %v2711, %v2452
  %v2713 = vadd.f32 %v2712, %v2453
  %v2714 = vadd.f32 %v2713, %v2454
  %v2715 = vadd.f32 %v2714, %v2455
  %v2716 = vadd.f32 %v2715, %v2456
  %v2717 = vadd.f32 %v2716, %v2457
  %v2718 = vrot.slane %v2717, 4
  %v2719 = vadd.f32 %v2717, %v2718
  %v2720 = vrot.slane %v2719, 2
  %v2721 = vadd.f32 %v2719, %v2720
  %v2722 = vrot.slane %v2721, 1
  %v2723 = vadd.f32 %v2721, %v2722
  %v2724 = vadd.f32 %v2458, %v2459
  %v2725 = vadd.f32 %v2724, %v2460
  %v2726 = vadd.f32 %v2725, %v2461
  %v2727 = vadd.f32 %v2726, %v2462
  %v2728 = vadd.f32 %v2727, %v2463
  %v2729 = vadd.f32 %v2728, %v2464
  %v2730 = vadd.f32 %v2729, %v2465
  %v2731 = vadd.f32 %v2730, %v2466
  %v2732 = vadd.f32 %v2731, %v2467
  %v2733 = vadd.f32 %v2732, %v2468
  %v2734 = vadd.f32 %v2733, %v2469
  %v2735 = vadd.f32 %v2734, %v2470
  %v2736 = vadd.f32 %v2735, %v2471
  %v2737 = vadd.f32 %v2736, %v2472
  %v2738 = vadd.f32 %v2737, %v2473
  %v2739 = vadd.f32 %v2738, %v2474
  %v2740 = vadd.f32 %v2739, %v2475
  %v2741 = vadd.f32 %v2740, %v2476
  %v2742 = vadd.f32 %v2741, %v2477
  %v2743 = vadd.f32 %v2742, %v2478
  %v2744 = vadd.f32 %v2743, %v2479
  %v2745 = vadd.f32 %v2744, %v2480
  %v2746 = vadd.f32 %v2745, %v2481
  %v2747 = vadd.f32 %v2746, %v2482
  %v2748 = vadd.f32 %v2747, %v2483
  %v2749 = vadd.f32 %v2748, %v2484
  %v2750 = vadd.f32 %v2749, %v2485
  %v2751 = vadd.f32 %v2750, %v2486
  %v2752 = vadd.f32 %v2751, %v2487
  %v2753 = vadd.f32 %v2752, %v2488
  %v2754 = vadd.f32 %v2753, %v2489
  %v2755 = vrot.slane %v2754, 4
  %v2756 = vadd.f32 %v2754, %v2755
  %v2757 = vrot.slane %v2756, 2
  %v2758 = vadd.f32 %v2756, %v2757
  %v2759 = vrot.slane %v2758, 1
  %v2760 = vadd.f32 %v2758, %v2759
  %v2761 = vadd.f32 %v2490, %v2491
  %v2762 = vadd.f32 %v2761, %v2492
  %v2763 = vadd.f32 %v2762, %v2493
  %v2764 = vadd.f32 %v2763, %v2494
  %v2765 = vadd.f32 %v2764, %v2495
  %v2766 = vadd.f32 %v2765, %v2496
  %v2767 = vadd.f32 %v2766, %v2497
  %v2768 = vadd.f32 %v2767, %v2498
  %v2769 = vadd.f32 %v2768, %v2499
  %v2770 = vadd.f32 %v2769, %v2500
  %v2771 = vadd.f32 %v2770, %v2501
  %v2772 = vadd.f32 %v2771, %v2502
  %v2773 = vadd.f32 %v2772, %v2503
  %v2774 = vadd.f32 %v2773, %v2504
  %v2775 = vadd.f32 %v2774, %v2505
  %v2776 = vadd.f32 %v2775, %v2506
  %v2777 = vadd.f32 %v2776, %v2507
  %v2778 = vadd.f32 %v2777, %v2508
  %v2779 = vadd.f32 %v2778, %v2509
  %v2780 = vadd.f32 %v2779, %v2510
  %v2781 = vadd.f32 %v2780, %v2511
  %v2782 = vadd.f32 %v2781, %v2512
  %v2783 = vadd.f32 %v2782, %v2513
  %v2784 = vadd.f32 %v2783, %v2514
  %v2785 = vadd.f32 %v2784, %v2515
  %v2786 = vadd.f32 %v2785, %v2516
  %v2787 = vadd.f32 %v2786, %v2517
  %v2788 = vadd.f32 %v2787, %v2518
  %v2789 = vadd.f32 %v2788, %v2519
  %v2790 = vadd.f32 %v2789, %v2520
  %v2791 = vadd.f32 %v2790, %v2521
  %v2792 = vrot.slane %v2791, 4
  %v2793 = vadd.f32 %v2791, %v2792
  %v2794 = vrot.slane %v2793, 2
  %v2795 = vadd.f32 %v2793, %v2794
  %v2796 = vrot.slane %v2795, 1
  %v2797 = vadd.f32 %v2795, %v2796
  %v2798 = vadd.f32 %v2522, %v2523
  %v2799 = vadd.f32 %v2798, %v2524
  %v2800 = vadd.f32 %v2799, %v2525
  %v2801 = vadd.f32 %v2800, %v2526
  %v2802 = vadd.f32 %v2801, %v2527
  %v2803 = vadd.f32 %v2802, %v2528
  %v2804 = vadd.f32 %v2803, %v2529
  %v2805 = vadd.f32 %v2804, %v2530
  %v2806 = vadd.f32 %v2805, %v2531
  %v2807 = vadd.f32 %v2806, %v2532
  %v2808 = vadd.f32 %v2807, %v2533
  %v2809 = vadd.f32 %v2808, %v2534
  %v2810 = vadd.f32 %v2809, %v2535
  %v2811 = vadd.f32 %v2810, %v2536
  %v2812 = vadd.f32 %v2811, %v2537
  %v2813 = vadd.f32 %v2812, %v2538
  %v2814 = vadd.f32 %v2813, %v2539
  %v2815 = vadd.f32 %v2814, %v2540
  %v2816 = vadd.f32 %v2815, %v2541
  %v2817 = vadd.f32 %v2816, %v2542
  %v2818 = vadd.f32 %v2817, %v2543
  %v2819 = vadd.f32 %v2818, %v2544
  %v2820 = vadd.f32 %v2819, %v2545
  %v2821 = vadd.f32 %v2820, %v2546
  %v2822 = vadd.f32 %v2821, %v2547
  %v2823 = vadd.f32 %v2822, %v2548
  %v2824 = vadd.f32 %v2823, %v2549
  %v2825 = vadd.f32 %v2824, %v2550
  %v2826 = vadd.f32 %v2825, %v2551
  %v2827 = vadd.f32 %v2826, %v2552
  %v2828 = vadd.f32 %v2827, %v2553
  %v2829 = vrot.slane %v2828, 4
  %v2830 = vadd.f32 %v2828, %v2829
  %v2831 = vrot.slane %v2830, 2
  %v2832 = vadd.f32 %v2830, %v2831
  %v2833 = vrot.slane %v2832, 1
  %v2834 = vadd.f32 %v2832, %v2833
  %v2835 = vadd.f32 %v2554, %v2555
  %v2836 = vadd.f32 %v2835, %v2556
  %v2837 = vadd.f32 %v2836, %v2557
  %v2838 = vadd.f32 %v2837, %v2558
  %v2839 = vadd.f32 %v2838, %v2559
  %v2840 = vadd.f32 %v2839, %v2560
  %v2841 = vadd.f32 %v2840, %v2561
  %v2842 = vadd.f32 %v2841, %v2562
  %v2843 = vadd.f32 %v2842, %v2563
  %v2844 = vadd.f32 %v2843, %v2564
  %v2845 = vadd.f32 %v2844, %v2565
  %v2846 = vadd.f32 %v2845, %v2566
  %v2847 = vadd.f32 %v2846, %v2567
  %v2848 = vadd.f32 %v2847, %v2568
  %v2849 = vadd.f32 %v2848, %v2569
  %v2850 = vadd.f32 %v2849, %v2570
  %v2851 = vadd.f32 %v2850, %v2571
  %v2852 = vadd.f32 %v2851, %v2572
  %v2853 = vadd.f32 %v2852, %v2573
  %v2854 = vadd.f32 %v2853, %v2574
  %v2855 = vadd.f32 %v2854, %v2575
  %v2856 = vadd.f32 %v2855, %v2576
  %v2857 = vadd.f32 %v2856, %v2577
  %v2858 = vadd.f32 %v2857, %v2578
  %v2859 = vadd.f32 %v2858, %v2579
  %v2860 = vadd.f32 %v2859, %v2580
  %v2861 = vadd.f32 %v2860, %v2581
  %v2862 = vadd.f32 %v2861, %v2582
  %v2863 = vadd.f32 %v2862, %v2583
  %v2864 = vadd.f32 %v2863, %v2584
  %v2865 = vadd.f32 %v2864, %v2585
  %v2866 = vrot.slane %v2865, 4
  %v2867 = vadd.f32 %v2865, %v2866
  %v2868 = vrot.slane %v2867, 2
  %v2869 = vadd.f32 %v2867, %v2868
  %v2870 = vrot.slane %v2869, 1
  %v2871 = vadd.f32 %v2869, %v2870
  %v2872 = vadd.f32 %v2586, %v2587
  %v2873 = vadd.f32 %v2872, %v2588
  %v2874 = vadd.f32 %v2873, %v2589
  %v2875 = vadd.f32 %v2874, %v2590
  %v2876 = vadd.f32 %v2875, %v2591
  %v2877 = vadd.f32 %v2876, %v2592
  %v2878 = vadd.f32 %v2877, %v2593
  %v2879 = vadd.f32 %v2878, %v2594
  %v2880 = vadd.f32 %v2879, %v2595
  %v2881 = vadd.f32 %v2880, %v2596
  %v2882 = vadd.f32 %v2881, %v2597
  %v2883 = vadd.f32 %v2882, %v2598
  %v2884 = vadd.f32 %v2883, %v2599
  %v2885 = vadd.f32 %v2884, %v2600
  %v2886 = vadd.f32 %v2885, %v2601
  %v2887 = vadd.f32 %v2886, %v2602
  %v2888 = vadd.f32 %v2887, %v2603
  %v2889 = vadd.f32 %v2888, %v2604
  %v2890 = vadd.f32 %v2889, %v2605
  %v2891 = vadd.f32 %v2890, %v2606
  %v2892 = vadd.f32 %v2891, %v2607
  %v2893 = vadd.f32 %v2892, %v2608
  %v2894 = vadd.f32 %v2893, %v2609
  %v2895 = vadd.f32 %v2894, %v2610
  %v2896 = vadd.f32 %v2895, %v2611
  %v2897 = vadd.f32 %v2896, %v2612
  %v2898 = vadd.f32 %v2897, %v2613
  %v2899 = vadd.f32 %v2898, %v2614
  %v2900 = vadd.f32 %v2899, %v2615
  %v2901 = vadd.f32 %v2900, %v2616
  %v2902 = vadd.f32 %v2901, %v2617
  %v2903 = vrot.slane %v2902, 4
  %v2904 = vadd.f32 %v2902, %v2903
  %v2905 = vrot.slane %v2904, 2
  %v2906 = vadd.f32 %v2904, %v2905
  %v2907 = vrot.slane %v2906, 1
  %v2908 = vadd.f32 %v2906, %v2907
  %v2909 = vadd.f32 %v2618, %v2619
  %v2910 = vadd.f32 %v2909, %v2620
  %v2911 = vadd.f32 %v2910, %v2621
  %v2912 = vadd.f32 %v2911, %v2622
  %v2913 = vadd.f32 %v2912, %v2623
  %v2914 = vadd.f32 %v2913, %v2624
  %v2915 = vadd.f32 %v2914, %v2625
  %v2916 = vadd.f32 %v2915, %v2626
  %v2917 = vadd.f32 %v2916, %v2627
  %v2918 = vadd.f32 %v2917, %v2628
  %v2919 = vadd.f32 %v2918, %v2629
  %v2920 = vadd.f32 %v2919, %v2630
  %v2921 = vadd.f32 %v2920, %v2631
  %v2922 = vadd.f32 %v2921, %v2632
  %v2923 = vadd.f32 %v2922, %v2633
  %v2924 = vadd.f32 %v2923, %v2634
  %v2925 = vadd.f32 %v2924, %v2635
  %v2926 = vadd.f32 %v2925, %v2636
  %v2927 = vadd.f32 %v2926, %v2637
  %v2928 = vadd.f32 %v2927, %v2638
  %v2929 = vadd.f32 %v2928, %v2639
  %v2930 = vadd.f32 %v2929, %v2640
  %v2931 = vadd.f32 %v2930, %v2641
  %v2932 = vadd.f32 %v2931, %v2642
  %v2933 = vadd.f32 %v2932, %v2643
  %v2934 = vadd.f32 %v2933, %v2644
  %v2935 = vadd.f32 %v2934, %v2645
  %v2936 = vadd.f32 %v2935, %v2646
  %v2937 = vadd.f32 %v2936, %v2647
  %v2938 = vadd.f32 %v2937, %v2648
  %v2939 = vadd.f32 %v2938, %v2649
  %v2940 = vrot.slane %v2939, 4
  %v2941 = vadd.f32 %v2939, %v2940
  %v2942 = vrot.slane %v2941, 2
  %v2943 = vadd.f32 %v2941, %v2942
  %v2944 = vrot.slane %v2943, 1
  %v2945 = vadd.f32 %v2943, %v2944
  %v2946 = vpack.c.bf16 %v2686, %v2686
  %v2947 = vpack.c.bf16 %v2723, %v2723
  %v2948 = vpack.c.bf16 %v2760, %v2760
  %v2949 = vpack.c.bf16 %v2797, %v2797
  %v2950 = vpack.c.bf16 %v2834, %v2834
  %v2951 = vpack.c.bf16 %v2871, %v2871
  %v2952 = vpack.c.bf16 %v2908, %v2908
  %v2953 = vpack.c.bf16 %v2945, %v2945
  %v2954 = vld [vmem:[%s3] sm:$0xff]
  %v2955 = vld [vmem:[%s3 + $0x8] sm:$0xff]
  %v2956 = vld [vmem:[%s3 + $0x10] sm:$0xff]
  %v2957 = vld [vmem:[%s3 + $0x18] sm:$0xff]
  %v2958 = vld [vmem:[%s3 + $0x20] sm:$0xff]
  %v2959 = vld [vmem:[%s3 + $0x28] sm:$0xff]
  %v2960 = vld [vmem:[%s3 + $0x30] sm:$0xff]
  %v2961 = vld [vmem:[%s3 + $0x38] sm:$0xff]
  %v2962 = vld [vmem:[%s3 + $0x40] sm:$0xff]
  %v2963 = vld [vmem:[%s3 + $0x48] sm:$0xff]
  %v2964 = vld [vmem:[%s3 + $0x50] sm:$0xff]
  %v2965 = vld [vmem:[%s3 + $0x58] sm:$0xff]
  %v2966 = vld [vmem:[%s3 + $0x60] sm:$0xff]
  %v2967 = vld [vmem:[%s3 + $0x68] sm:$0xff]
  %v2968 = vld [vmem:[%s3 + $0x70] sm:$0xff]
  %v2969 = vld [vmem:[%s3 + $0x78] sm:$0xff]
  %v2970 = vld [vmem:[%s3 + $0x80] sm:$0xff]
  %v2971 = vld [vmem:[%s3 + $0x88] sm:$0xff]
  %v2972 = vld [vmem:[%s3 + $0x90] sm:$0xff]
  %v2973 = vld [vmem:[%s3 + $0x98] sm:$0xff]
  %v2974 = vld [vmem:[%s3 + $0xa0] sm:$0xff]
  %v2975 = vld [vmem:[%s3 + $0xa8] sm:$0xff]
  %v2976 = vld [vmem:[%s3 + $0xb0] sm:$0xff]
  %v2977 = vld [vmem:[%s3 + $0xb8] sm:$0xff]
  %v2978 = vld [vmem:[%s3 + $0xc0] sm:$0xff]
  %v2979 = vld [vmem:[%s3 + $0xc8] sm:$0xff]
  %v2980 = vld [vmem:[%s3 + $0xd0] sm:$0xff]
  %v2981 = vld [vmem:[%s3 + $0xd8] sm:$0xff]
  %v2982 = vld [vmem:[%s3 + $0xe0] sm:$0xff]
  %v2983 = vld [vmem:[%s3 + $0xe8] sm:$0xff]
  %v2984 = vld [vmem:[%s3 + $0xf0] sm:$0xff]
  %v2985 = vld [vmem:[%s3 + $0xf8] sm:$0xff]
  %v2986 = vld [vmem:[%s4] sm:$0xf]
  %v2988 = vlaneseq
  %v2989 = vshrl.u32 %v2988, 7
  %v2990 = vsub.s32 0, %v2989
  %v2991 = vrot.slane %v2986, %v2990
  %v2992 = vlaneseq
  %v2993 = vshrl.u32 %v2992, 7
  %v2994 = vsub.s32 1, %v2993
  %v2995 = vrot.slane %v2986, %v2994
  %v2996 = vlaneseq
  %v2997 = vshrl.u32 %v2996, 7
  %v2998 = vsub.s32 2, %v2997
  %v2999 = vrot.slane %v2986, %v2998
  %v3000 = vlaneseq
  %v3001 = vshrl.u32 %v3000, 7
  %v3002 = vsub.s32 3, %v3001
  %v3003 = vrot.slane %v2986, %v3002
  %v3016 = vunpack.c.l.b16 %v2946
  %v3017 = vunpack.c.l.b16 %v2947
  %v3018 = vunpack.c.l.b16 %v2948
  %v3019 = vunpack.c.l.b16 %v2949
  %v3020 = vunpack.c.l.b16 %v2950
  %v3021 = vunpack.c.l.b16 %v2951
  %v3022 = vunpack.c.l.b16 %v2952
  %v3023 = vunpack.c.l.b16 %v2953
  %vm3024 = vcmask 1041409
  %v3025 = vsel %vm3024, %v3017, %v3016
  %vm3026 = vcmask 1042434
  %v3027 = vsel %vm3026, %v3018, %v3025
  %vm3028 = vcmask 1043459
  %v3029 = vsel %vm3028, %v3019, %v3027
  %vm3030 = vcmask 1044484
  %v3031 = vsel %vm3030, %v3020, %v3029
  %vm3032 = vcmask 1045509
  %v3033 = vsel %vm3032, %v3021, %v3031
  %vm3034 = vcmask 1046534
  %v3035 = vsel %vm3034, %v3022, %v3033
  %vm3036 = vcmask 1047559
  %v3037 = vsel %vm3036, %v3023, %v3035
  %v3038 = vpack.c.b16 %v3037, %v3037
  %v3072 = vunpack.c.l.b16 %v2954
  %v3073 = vunpack.c.h.b16 %v2954
  %v3074 = vunpack.c.l.b16 %v2955
  %v3075 = vunpack.c.h.b16 %v2955
  %v3076 = vunpack.c.l.b16 %v2956
  %v3077 = vunpack.c.h.b16 %v2956
  %v3078 = vunpack.c.l.b16 %v2957
  %v3079 = vunpack.c.h.b16 %v2957
  %v3080 = vunpack.c.l.b16 %v2958
  %v3081 = vunpack.c.h.b16 %v2958
  %v3082 = vunpack.c.l.b16 %v2959
  %v3083 = vunpack.c.h.b16 %v2959
  %v3084 = vunpack.c.l.b16 %v2960
  %v3085 = vunpack.c.h.b16 %v2960
  %v3086 = vunpack.c.l.b16 %v2961
  %v3087 = vunpack.c.h.b16 %v2961
  %v3088 = vunpack.c.l.b16 %v2962
  %v3089 = vunpack.c.h.b16 %v2962
  %v3090 = vunpack.c.l.b16 %v2963
  %v3091 = vunpack.c.h.b16 %v2963
  %v3092 = vunpack.c.l.b16 %v2964
  %v3093 = vunpack.c.h.b16 %v2964
  %v3094 = vunpack.c.l.b16 %v2965
  %v3095 = vunpack.c.h.b16 %v2965
  %v3096 = vunpack.c.l.b16 %v2966
  %v3097 = vunpack.c.h.b16 %v2966
  %v3098 = vunpack.c.l.b16 %v2967
  %v3099 = vunpack.c.h.b16 %v2967
  %v3100 = vunpack.c.l.b16 %v2968
  %v3101 = vunpack.c.h.b16 %v2968
  %v3102 = vunpack.c.l.b16 %v2969
  %v3103 = vunpack.c.h.b16 %v2969
  %v3104 = vunpack.c.l.b16 %v2970
  %v3105 = vunpack.c.h.b16 %v2970
  %v3106 = vunpack.c.l.b16 %v2971
  %v3107 = vunpack.c.h.b16 %v2971
  %v3108 = vunpack.c.l.b16 %v2972
  %v3109 = vunpack.c.h.b16 %v2972
  %v3110 = vunpack.c.l.b16 %v2973
  %v3111 = vunpack.c.h.b16 %v2973
  %v3112 = vunpack.c.l.b16 %v2974
  %v3113 = vunpack.c.h.b16 %v2974
  %v3114 = vunpack.c.l.b16 %v2975
  %v3115 = vunpack.c.h.b16 %v2975
  %v3116 = vunpack.c.l.b16 %v2976
  %v3117 = vunpack.c.h.b16 %v2976
  %v3118 = vunpack.c.l.b16 %v2977
  %v3119 = vunpack.c.h.b16 %v2977
  %v3120 = vunpack.c.l.b16 %v2978
  %v3121 = vunpack.c.h.b16 %v2978
  %v3122 = vunpack.c.l.b16 %v2979
  %v3123 = vunpack.c.h.b16 %v2979
  %v3124 = vunpack.c.l.b16 %v2980
  %v3125 = vunpack.c.h.b16 %v2980
  %v3126 = vunpack.c.l.b16 %v2981
  %v3127 = vunpack.c.h.b16 %v2981
  %v3128 = vunpack.c.l.b16 %v2982
  %v3129 = vunpack.c.h.b16 %v2982
  %v3130 = vunpack.c.l.b16 %v2983
  %v3131 = vunpack.c.h.b16 %v2983
  %v3132 = vunpack.c.l.b16 %v2984
  %v3133 = vunpack.c.h.b16 %v2984
  %v3134 = vunpack.c.l.b16 %v2985
  %v3135 = vunpack.c.h.b16 %v2985
  %v3136 = vpack.c.b16 %v3076, %v3072
  %v3137 = vpack.c.b16 %v3077, %v3073
  %v3138 = vpack.c.b16 %v3078, %v3074
  %v3139 = vpack.c.b16 %v3079, %v3075
  %v3140 = vpack.c.b16 %v3084, %v3080
  %v3141 = vpack.c.b16 %v3085, %v3081
  %v3142 = vpack.c.b16 %v3086, %v3082
  %v3143 = vpack.c.b16 %v3087, %v3083
  %v3144 = vpack.c.b16 %v3092, %v3088
  %v3145 = vpack.c.b16 %v3093, %v3089
  %v3146 = vpack.c.b16 %v3094, %v3090
  %v3147 = vpack.c.b16 %v3095, %v3091
  %v3148 = vpack.c.b16 %v3100, %v3096
  %v3149 = vpack.c.b16 %v3101, %v3097
  %v3150 = vpack.c.b16 %v3102, %v3098
  %v3151 = vpack.c.b16 %v3103, %v3099
  %v3152 = vpack.c.b16 %v3108, %v3104
  %v3153 = vpack.c.b16 %v3109, %v3105
  %v3154 = vpack.c.b16 %v3110, %v3106
  %v3155 = vpack.c.b16 %v3111, %v3107
  %v3156 = vpack.c.b16 %v3116, %v3112
  %v3157 = vpack.c.b16 %v3117, %v3113
  %v3158 = vpack.c.b16 %v3118, %v3114
  %v3159 = vpack.c.b16 %v3119, %v3115
  %v3160 = vpack.c.b16 %v3124, %v3120
  %v3161 = vpack.c.b16 %v3125, %v3121
  %v3162 = vpack.c.b16 %v3126, %v3122
  %v3163 = vpack.c.b16 %v3127, %v3123
  %v3164 = vpack.c.b16 %v3132, %v3128
  %v3165 = vpack.c.b16 %v3133, %v3129
  %v3166 = vpack.c.b16 %v3134, %v3130
  %v3167 = vpack.c.b16 %v3135, %v3131
  %3200 = vmatprep.subr.bf16.mxu0 %v3137
  %3201 = vmatpush1.bf16.msra.mxu0 %v3136
  %3202 = vmatprep.subr.bf16.mxu0 %v3141
  %3203 = vmatpush1.bf16.msra.mxu0 %v3140
  %3204 = vmatprep.subr.bf16.mxu0 %v3145
  %3205 = vmatpush1.bf16.msra.mxu0 %v3144
  %3206 = vmatprep.subr.bf16.mxu0 %v3149
  %3207 = vmatpush1.bf16.msra.mxu0 %v3148
  %3208 = vmatprep.subr.bf16.mxu0 %v3153
  %3209 = vmatpush1.bf16.msra.mxu0 %v3152
  %3210 = vmatprep.subr.bf16.mxu0 %v3157
  %3211 = vmatpush1.bf16.msra.mxu0 %v3156
  %3212 = vmatprep.subr.bf16.mxu0 %v3161
  %3213 = vmatpush1.bf16.msra.mxu0 %v3160
  %3214 = vmatprep.subr.bf16.mxu0 %v3165
  %3215 = vmatpush1.bf16.msra.mxu0 %v3164
  %3216 = vmatprep.subr.bf16.mxu0 0
  %3217 = vmatpush1.bf16.msra.mxu0 0
  %3218 = vmatprep.subr.bf16.mxu0 0
  %3219 = vmatpush1.bf16.msra.mxu0 0
  %3220 = vmatprep.subr.bf16.mxu0 0
  %3221 = vmatpush1.bf16.msra.mxu0 0
  %3222 = vmatprep.subr.bf16.mxu0 0
  %3223 = vmatpush1.bf16.msra.mxu0 0
  %3224 = vmatprep.subr.bf16.mxu0 0
  %3225 = vmatpush1.bf16.msra.mxu0 0
  %3226 = vmatprep.subr.bf16.mxu0 0
  %3227 = vmatpush1.bf16.msra.mxu0 0
  %3228 = vmatprep.subr.bf16.mxu0 0
  %3229 = vmatpush1.bf16.msra.mxu0 0
  %3230 = vmatprep.subr.bf16.mxu0 0
  %3231 = vmatpush1.bf16.msra.mxu0 0
  %3232 = vmatprep.mubr.bf16.mxu0 0
  %3233 = vmatmul.mubr.bf16.gmra.mrb[0].mxu0 %v3038
  %v3234 = vpop.f32.mrb[0].mxu0
  %v3235 = vadd.f32 %v2991, %v3234
  %v3236 = vpop.f32.mrb[0].mxu0
  %v3237 = vadd.f32 %v2995, %v3236
  %v3238 = vpop.f32.mrb[0].mxu0
  %v3239 = vpop.f32.mrb[0].mxu0
  %3240 = vdwg.mxu0
  %3241 = vmatprep.subr.bf16.mxu0 %v3139
  %3242 = vmatpush1.bf16.msra.mxu0 %v3138
  %3243 = vmatprep.subr.bf16.mxu0 %v3143
  %3244 = vmatpush1.bf16.msra.mxu0 %v3142
  %3245 = vmatprep.subr.bf16.mxu0 %v3147
  %3246 = vmatpush1.bf16.msra.mxu0 %v3146
  %3247 = vmatprep.subr.bf16.mxu0 %v3151
  %3248 = vmatpush1.bf16.msra.mxu0 %v3150
  %3249 = vmatprep.subr.bf16.mxu0 %v3155
  %3250 = vmatpush1.bf16.msra.mxu0 %v3154
  %3251 = vmatprep.subr.bf16.mxu0 %v3159
  %3252 = vmatpush1.bf16.msra.mxu0 %v3158
  %3253 = vmatprep.subr.bf16.mxu0 %v3163
  %3254 = vmatpush1.bf16.msra.mxu0 %v3162
  %3255 = vmatprep.subr.bf16.mxu0 %v3167
  %3256 = vmatpush1.bf16.msra.mxu0 %v3166
  %3257 = vmatprep.subr.bf16.mxu0 0
  %3258 = vmatpush1.bf16.msra.mxu0 0
  %3259 = vmatprep.subr.bf16.mxu0 0
  %3260 = vmatpush1.bf16.msra.mxu0 0
  %3261 = vmatprep.subr.bf16.mxu0 0
  %3262 = vmatpush1.bf16.msra.mxu0 0
  %3263 = vmatprep.subr.bf16.mxu0 0
  %3264 = vmatpush1.bf16.msra.mxu0 0
  %3265 = vmatprep.subr.bf16.mxu0 0
  %3266 = vmatpush1.bf16.msra.mxu0 0
  %3267 = vmatprep.subr.bf16.mxu0 0
  %3268 = vmatpush1.bf16.msra.mxu0 0
  %3269 = vmatprep.subr.bf16.mxu0 0
  %3270 = vmatpush1.bf16.msra.mxu0 0
  %3271 = vmatprep.subr.bf16.mxu0 0
  %3272 = vmatpush1.bf16.msra.mxu0 0
  %3273 = vmatprep.mubr.bf16.mxu0 0
  %3274 = vmatmul.mubr.bf16.gmra.mrb[0].mxu0 %v3038
  %v3275 = vpop.f32.mrb[0].mxu0
  %v3276 = vadd.f32 %v2999, %v3275
  %v3277 = vpop.f32.mrb[0].mxu0
  %v3278 = vadd.f32 %v3003, %v3277
  %v3279 = vpop.f32.mrb[0].mxu0
  %v3280 = vpop.f32.mrb[0].mxu0
  %3281 = vdwg.mxu0
  %v3282 = vmax.f32 %v3235, 0.0
  %v3283 = vmax.f32 %v3237, 0.0
  %v3284 = vmax.f32 %v3276, 0.0
  %v3285 = vmax.f32 %v3278, 0.0
  %v3286 = vpack.c.bf16 %v3282, %v3282
  %v3287 = vpack.c.bf16 %v3283, %v3283
  %v3288 = vpack.c.bf16 %v3284, %v3284
  %v3289 = vpack.c.bf16 %v3285, %v3285
  %v3290 = vld [vmem:[%s5] sm:$0xf]
  %v3291 = vld [vmem:[%s5 + $0x4] sm:$0xf]
  %v3292 = vld [vmem:[%s5 + $0x8] sm:$0xf]
  %v3293 = vld [vmem:[%s5 + $0xc] sm:$0xf]
  %v3294 = vld [vmem:[%s5 + $0x10] sm:$0xf]
  %v3295 = vld [vmem:[%s5 + $0x14] sm:$0xf]
  %v3296 = vld [vmem:[%s5 + $0x18] sm:$0xf]
  %v3297 = vld [vmem:[%s5 + $0x1c] sm:$0xf]
  %v3298 = vld [vmem:[%s5 + $0x20] sm:$0xf]
  %v3299 = vld [vmem:[%s5 + $0x24] sm:$0xf]
  %v3300 = vld [vmem:[%s5 + $0x28] sm:$0xf]
  %v3301 = vld [vmem:[%s5 + $0x2c] sm:$0xf]
  %v3302 = vld [vmem:[%s5 + $0x30] sm:$0xf]
  %v3303 = vld [vmem:[%s5 + $0x34] sm:$0xf]
  %v3304 = vld [vmem:[%s5 + $0x38] sm:$0xf]
  %v3305 = vld [vmem:[%s5 + $0x3c] sm:$0xf]
  %v3306 = vld [vmem:[%s5 + $0x40] sm:$0xf]
  %v3307 = vld [vmem:[%s5 + $0x44] sm:$0xf]
  %v3308 = vld [vmem:[%s5 + $0x48] sm:$0xf]
  %v3309 = vld [vmem:[%s5 + $0x4c] sm:$0xf]
  %v3310 = vld [vmem:[%s5 + $0x50] sm:$0xf]
  %v3311 = vld [vmem:[%s5 + $0x54] sm:$0xf]
  %v3312 = vld [vmem:[%s5 + $0x58] sm:$0xf]
  %v3313 = vld [vmem:[%s5 + $0x5c] sm:$0xf]
  %v3314 = vld [vmem:[%s5 + $0x60] sm:$0xf]
  %v3315 = vld [vmem:[%s5 + $0x64] sm:$0xf]
  %v3316 = vld [vmem:[%s5 + $0x68] sm:$0xf]
  %v3317 = vld [vmem:[%s5 + $0x6c] sm:$0xf]
  %v3318 = vld [vmem:[%s5 + $0x70] sm:$0xf]
  %v3319 = vld [vmem:[%s5 + $0x74] sm:$0xf]
  %v3320 = vld [vmem:[%s5 + $0x78] sm:$0xf]
  %v3321 = vld [vmem:[%s5 + $0x7c] sm:$0xf]
  %v3322 = vld [vmem:[%s5 + $0x80] sm:$0xf]
  %v3323 = vld [vmem:[%s5 + $0x84] sm:$0xf]
  %v3324 = vld [vmem:[%s5 + $0x88] sm:$0xf]
  %v3325 = vld [vmem:[%s5 + $0x8c] sm:$0xf]
  %v3326 = vld [vmem:[%s5 + $0x90] sm:$0xf]
  %v3327 = vld [vmem:[%s5 + $0x94] sm:$0xf]
  %v3328 = vld [vmem:[%s5 + $0x98] sm:$0xf]
  %v3329 = vld [vmem:[%s5 + $0x9c] sm:$0xf]
  %v3330 = vld [vmem:[%s5 + $0xa0] sm:$0xf]
  %v3331 = vld [vmem:[%s5 + $0xa4] sm:$0xf]
  %v3332 = vld [vmem:[%s5 + $0xa8] sm:$0xf]
  %v3333 = vld [vmem:[%s5 + $0xac] sm:$0xf]
  %v3334 = vld [vmem:[%s5 + $0xb0] sm:$0xf]
  %v3335 = vld [vmem:[%s5 + $0xb4] sm:$0xf]
  %v3336 = vld [vmem:[%s5 + $0xb8] sm:$0xf]
  %v3337 = vld [vmem:[%s5 + $0xbc] sm:$0xf]
  %v3338 = vld [vmem:[%s5 + $0xc0] sm:$0xf]
  %v3339 = vld [vmem:[%s5 + $0xc4] sm:$0xf]
  %v3340 = vld [vmem:[%s5 + $0xc8] sm:$0xf]
  %v3341 = vld [vmem:[%s5 + $0xcc] sm:$0xf]
  %v3342 = vld [vmem:[%s5 + $0xd0] sm:$0xf]
  %v3343 = vld [vmem:[%s5 + $0xd4] sm:$0xf]
  %v3344 = vld [vmem:[%s5 + $0xd8] sm:$0xf]
  %v3345 = vld [vmem:[%s5 + $0xdc] sm:$0xf]
  %v3346 = vld [vmem:[%s5 + $0xe0] sm:$0xf]
  %v3347 = vld [vmem:[%s5 + $0xe4] sm:$0xf]
  %v3348 = vld [vmem:[%s5 + $0xe8] sm:$0xf]
  %v3349 = vld [vmem:[%s5 + $0xec] sm:$0xf]
  %v3350 = vld [vmem:[%s5 + $0xf0] sm:$0xf]
  %v3351 = vld [vmem:[%s5 + $0xf4] sm:$0xf]
  %v3352 = vld [vmem:[%s5 + $0xf8] sm:$0xf]
  %v3353 = vld [vmem:[%s5 + $0xfc] sm:$0xf]
  %v3354 = vld [vmem:[%s6] sm:$0x1]
  %v3356 = vlaneseq
  %v3357 = vshrl.u32 %v3356, 7
  %v3358 = vsub.s32 0, %v3357
  %v3359 = vrot.slane %v3354, %v3358
  %v3425 = vunpack.c.l.b16 %v3290
  %v3426 = vunpack.c.l.b16 %v3291
  %v3427 = vunpack.c.l.b16 %v3292
  %v3428 = vunpack.c.l.b16 %v3293
  %v3429 = vunpack.c.l.b16 %v3294
  %v3430 = vunpack.c.l.b16 %v3295
  %v3431 = vunpack.c.l.b16 %v3296
  %v3432 = vunpack.c.l.b16 %v3297
  %v3433 = vunpack.c.l.b16 %v3298
  %v3434 = vunpack.c.l.b16 %v3299
  %v3435 = vunpack.c.l.b16 %v3300
  %v3436 = vunpack.c.l.b16 %v3301
  %v3437 = vunpack.c.l.b16 %v3302
  %v3438 = vunpack.c.l.b16 %v3303
  %v3439 = vunpack.c.l.b16 %v3304
  %v3440 = vunpack.c.l.b16 %v3305
  %v3441 = vunpack.c.l.b16 %v3306
  %v3442 = vunpack.c.l.b16 %v3307
  %v3443 = vunpack.c.l.b16 %v3308
  %v3444 = vunpack.c.l.b16 %v3309
  %v3445 = vunpack.c.l.b16 %v3310
  %v3446 = vunpack.c.l.b16 %v3311
  %v3447 = vunpack.c.l.b16 %v3312
  %v3448 = vunpack.c.l.b16 %v3313
  %v3449 = vunpack.c.l.b16 %v3314
  %v3450 = vunpack.c.l.b16 %v3315
  %v3451 = vunpack.c.l.b16 %v3316
  %v3452 = vunpack.c.l.b16 %v3317
  %v3453 = vunpack.c.l.b16 %v3318
  %v3454 = vunpack.c.l.b16 %v3319
  %v3455 = vunpack.c.l.b16 %v3320
  %v3456 = vunpack.c.l.b16 %v3321
  %v3457 = vunpack.c.l.b16 %v3322
  %v3458 = vunpack.c.l.b16 %v3323
  %v3459 = vunpack.c.l.b16 %v3324
  %v3460 = vunpack.c.l.b16 %v3325
  %v3461 = vunpack.c.l.b16 %v3326
  %v3462 = vunpack.c.l.b16 %v3327
  %v3463 = vunpack.c.l.b16 %v3328
  %v3464 = vunpack.c.l.b16 %v3329
  %v3465 = vunpack.c.l.b16 %v3330
  %v3466 = vunpack.c.l.b16 %v3331
  %v3467 = vunpack.c.l.b16 %v3332
  %v3468 = vunpack.c.l.b16 %v3333
  %v3469 = vunpack.c.l.b16 %v3334
  %v3470 = vunpack.c.l.b16 %v3335
  %v3471 = vunpack.c.l.b16 %v3336
  %v3472 = vunpack.c.l.b16 %v3337
  %v3473 = vunpack.c.l.b16 %v3338
  %v3474 = vunpack.c.l.b16 %v3339
  %v3475 = vunpack.c.l.b16 %v3340
  %v3476 = vunpack.c.l.b16 %v3341
  %v3477 = vunpack.c.l.b16 %v3342
  %v3478 = vunpack.c.l.b16 %v3343
  %v3479 = vunpack.c.l.b16 %v3344
  %v3480 = vunpack.c.l.b16 %v3345
  %v3481 = vunpack.c.l.b16 %v3346
  %v3482 = vunpack.c.l.b16 %v3347
  %v3483 = vunpack.c.l.b16 %v3348
  %v3484 = vunpack.c.l.b16 %v3349
  %v3485 = vunpack.c.l.b16 %v3350
  %v3486 = vunpack.c.l.b16 %v3351
  %v3487 = vunpack.c.l.b16 %v3352
  %v3488 = vunpack.c.l.b16 %v3353
  %v3489 = vpack.c.b16 %v3426, %v3425
  %v3490 = vpack.c.b16 %v3428, %v3427
  %v3491 = vpack.c.b16 %v3430, %v3429
  %v3492 = vpack.c.b16 %v3432, %v3431
  %v3493 = vpack.c.b16 %v3434, %v3433
  %v3494 = vpack.c.b16 %v3436, %v3435
  %v3495 = vpack.c.b16 %v3438, %v3437
  %v3496 = vpack.c.b16 %v3440, %v3439
  %v3497 = vpack.c.b16 %v3442, %v3441
  %v3498 = vpack.c.b16 %v3444, %v3443
  %v3499 = vpack.c.b16 %v3446, %v3445
  %v3500 = vpack.c.b16 %v3448, %v3447
  %v3501 = vpack.c.b16 %v3450, %v3449
  %v3502 = vpack.c.b16 %v3452, %v3451
  %v3503 = vpack.c.b16 %v3454, %v3453
  %v3504 = vpack.c.b16 %v3456, %v3455
  %v3505 = vpack.c.b16 %v3458, %v3457
  %v3506 = vpack.c.b16 %v3460, %v3459
  %v3507 = vpack.c.b16 %v3462, %v3461
  %v3508 = vpack.c.b16 %v3464, %v3463
  %v3509 = vpack.c.b16 %v3466, %v3465
  %v3510 = vpack.c.b16 %v3468, %v3467
  %v3511 = vpack.c.b16 %v3470, %v3469
  %v3512 = vpack.c.b16 %v3472, %v3471
  %v3513 = vpack.c.b16 %v3474, %v3473
  %v3514 = vpack.c.b16 %v3476, %v3475
  %v3515 = vpack.c.b16 %v3478, %v3477
  %v3516 = vpack.c.b16 %v3480, %v3479
  %v3517 = vpack.c.b16 %v3482, %v3481
  %v3518 = vpack.c.b16 %v3484, %v3483
  %v3519 = vpack.c.b16 %v3486, %v3485
  %v3520 = vpack.c.b16 %v3488, %v3487
  %3553 = vmatprep.subr.bf16.mxu0 0
  %3554 = vmatpush1.bf16.msra.mxu0 %v3489
  %3555 = vmatprep.subr.bf16.mxu0 0
  %3556 = vmatpush1.bf16.msra.mxu0 %v3490
  %3557 = vmatprep.subr.bf16.mxu0 0
  %3558 = vmatpush1.bf16.msra.mxu0 %v3491
  %3559 = vmatprep.subr.bf16.mxu0 0
  %3560 = vmatpush1.bf16.msra.mxu0 %v3492
  %3561 = vmatprep.subr.bf16.mxu0 0
  %3562 = vmatpush1.bf16.msra.mxu0 %v3493
  %3563 = vmatprep.subr.bf16.mxu0 0
  %3564 = vmatpush1.bf16.msra.mxu0 %v3494
  %3565 = vmatprep.subr.bf16.mxu0 0
  %3566 = vmatpush1.bf16.msra.mxu0 %v3495
  %3567 = vmatprep.subr.bf16.mxu0 0
  %3568 = vmatpush1.bf16.msra.mxu0 %v3496
  %3569 = vmatprep.subr.bf16.mxu0 0
  %3570 = vmatpush1.bf16.msra.mxu0 %v3497
  %3571 = vmatprep.subr.bf16.mxu0 0
  %3572 = vmatpush1.bf16.msra.mxu0 %v3498
  %3573 = vmatprep.subr.bf16.mxu0 0
  %3574 = vmatpush1.bf16.msra.mxu0 %v3499
  %3575 = vmatprep.subr.bf16.mxu0 0
  %3576 = vmatpush1.bf16.msra.mxu0 %v3500
  %3577 = vmatprep.subr.bf16.mxu0 0
  %3578 = vmatpush1.bf16.msra.mxu0 %v3501
  %3579 = vmatprep.subr.bf16.mxu0 0
  %3580 = vmatpush1.bf16.msra.mxu0 %v3502
  %3581 = vmatprep.subr.bf16.mxu0 0
  %3582 = vmatpush1.bf16.msra.mxu0 %v3503
  %3583 = vmatprep.subr.bf16.mxu0 0
  %3584 = vmatpush1.bf16.msra.mxu0 %v3504
  %3585 = vmatprep.mubr.bf16.mxu0 %v3287
  %3586 = vmatmul.mubr.bf16.gmra.mrb[0].mxu0 %v3286
  %v3587 = vpop.f32.mrb[0].mxu0
  %v3588 = vadd.f32 %v3359, %v3587
  %v3589 = vpop.f32.mrb[0].mxu0
  %v3590 = vpop.f32.mrb[0].mxu0
  %v3591 = vpop.f32.mrb[0].mxu0
  %3592 = vdwg.mxu0
  %3593 = vmatprep.subr.bf16.mxu0 0
  %3594 = vmatpush1.bf16.msra.mxu0 %v3505
  %3595 = vmatprep.subr.bf16.mxu0 0
  %3596 = vmatpush1.bf16.msra.mxu0 %v3506
  %3597 = vmatprep.subr.bf16.mxu0 0
  %3598 = vmatpush1.bf16.msra.mxu0 %v3507
  %3599 = vmatprep.subr.bf16.mxu0 0
  %3600 = vmatpush1.bf16.msra.mxu0 %v3508
  %3601 = vmatprep.subr.bf16.mxu0 0
  %3602 = vmatpush1.bf16.msra.mxu0 %v3509
  %3603 = vmatprep.subr.bf16.mxu0 0
  %3604 = vmatpush1.bf16.msra.mxu0 %v3510
  %3605 = vmatprep.subr.bf16.mxu0 0
  %3606 = vmatpush1.bf16.msra.mxu0 %v3511
  %3607 = vmatprep.subr.bf16.mxu0 0
  %3608 = vmatpush1.bf16.msra.mxu0 %v3512
  %3609 = vmatprep.subr.bf16.mxu0 0
  %3610 = vmatpush1.bf16.msra.mxu0 %v3513
  %3611 = vmatprep.subr.bf16.mxu0 0
  %3612 = vmatpush1.bf16.msra.mxu0 %v3514
  %3613 = vmatprep.subr.bf16.mxu0 0
  %3614 = vmatpush1.bf16.msra.mxu0 %v3515
  %3615 = vmatprep.subr.bf16.mxu0 0
  %3616 = vmatpush1.bf16.msra.mxu0 %v3516
  %3617 = vmatprep.subr.bf16.mxu0 0
  %3618 = vmatpush1.bf16.msra.mxu0 %v3517
  %3619 = vmatprep.subr.bf16.mxu0 0
  %3620 = vmatpush1.bf16.msra.mxu0 %v3518
  %3621 = vmatprep.subr.bf16.mxu0 0
  %3622 = vmatpush1.bf16.msra.mxu0 %v3519
  %3623 = vmatprep.subr.bf16.mxu0 0
  %3624 = vmatpush1.bf16.msra.mxu0 %v3520
  %3625 = vmatprep.mubr.bf16.mxu0 %v3289
  %3626 = vmatmul.mubr.bf16.gmra.mrb[0].mxu0 %v3288
  %v3627 = vpop.f32.mrb[0].mxu0
  %v3628 = vadd.f32 %v3588, %v3627
  %v3629 = vpop.f32.mrb[0].mxu0
  %v3630 = vpop.f32.mrb[0].mxu0
  %v3631 = vpop.f32.mrb[0].mxu0
  %3632 = vdwg.mxu0
  %3633 = vst [vmem:[%s7] sm:$0xff] %v3628
  // Predicated region
  $region30: #{simclr_forward.1} parent=0 // pred_check
    _
  $region31: #{simclr_forward.1} parent=0 // pred_check_branch
    %3635 = sbr.rel (0) target = $region33
  $region32: #{simclr_forward.1} parent=0 // pred_region
    _
  $region33: #{simclr_forward.1} parent=0 // pred_fallthru
    _
  // Predicated region
  $region34: #{simclr_forward.1} parent=0 // pred_check
    _
  $region35: #{simclr_forward.1} parent=0 // pred_check_branch
    %3637 = sbr.rel (0) target = $region37
  $region36: #{simclr_forward.1} parent=0 // pred_region
    _
  $region37: #{simclr_forward.1} parent=0 // pred_fallthru
    _

</llo_original>
